<compile_context>
chip_gen: v7x
topology: tpu7x:2x2x1
jax: 0.10.0
libtpu: 0.0.40
codegen_flags: <defaults>
</compile_context>

<pallas_src>
import functools

import jax
import jax.numpy as jnp
from jax.experimental import pallas as pl
from jax.experimental.pallas import tpu as pltpu

KH = KW = 4  # kernel_size=(4, 4) in the PyTorch module


# ----------------------------- Pallas kernels ------------------------------ #
def _conv_stats_kernel(w_ref, p_ref, y_ref, s1_ref, s2_ref):
    """Pass A for BN layers: Y_tile = W @ P_tile, plus fused partial sums
    (sum y, sum y^2) accumulated across the rows grid axis."""
    i = pl.program_id(0)
    y = jnp.dot(w_ref[...], p_ref[...], preferred_element_type=jnp.float32)
    y_ref[...] = y

    @pl.when(i == 0)
    def _():
        s1_ref[...] = jnp.zeros_like(s1_ref)
        s2_ref[...] = jnp.zeros_like(s2_ref)

    # Single-pass statistics: sum(y) and sum(y*y) in the same sweep.
    s1_ref[...] += jnp.sum(y, axis=1, keepdims=True)
    s2_ref[...] += jnp.sum(y * y, axis=1, keepdims=True)


def _bn_act_kernel(y_ref, scale_ref, shift_ref, o_ref, *, use_act, slope):
    """Pass B for BN layers: y * scale + shift, then optional LeakyReLU."""
    y = y_ref[...] * scale_ref[...] + shift_ref[...]
    if use_act:
        y = jnp.where(y >= 0.0, y, slope * y)
    o_ref[...] = y


def _conv_bias_act_kernel(w_ref, p_ref, b_ref, o_ref, *, use_act, slope):
    """Non-BN layers: Y_tile = W @ P_tile + bias, optional LeakyReLU."""
    y = jnp.dot(w_ref[...], p_ref[...], preferred_element_type=jnp.float32)
    y = y + b_ref[...]  # (Cout, 1) broadcast over lanes
    if use_act:
        y = jnp.where(y >= 0.0, y, slope * y)
    o_ref[...] = y


# ------------------------------ glue (JAX) --------------------------------- #
def _pick_row_tile(rows):
    """Largest lane-aligned tile that yields >= 2 grid steps (so the BlockSpec
    pipeline actually double-buffers); otherwise take the whole extent."""
    for t in (2048, 1024, 512, 256, 128):
        if rows % t == 0 and rows // t >= 2:
            return t
    return rows


def _im2col_T(x_nchw, stride):
    """im2col with padding=1, kernel 4x4, transposed layout.

    Returns P of shape (Cin*KH*KW, N*Ho*Wo); row order (cin, kh, kw) matches
    PyTorch weight.reshape(Cout, -1); column order (n, ho, wo)."""
    xp = jnp.pad(x_nchw, ((0, 0), (0, 0), (1, 1), (1, 1)))
    n, c, hp, wp = xp.shape
    ho = (hp - KH) // stride + 1
    wo = (wp - KW) // stride + 1
    slices = []
    for dy in range(KH):
        for dx in range(KW):
            sl = jax.lax.slice(
                xp,
                (0, 0, dy, dx),
                (n, c, dy + stride * (ho - 1) + 1, dx + stride * (wo - 1) + 1),
                (1, 1, stride, stride))
            slices.append(sl)                      # (n, c, ho, wo)
    pat = jnp.stack(slices, axis=0)                # (16, n, c, ho, wo)
    pat = jnp.transpose(pat, (2, 0, 1, 3, 4))      # (c, 16, n, ho, wo)
    return pat.reshape(c * KH * KW, n * ho * wo), (n, ho, wo)


def conv_block(x_nchw, w_oihw, bias, gamma, beta, *, stride, use_bn, use_act,
               eps=1e-5, slope=0.2):
    cout, cin = w_oihw.shape[0], w_oihw.shape[1]
    p, (n, ho, wo) = _im2col_T(x_nchw, stride)
    k, rows = p.shape
    w2d = w_oihw.reshape(cout, cin * KH * KW)      # (Cout, K), K order (cin,kh,kw)

    tile = _pick_row_tile(rows)
    grid = (rows // tile,)

    # bf16 MXU operands, f32 accumulation/epilogue.
    p_bf = p.astype(jnp.bfloat16)
    w_bf = w2d.astype(jnp.bfloat16)

    if use_bn:
        # Pass A: conv + fused partial batch statistics.
        y, s1, s2 = pl.pallas_call(
            _conv_stats_kernel,
            out_shape=(jax.ShapeDtypeStruct((cout, rows), jnp.float32),
                       jax.ShapeDtypeStruct((cout, 1), jnp.float32),
                       jax.ShapeDtypeStruct((cout, 1), jnp.float32)),
            grid=grid,
            in_specs=[pl.BlockSpec((cout, k), lambda i: (0, 0)),
                      pl.BlockSpec((k, tile), lambda i: (0, i))],
            out_specs=(pl.BlockSpec((cout, tile), lambda i: (0, i)),
                       pl.BlockSpec((cout, 1), lambda i: (0, 0)),
                       pl.BlockSpec((cout, 1), lambda i: (0, 0))),
            compiler_params=pltpu.CompilerParams(
                dimension_semantics=("arbitrary",)),
        )(w_bf, p_bf)

        # Fold BN (training-mode, biased batch stats) into scale/shift (tiny).
        mean = s1[:, 0] / rows
        var = jnp.maximum(s2[:, 0] / rows - mean * mean, 0.0)
        scale = gamma * jax.lax.rsqrt(var + eps)
        shift = beta - mean * scale

        # Pass B: normalize + LeakyReLU, fully parallel over row tiles.
        out2d = pl.pallas_call(
            functools.partial(_bn_act_kernel, use_act=use_act, slope=slope),
            out_shape=jax.ShapeDtypeStruct((cout, rows), jnp.float32),
            grid=grid,
            in_specs=[pl.BlockSpec((cout, tile), lambda i: (0, i)),
                      pl.BlockSpec((cout, 1), lambda i: (0, 0)),
                      pl.BlockSpec((cout, 1), lambda i: (0, 0))],
            out_specs=pl.BlockSpec((cout, tile), lambda i: (0, i)),
            compiler_params=pltpu.CompilerParams(
                dimension_semantics=("parallel",)),
        )(y, scale.reshape(cout, 1), shift.reshape(cout, 1))
    else:
        out2d = pl.pallas_call(
            functools.partial(_conv_bias_act_kernel, use_act=use_act,
                              slope=slope),
            out_shape=jax.ShapeDtypeStruct((cout, rows), jnp.float32),
            grid=grid,
            in_specs=[pl.BlockSpec((cout, k), lambda i: (0, 0)),
                      pl.BlockSpec((k, tile), lambda i: (0, i)),
                      pl.BlockSpec((cout, 1), lambda i: (0, 0))],
            out_specs=pl.BlockSpec((cout, tile), lambda i: (0, i)),
            compiler_params=pltpu.CompilerParams(
                dimension_semantics=("parallel",)),
        )(w_bf, p_bf, bias.reshape(cout, 1).astype(jnp.float32))

    out = out2d.reshape(cout, n, ho, wo)
    return jnp.transpose(out, (1, 0, 2, 3))        # NCHW


# --------------------------- model construction ---------------------------- #
def init_params(key, input_nc=3, ndf=8, n_layers=3):
    """Deterministic synthetic parameters mirroring NLayerDiscriminator.__init__.

    norm_layer = nn.BatchNorm2d => use_bias=False for the normalized convs.
    BatchNorm affine params default to gamma=1, beta=0 (PyTorch defaults).
    """
    cfg = [(input_nc, ndf, 2, False, True)]        # conv0 + LeakyReLU (with bias)
    nf_mult = 1
    for i in range(1, n_layers):
        nf_mult_prev = nf_mult
        nf_mult = min(2 ** i, 8)
        cfg.append((ndf * nf_mult_prev, ndf * nf_mult, 2, True, True))
    nf_mult_prev = nf_mult
    nf_mult = min(2 ** n_layers, 8)
    cfg.append((ndf * nf_mult_prev, ndf * nf_mult, 1, True, True))
    cfg.append((ndf * nf_mult, 1, 1, False, False))  # final conv, no act

    params = []
    for (cin, cout, stride, use_bn, use_act) in cfg:
        key, kw_, kb_ = jax.random.split(key, 3)
        w = 0.05 * jax.random.normal(kw_, (cout, cin, KH, KW), jnp.float32)
        if use_bn:
            b = jnp.zeros((cout,), jnp.float32)    # conv bias disabled under BN
        else:
            b = 0.05 * jax.random.normal(kb_, (cout,), jnp.float32)
        params.append(dict(w=w, b=b,
                           gamma=jnp.ones((cout,), jnp.float32),
                           beta=jnp.zeros((cout,), jnp.float32),
                           stride=stride, use_bn=use_bn, use_act=use_act))
    return params


def nlayer_discriminator(x_nchw, params):
    h = x_nchw
    for p in params:
        h = conv_block(h, p["w"], p["b"], p["gamma"], p["beta"],
                       stride=p["stride"], use_bn=p["use_bn"],
                       use_act=p["use_act"])
    return h


# --------------------------------- main ------------------------------------ #
if __name__ == "__main__":
    key = jax.random.PRNGKey(0)
    kx, kp = jax.random.split(key)
    # N=2, C=3, H=W=64: 64->32->16->8->7->6 spatial; exercises both the
    # multi-step "parallel" grid (layer 0) and the multi-step BN accumulation
    # path (layer 1).
    x = jax.random.normal(kx, (2, 3, 64, 64), jnp.float32)
    params = init_params(kp, input_nc=3, ndf=8, n_layers=3)

    forward = jax.jit(lambda inp: nlayer_discriminator(inp, params))
    out = jax.block_until_ready(forward(x))

    assert out.shape == (2, 1, 6, 6), out.shape
    assert bool(jnp.all(jnp.isfinite(out)))
    print("KERNEL_OK")
</pallas_src>

<mosaic_0001>
module attributes {stable_mosaic.version = 11 : i64} {
  func.func @_conv_bias_act_kernel(%arg0: i32, %arg1: memref<8x48xbf16, #tpu.memory_space<vmem>>, %arg2: memref<48x1024xbf16, #tpu.memory_space<vmem>>, %arg3: memref<8x1xf32, #tpu.memory_space<vmem>>, %arg4: memref<8x1024xf32, #tpu.memory_space<vmem>>) attributes {dimension_semantics = [#tpu.dimension_semantics<parallel>], iteration_bounds = array<i64: 2>, scalar_prefetch = 0 : i64, scratch_operands = 0 : i64, tpu.core_type = #tpu.core_type<tc>, window_params = [{pipeline_mode = #tpu.pipeline_mode<synchronous>, transform_indices = @transform_0, window_bounds = array<i64: 8, 48>}, {transform_indices = @transform_1, window_bounds = array<i64: 48, 1024>}, {pipeline_mode = #tpu.pipeline_mode<synchronous>, transform_indices = @transform_2, window_bounds = array<i64: 8, 1>}, {transform_indices = @transform_3, window_bounds = array<i64: 8, 1024>}]} {
    %c0 = arith.constant 0 : index
    %c0_0 = arith.constant 0 : index
    %0 = vector.load %arg1[%c0, %c0_0] : memref<8x48xbf16, #tpu.memory_space<vmem>>, vector<8x48xbf16>
    %c0_1 = arith.constant 0 : index
    %c0_2 = arith.constant 0 : index
    %1 = vector.load %arg2[%c0_1, %c0_2] : memref<48x1024xbf16, #tpu.memory_space<vmem>>, vector<48x1024xbf16>
    %cst = arith.constant dense<0.000000e+00> : vector<8x1024xf32>
    %2 = tpu.matmul %0, %1, %cst {dimension_numbers = #tpu.dot_dimension_numbers<[1], [0], [0], [1], [0, 0, 1, 1], [], []>} : vector<8x48xbf16>, vector<48x1024xbf16>, vector<8x1024xf32> -> vector<8x1024xf32>
    %c0_3 = arith.constant 0 : index
    %c0_4 = arith.constant 0 : index
    %3 = vector.load %arg3[%c0_3, %c0_4] : memref<8x1xf32, #tpu.memory_space<vmem>>, vector<8x1xf32>
    %4 = vector.broadcast %3 : vector<8x1xf32> to vector<8x1024xf32>
    %5 = arith.addf %2, %4 : vector<8x1024xf32>
    %cst_5 = arith.constant 0.000000e+00 : f32
    %6 = vector.broadcast %cst_5 : f32 to vector<8x1024xf32>
    %7 = arith.cmpf oge, %5, %6 : vector<8x1024xf32>
    %cst_6 = arith.constant 2.000000e-01 : f32
    %8 = vector.broadcast %cst_6 : f32 to vector<8x1024xf32>
    %9 = arith.mulf %8, %5 : vector<8x1024xf32>
    %10 = arith.select %7, %5, %9 : vector<8x1024xi1>, vector<8x1024xf32>
    %c0_7 = arith.constant 0 : index
    %c0_8 = arith.constant 0 : index
    %11 = vector.load %arg4[%c0_7, %c0_8] : memref<8x1024xf32, #tpu.memory_space<vmem>>, vector<8x1024xf32>
    tpu.vector_store %arg4[%c0_7, %c0_8], %10 {strides = array<i32>} : memref<8x1024xf32, #tpu.memory_space<vmem>>, vector<8x1024xf32>,
    return
  }
  func.func @transform_0(%arg0: i32) -> (i32, i32) {
    %c0_i32 = arith.constant 0 : i32
    %c0_i32_0 = arith.constant 0 : i32
    %c0_i32_1 = arith.constant 0 : i32
    return %c0_i32, %c0_i32_0 : i32, i32
  }
  func.func @transform_1(%arg0: i32) -> (i32, i32) {
    %c0_i32 = arith.constant 0 : i32
    %c0_i32_0 = arith.constant 0 : i32
    return %c0_i32, %arg0 : i32, i32
  }
  func.func @transform_2(%arg0: i32) -> (i32, i32) {
    %c0_i32 = arith.constant 0 : i32
    %c0_i32_0 = arith.constant 0 : i32
    %c0_i32_1 = arith.constant 0 : i32
    return %c0_i32, %c0_i32_0 : i32, i32
  }
  func.func @transform_3(%arg0: i32) -> (i32, i32) {
    %c0_i32 = arith.constant 0 : i32
    %c0_i32_0 = arith.constant 0 : i32
    return %c0_i32, %arg0 : i32, i32
  }
}

module attributes {stable_mosaic.version = 11 : i64} {
  func.func @_conv_stats_kernel(%arg0: i32, %arg1: memref<16x128xbf16, #tpu.memory_space<vmem>>, %arg2: memref<128x256xbf16, #tpu.memory_space<vmem>>, %arg3: memref<16x256xf32, #tpu.memory_space<vmem>>, %arg4: memref<16x1xf32, #tpu.memory_space<vmem>>, %arg5: memref<16x1xf32, #tpu.memory_space<vmem>>) attributes {dimension_semantics = [#tpu.dimension_semantics<arbitrary>], iteration_bounds = array<i64: 2>, scalar_prefetch = 0 : i64, scratch_operands = 0 : i64, tpu.core_type = #tpu.core_type<tc>, window_params = [{pipeline_mode = #tpu.pipeline_mode<synchronous>, transform_indices = @transform_0, window_bounds = array<i64: 16, 128>}, {transform_indices = @transform_1, window_bounds = array<i64: 128, 256>}, {transform_indices = @transform_2, window_bounds = array<i64: 16, 256>}, {pipeline_mode = #tpu.pipeline_mode<synchronous>, transform_indices = @transform_3, window_bounds = array<i64: 16, 1>}, {pipeline_mode = #tpu.pipeline_mode<synchronous>, transform_indices = @transform_4, window_bounds = array<i64: 16, 1>}]} {
    %c0 = arith.constant 0 : index
    %c0_0 = arith.constant 0 : index
    %0 = vector.load %arg1[%c0, %c0_0] : memref<16x128xbf16, #tpu.memory_space<vmem>>, vector<16x128xbf16>
    %c0_1 = arith.constant 0 : index
    %c0_2 = arith.constant 0 : index
    %1 = vector.load %arg2[%c0_1, %c0_2] : memref<128x256xbf16, #tpu.memory_space<vmem>>, vector<128x256xbf16>
    %cst = arith.constant dense<0.000000e+00> : vector<16x256xf32>
    %2 = tpu.matmul %0, %1, %cst {dimension_numbers = #tpu.dot_dimension_numbers<[1], [0], [0], [1], [0, 0, 1, 1], [], []>} : vector<16x128xbf16>, vector<128x256xbf16>, vector<16x256xf32> -> vector<16x256xf32>
    %c0_3 = arith.constant 0 : index
    %c0_4 = arith.constant 0 : index
    %3 = vector.load %arg3[%c0_3, %c0_4] : memref<16x256xf32, #tpu.memory_space<vmem>>, vector<16x256xf32>
    tpu.vector_store %arg3[%c0_3, %c0_4], %2 {strides = array<i32>} : memref<16x256xf32, #tpu.memory_space<vmem>>, vector<16x256xf32>,
    %c0_i32 = arith.constant 0 : i32
    %4 = arith.cmpi eq, %arg0, %c0_i32 : i32
    %5 = arith.extui %4 : i1 to i32
    %c0_i32_5 = arith.constant 0 : i32
    %6 = arith.cmpi ne, %5, %c0_i32_5 : i32
    scf.if %6 {
      %cst_16 = arith.constant 0.000000e+00 : f32
      %18 = vector.broadcast %cst_16 : f32 to vector<16x1xf32>
      %c0_17 = arith.constant 0 : index
      %c0_18 = arith.constant 0 : index
      %19 = vector.load %arg4[%c0_17, %c0_18] : memref<16x1xf32, #tpu.memory_space<vmem>>, vector<16x1xf32>
      tpu.vector_store %arg4[%c0_17, %c0_18], %18 {strides = array<i32>} : memref<16x1xf32, #tpu.memory_space<vmem>>, vector<16x1xf32>,
      %cst_19 = arith.constant 0.000000e+00 : f32
      %20 = vector.broadcast %cst_19 : f32 to vector<16x1xf32>
      %c0_20 = arith.constant 0 : index
      %c0_21 = arith.constant 0 : index
      %21 = vector.load %arg5[%c0_20, %c0_21] : memref<16x1xf32, #tpu.memory_space<vmem>>, vector<16x1xf32>
      tpu.vector_store %arg5[%c0_20, %c0_21], %20 {strides = array<i32>} : memref<16x1xf32, #tpu.memory_space<vmem>>, vector<16x1xf32>,
    } else {
    }
    %c0_6 = arith.constant 0 : index
    %c0_7 = arith.constant 0 : index
    %7 = vector.load %arg4[%c0_6, %c0_7] : memref<16x1xf32, #tpu.memory_space<vmem>>, vector<16x1xf32>
    %cst_8 = arith.constant dense<0.000000e+00> : vector<16xf32>
    %8 = vector.multi_reduction <add>, %2, %cst_8 [1] : vector<16x256xf32> to vector<16xf32>
    %9 = vector.shape_cast %8 : vector<16xf32> to vector<16x1xf32>
    %10 = arith.addf %7, %9 : vector<16x1xf32>
    %c0_9 = arith.constant 0 : index
    %c0_10 = arith.constant 0 : index
    %11 = vector.load %arg4[%c0_9, %c0_10] : memref<16x1xf32, #tpu.memory_space<vmem>>, vector<16x1xf32>
    tpu.vector_store %arg4[%c0_9, %c0_10], %10 {strides = array<i32>} : memref<16x1xf32, #tpu.memory_space<vmem>>, vector<16x1xf32>,
    %c0_11 = arith.constant 0 : index
    %c0_12 = arith.constant 0 : index
    %12 = vector.load %arg5[%c0_11, %c0_12] : memref<16x1xf32, #tpu.memory_space<vmem>>, vector<16x1xf32>
    %13 = arith.mulf %2, %2 : vector<16x256xf32>
    %cst_13 = arith.constant dense<0.000000e+00> : vector<16xf32>
    %14 = vector.multi_reduction <add>, %13, %cst_13 [1] : vector<16x256xf32> to vector<16xf32>
    %15 = vector.shape_cast %14 : vector<16xf32> to vector<16x1xf32>
    %16 = arith.addf %12, %15 : vector<16x1xf32>
    %c0_14 = arith.constant 0 : index
    %c0_15 = arith.constant 0 : index
    %17 = vector.load %arg5[%c0_14, %c0_15] : memref<16x1xf32, #tpu.memory_space<vmem>>, vector<16x1xf32>
    tpu.vector_store %arg5[%c0_14, %c0_15], %16 {strides = array<i32>} : memref<16x1xf32, #tpu.memory_space<vmem>>, vector<16x1xf32>,
    return
  }
  func.func @transform_0(%arg0: i32) -> (i32, i32) {
    %c0_i32 = arith.constant 0 : i32
    %c0_i32_0 = arith.constant 0 : i32
    %c0_i32_1 = arith.constant 0 : i32
    return %c0_i32, %c0_i32_0 : i32, i32
  }
  func.func @transform_1(%arg0: i32) -> (i32, i32) {
    %c0_i32 = arith.constant 0 : i32
    %c0_i32_0 = arith.constant 0 : i32
    return %c0_i32, %arg0 : i32, i32
  }
  func.func @transform_2(%arg0: i32) -> (i32, i32) {
    %c0_i32 = arith.constant 0 : i32
    %c0_i32_0 = arith.constant 0 : i32
    return %c0_i32, %arg0 : i32, i32
  }
  func.func @transform_3(%arg0: i32) -> (i32, i32) {
    %c0_i32 = arith.constant 0 : i32
    %c0_i32_0 = arith.constant 0 : i32
    %c0_i32_1 = arith.constant 0 : i32
    return %c0_i32, %c0_i32_0 : i32, i32
  }
  func.func @transform_4(%arg0: i32) -> (i32, i32) {
    %c0_i32 = arith.constant 0 : i32
    %c0_i32_0 = arith.constant 0 : i32
    %c0_i32_1 = arith.constant 0 : i32
    return %c0_i32, %c0_i32_0 : i32, i32
  }
}

module attributes {stable_mosaic.version = 11 : i64} {
  func.func @_bn_act_kernel(%arg0: i32, %arg1: memref<16x256xf32, #tpu.memory_space<vmem>>, %arg2: memref<16x1xf32, #tpu.memory_space<vmem>>, %arg3: memref<16x1xf32, #tpu.memory_space<vmem>>, %arg4: memref<16x256xf32, #tpu.memory_space<vmem>>) attributes {dimension_semantics = [#tpu.dimension_semantics<parallel>], iteration_bounds = array<i64: 2>, scalar_prefetch = 0 : i64, scratch_operands = 0 : i64, tpu.core_type = #tpu.core_type<tc>, window_params = [{transform_indices = @transform_0, window_bounds = array<i64: 16, 256>}, {pipeline_mode = #tpu.pipeline_mode<synchronous>, transform_indices = @transform_1, window_bounds = array<i64: 16, 1>}, {pipeline_mode = #tpu.pipeline_mode<synchronous>, transform_indices = @transform_2, window_bounds = array<i64: 16, 1>}, {transform_indices = @transform_3, window_bounds = array<i64: 16, 256>}]} {
    %c0 = arith.constant 0 : index
    %c0_0 = arith.constant 0 : index
    %0 = vector.load %arg1[%c0, %c0_0] : memref<16x256xf32, #tpu.memory_space<vmem>>, vector<16x256xf32>
    %c0_1 = arith.constant 0 : index
    %c0_2 = arith.constant 0 : index
    %1 = vector.load %arg2[%c0_1, %c0_2] : memref<16x1xf32, #tpu.memory_space<vmem>>, vector<16x1xf32>
    %2 = vector.broadcast %1 : vector<16x1xf32> to vector<16x256xf32>
    %3 = arith.mulf %0, %2 : vector<16x256xf32>
    %c0_3 = arith.constant 0 : index
    %c0_4 = arith.constant 0 : index
    %4 = vector.load %arg3[%c0_3, %c0_4] : memref<16x1xf32, #tpu.memory_space<vmem>>, vector<16x1xf32>
    %5 = vector.broadcast %4 : vector<16x1xf32> to vector<16x256xf32>
    %6 = arith.addf %3, %5 : vector<16x256xf32>
    %cst = arith.constant 0.000000e+00 : f32
    %7 = vector.broadcast %cst : f32 to vector<16x256xf32>
    %8 = arith.cmpf oge, %6, %7 : vector<16x256xf32>
    %cst_5 = arith.constant 2.000000e-01 : f32
    %9 = vector.broadcast %cst_5 : f32 to vector<16x256xf32>
    %10 = arith.mulf %9, %6 : vector<16x256xf32>
    %11 = arith.select %8, %6, %10 : vector<16x256xi1>, vector<16x256xf32>
    %c0_6 = arith.constant 0 : index
    %c0_7 = arith.constant 0 : index
    %12 = vector.load %arg4[%c0_6, %c0_7] : memref<16x256xf32, #tpu.memory_space<vmem>>, vector<16x256xf32>
    tpu.vector_store %arg4[%c0_6, %c0_7], %11 {strides = array<i32>} : memref<16x256xf32, #tpu.memory_space<vmem>>, vector<16x256xf32>,
    return
  }
  func.func @transform_0(%arg0: i32) -> (i32, i32) {
    %c0_i32 = arith.constant 0 : i32
    %c0_i32_0 = arith.constant 0 : i32
    return %c0_i32, %arg0 : i32, i32
  }
  func.func @transform_1(%arg0: i32) -> (i32, i32) {
    %c0_i32 = arith.constant 0 : i32
    %c0_i32_0 = arith.constant 0 : i32
    %c0_i32_1 = arith.constant 0 : i32
    return %c0_i32, %c0_i32_0 : i32, i32
  }
  func.func @transform_2(%arg0: i32) -> (i32, i32) {
    %c0_i32 = arith.constant 0 : i32
    %c0_i32_0 = arith.constant 0 : i32
    %c0_i32_1 = arith.constant 0 : i32
    return %c0_i32, %c0_i32_0 : i32, i32
  }
  func.func @transform_3(%arg0: i32) -> (i32, i32) {
    %c0_i32 = arith.constant 0 : i32
    %c0_i32_0 = arith.constant 0 : i32
    return %c0_i32, %arg0 : i32, i32
  }
}

module attributes {stable_mosaic.version = 11 : i64} {
  func.func @_conv_stats_kernel(%arg0: i32, %arg1: memref<32x256xbf16, #tpu.memory_space<vmem>>, %arg2: memref<256x128xbf16, #tpu.memory_space<vmem>>, %arg3: memref<32x128xf32, #tpu.memory_space<vmem>>, %arg4: memref<32x1xf32, #tpu.memory_space<vmem>>, %arg5: memref<32x1xf32, #tpu.memory_space<vmem>>) attributes {dimension_semantics = [#tpu.dimension_semantics<arbitrary>], iteration_bounds = array<i64: 1>, scalar_prefetch = 0 : i64, scratch_operands = 0 : i64, tpu.core_type = #tpu.core_type<tc>, window_params = [{pipeline_mode = #tpu.pipeline_mode<synchronous>, transform_indices = @transform_0, window_bounds = array<i64: 32, 256>}, {transform_indices = @transform_1, window_bounds = array<i64: 256, 128>}, {transform_indices = @transform_2, window_bounds = array<i64: 32, 128>}, {pipeline_mode = #tpu.pipeline_mode<synchronous>, transform_indices = @transform_3, window_bounds = array<i64: 32, 1>}, {pipeline_mode = #tpu.pipeline_mode<synchronous>, transform_indices = @transform_4, window_bounds = array<i64: 32, 1>}]} {
    %c0 = arith.constant 0 : index
    %c0_0 = arith.constant 0 : index
    %0 = vector.load %arg1[%c0, %c0_0] : memref<32x256xbf16, #tpu.memory_space<vmem>>, vector<32x256xbf16>
    %c0_1 = arith.constant 0 : index
    %c0_2 = arith.constant 0 : index
    %1 = vector.load %arg2[%c0_1, %c0_2] : memref<256x128xbf16, #tpu.memory_space<vmem>>, vector<256x128xbf16>
    %cst = arith.constant dense<0.000000e+00> : vector<32x128xf32>
    %2 = tpu.matmul %0, %1, %cst {dimension_numbers = #tpu.dot_dimension_numbers<[1], [0], [0], [1], [0, 0, 1, 1], [], []>} : vector<32x256xbf16>, vector<256x128xbf16>, vector<32x128xf32> -> vector<32x128xf32>
    %c0_3 = arith.constant 0 : index
    %c0_4 = arith.constant 0 : index
    %3 = vector.load %arg3[%c0_3, %c0_4] : memref<32x128xf32, #tpu.memory_space<vmem>>, vector<32x128xf32>
    tpu.vector_store %arg3[%c0_3, %c0_4], %2 {strides = array<i32>} : memref<32x128xf32, #tpu.memory_space<vmem>>, vector<32x128xf32>,
    %c0_i32 = arith.constant 0 : i32
    %4 = arith.cmpi eq, %arg0, %c0_i32 : i32
    %5 = arith.extui %4 : i1 to i32
    %c0_i32_5 = arith.constant 0 : i32
    %6 = arith.cmpi ne, %5, %c0_i32_5 : i32
    scf.if %6 {
      %cst_16 = arith.constant 0.000000e+00 : f32
      %18 = vector.broadcast %cst_16 : f32 to vector<32x1xf32>
      %c0_17 = arith.constant 0 : index
      %c0_18 = arith.constant 0 : index
      %19 = vector.load %arg4[%c0_17, %c0_18] : memref<32x1xf32, #tpu.memory_space<vmem>>, vector<32x1xf32>
      tpu.vector_store %arg4[%c0_17, %c0_18], %18 {strides = array<i32>} : memref<32x1xf32, #tpu.memory_space<vmem>>, vector<32x1xf32>,
      %cst_19 = arith.constant 0.000000e+00 : f32
      %20 = vector.broadcast %cst_19 : f32 to vector<32x1xf32>
      %c0_20 = arith.constant 0 : index
      %c0_21 = arith.constant 0 : index
      %21 = vector.load %arg5[%c0_20, %c0_21] : memref<32x1xf32, #tpu.memory_space<vmem>>, vector<32x1xf32>
      tpu.vector_store %arg5[%c0_20, %c0_21], %20 {strides = array<i32>} : memref<32x1xf32, #tpu.memory_space<vmem>>, vector<32x1xf32>,
    } else {
    }
    %c0_6 = arith.constant 0 : index
    %c0_7 = arith.constant 0 : index
    %7 = vector.load %arg4[%c0_6, %c0_7] : memref<32x1xf32, #tpu.memory_space<vmem>>, vector<32x1xf32>
    %cst_8 = arith.constant dense<0.000000e+00> : vector<32xf32>
    %8 = vector.multi_reduction <add>, %2, %cst_8 [1] : vector<32x128xf32> to vector<32xf32>
    %9 = vector.shape_cast %8 : vector<32xf32> to vector<32x1xf32>
    %10 = arith.addf %7, %9 : vector<32x1xf32>
    %c0_9 = arith.constant 0 : index
    %c0_10 = arith.constant 0 : index
    %11 = vector.load %arg4[%c0_9, %c0_10] : memref<32x1xf32, #tpu.memory_space<vmem>>, vector<32x1xf32>
    tpu.vector_store %arg4[%c0_9, %c0_10], %10 {strides = array<i32>} : memref<32x1xf32, #tpu.memory_space<vmem>>, vector<32x1xf32>,
    %c0_11 = arith.constant 0 : index
    %c0_12 = arith.constant 0 : index
    %12 = vector.load %arg5[%c0_11, %c0_12] : memref<32x1xf32, #tpu.memory_space<vmem>>, vector<32x1xf32>
    %13 = arith.mulf %2, %2 : vector<32x128xf32>
    %cst_13 = arith.constant dense<0.000000e+00> : vector<32xf32>
    %14 = vector.multi_reduction <add>, %13, %cst_13 [1] : vector<32x128xf32> to vector<32xf32>
    %15 = vector.shape_cast %14 : vector<32xf32> to vector<32x1xf32>
    %16 = arith.addf %12, %15 : vector<32x1xf32>
    %c0_14 = arith.constant 0 : index
    %c0_15 = arith.constant 0 : index
    %17 = vector.load %arg5[%c0_14, %c0_15] : memref<32x1xf32, #tpu.memory_space<vmem>>, vector<32x1xf32>
    tpu.vector_store %arg5[%c0_14, %c0_15], %16 {strides = array<i32>} : memref<32x1xf32, #tpu.memory_space<vmem>>, vector<32x1xf32>,
    return
  }
  func.func @transform_0(%arg0: i32) -> (i32, i32) {
    %c0_i32 = arith.constant 0 : i32
    %c0_i32_0 = arith.constant 0 : i32
    %c0_i32_1 = arith.constant 0 : i32
    return %c0_i32, %c0_i32_0 : i32, i32
  }
  func.func @transform_1(%arg0: i32) -> (i32, i32) {
    %c0_i32 = arith.constant 0 : i32
    %c0_i32_0 = arith.constant 0 : i32
    return %c0_i32, %arg0 : i32, i32
  }
  func.func @transform_2(%arg0: i32) -> (i32, i32) {
    %c0_i32 = arith.constant 0 : i32
    %c0_i32_0 = arith.constant 0 : i32
    return %c0_i32, %arg0 : i32, i32
  }
  func.func @transform_3(%arg0: i32) -> (i32, i32) {
    %c0_i32 = arith.constant 0 : i32
    %c0_i32_0 = arith.constant 0 : i32
    %c0_i32_1 = arith.constant 0 : i32
    return %c0_i32, %c0_i32_0 : i32, i32
  }
  func.func @transform_4(%arg0: i32) -> (i32, i32) {
    %c0_i32 = arith.constant 0 : i32
    %c0_i32_0 = arith.constant 0 : i32
    %c0_i32_1 = arith.constant 0 : i32
    return %c0_i32, %c0_i32_0 : i32, i32
  }
}

module attributes {stable_mosaic.version = 11 : i64} {
  func.func @_bn_act_kernel(%arg0: i32, %arg1: memref<32x128xf32, #tpu.memory_space<vmem>>, %arg2: memref<32x1xf32, #tpu.memory_space<vmem>>, %arg3: memref<32x1xf32, #tpu.memory_space<vmem>>, %arg4: memref<32x128xf32, #tpu.memory_space<vmem>>) attributes {dimension_semantics = [#tpu.dimension_semantics<parallel>], iteration_bounds = array<i64: 1>, scalar_prefetch = 0 : i64, scratch_operands = 0 : i64, tpu.core_type = #tpu.core_type<tc>, window_params = [{transform_indices = @transform_0, window_bounds = array<i64: 32, 128>}, {pipeline_mode = #tpu.pipeline_mode<synchronous>, transform_indices = @transform_1, window_bounds = array<i64: 32, 1>}, {pipeline_mode = #tpu.pipeline_mode<synchronous>, transform_indices = @transform_2, window_bounds = array<i64: 32, 1>}, {transform_indices = @transform_3, window_bounds = array<i64: 32, 128>}]} {
    %c0 = arith.constant 0 : index
    %c0_0 = arith.constant 0 : index
    %0 = vector.load %arg1[%c0, %c0_0] : memref<32x128xf32, #tpu.memory_space<vmem>>, vector<32x128xf32>
    %c0_1 = arith.constant 0 : index
    %c0_2 = arith.constant 0 : index
    %1 = vector.load %arg2[%c0_1, %c0_2] : memref<32x1xf32, #tpu.memory_space<vmem>>, vector<32x1xf32>
    %2 = vector.broadcast %1 : vector<32x1xf32> to vector<32x128xf32>
    %3 = arith.mulf %0, %2 : vector<32x128xf32>
    %c0_3 = arith.constant 0 : index
    %c0_4 = arith.constant 0 : index
    %4 = vector.load %arg3[%c0_3, %c0_4] : memref<32x1xf32, #tpu.memory_space<vmem>>, vector<32x1xf32>
    %5 = vector.broadcast %4 : vector<32x1xf32> to vector<32x128xf32>
    %6 = arith.addf %3, %5 : vector<32x128xf32>
    %cst = arith.constant 0.000000e+00 : f32
    %7 = vector.broadcast %cst : f32 to vector<32x128xf32>
    %8 = arith.cmpf oge, %6, %7 : vector<32x128xf32>
    %cst_5 = arith.constant 2.000000e-01 : f32
    %9 = vector.broadcast %cst_5 : f32 to vector<32x128xf32>
    %10 = arith.mulf %9, %6 : vector<32x128xf32>
    %11 = arith.select %8, %6, %10 : vector<32x128xi1>, vector<32x128xf32>
    %c0_6 = arith.constant 0 : index
    %c0_7 = arith.constant 0 : index
    %12 = vector.load %arg4[%c0_6, %c0_7] : memref<32x128xf32, #tpu.memory_space<vmem>>, vector<32x128xf32>
    tpu.vector_store %arg4[%c0_6, %c0_7], %11 {strides = array<i32>} : memref<32x128xf32, #tpu.memory_space<vmem>>, vector<32x128xf32>,
    return
  }
  func.func @transform_0(%arg0: i32) -> (i32, i32) {
    %c0_i32 = arith.constant 0 : i32
    %c0_i32_0 = arith.constant 0 : i32
    return %c0_i32, %arg0 : i32, i32
  }
  func.func @transform_1(%arg0: i32) -> (i32, i32) {
    %c0_i32 = arith.constant 0 : i32
    %c0_i32_0 = arith.constant 0 : i32
    %c0_i32_1 = arith.constant 0 : i32
    return %c0_i32, %c0_i32_0 : i32, i32
  }
  func.func @transform_2(%arg0: i32) -> (i32, i32) {
    %c0_i32 = arith.constant 0 : i32
    %c0_i32_0 = arith.constant 0 : i32
    %c0_i32_1 = arith.constant 0 : i32
    return %c0_i32, %c0_i32_0 : i32, i32
  }
  func.func @transform_3(%arg0: i32) -> (i32, i32) {
    %c0_i32 = arith.constant 0 : i32
    %c0_i32_0 = arith.constant 0 : i32
    return %c0_i32, %arg0 : i32, i32
  }
}

module attributes {stable_mosaic.version = 11 : i64} {
  func.func @_conv_stats_kernel(%arg0: i32, %arg1: memref<64x512xbf16, #tpu.memory_space<vmem>>, %arg2: memref<512x98xbf16, #tpu.memory_space<vmem>>, %arg3: memref<64x98xf32, #tpu.memory_space<vmem>>, %arg4: memref<64x1xf32, #tpu.memory_space<vmem>>, %arg5: memref<64x1xf32, #tpu.memory_space<vmem>>) attributes {dimension_semantics = [#tpu.dimension_semantics<arbitrary>], iteration_bounds = array<i64: 1>, scalar_prefetch = 0 : i64, scratch_operands = 0 : i64, tpu.core_type = #tpu.core_type<tc>, window_params = [{pipeline_mode = #tpu.pipeline_mode<synchronous>, transform_indices = @transform_0, window_bounds = array<i64: 64, 512>}, {transform_indices = @transform_1, window_bounds = array<i64: 512, 98>}, {transform_indices = @transform_2, window_bounds = array<i64: 64, 98>}, {pipeline_mode = #tpu.pipeline_mode<synchronous>, transform_indices = @transform_3, window_bounds = array<i64: 64, 1>}, {pipeline_mode = #tpu.pipeline_mode<synchronous>, transform_indices = @transform_4, window_bounds = array<i64: 64, 1>}]} {
    %c0 = arith.constant 0 : index
    %c0_0 = arith.constant 0 : index
    %0 = vector.load %arg1[%c0, %c0_0] : memref<64x512xbf16, #tpu.memory_space<vmem>>, vector<64x512xbf16>
    %c0_1 = arith.constant 0 : index
    %c0_2 = arith.constant 0 : index
    %1 = vector.load %arg2[%c0_1, %c0_2] : memref<512x98xbf16, #tpu.memory_space<vmem>>, vector<512x98xbf16>
    %cst = arith.constant dense<0.000000e+00> : vector<64x98xf32>
    %2 = tpu.matmul %0, %1, %cst {dimension_numbers = #tpu.dot_dimension_numbers<[1], [0], [0], [1], [0, 0, 1, 1], [], []>} : vector<64x512xbf16>, vector<512x98xbf16>, vector<64x98xf32> -> vector<64x98xf32>
    %c0_3 = arith.constant 0 : index
    %c0_4 = arith.constant 0 : index
    %3 = vector.load %arg3[%c0_3, %c0_4] : memref<64x98xf32, #tpu.memory_space<vmem>>, vector<64x98xf32>
    tpu.vector_store %arg3[%c0_3, %c0_4], %2 {strides = array<i32>} : memref<64x98xf32, #tpu.memory_space<vmem>>, vector<64x98xf32>,
    %c0_i32 = arith.constant 0 : i32
    %4 = arith.cmpi eq, %arg0, %c0_i32 : i32
    %5 = arith.extui %4 : i1 to i32
    %c0_i32_5 = arith.constant 0 : i32
    %6 = arith.cmpi ne, %5, %c0_i32_5 : i32
    scf.if %6 {
      %cst_16 = arith.constant 0.000000e+00 : f32
      %18 = vector.broadcast %cst_16 : f32 to vector<64x1xf32>
      %c0_17 = arith.constant 0 : index
      %c0_18 = arith.constant 0 : index
      %19 = vector.load %arg4[%c0_17, %c0_18] : memref<64x1xf32, #tpu.memory_space<vmem>>, vector<64x1xf32>
      tpu.vector_store %arg4[%c0_17, %c0_18], %18 {strides = array<i32>} : memref<64x1xf32, #tpu.memory_space<vmem>>, vector<64x1xf32>,
      %cst_19 = arith.constant 0.000000e+00 : f32
      %20 = vector.broadcast %cst_19 : f32 to vector<64x1xf32>
      %c0_20 = arith.constant 0 : index
      %c0_21 = arith.constant 0 : index
      %21 = vector.load %arg5[%c0_20, %c0_21] : memref<64x1xf32, #tpu.memory_space<vmem>>, vector<64x1xf32>
      tpu.vector_store %arg5[%c0_20, %c0_21], %20 {strides = array<i32>} : memref<64x1xf32, #tpu.memory_space<vmem>>, vector<64x1xf32>,
    } else {
    }
    %c0_6 = arith.constant 0 : index
    %c0_7 = arith.constant 0 : index
    %7 = vector.load %arg4[%c0_6, %c0_7] : memref<64x1xf32, #tpu.memory_space<vmem>>, vector<64x1xf32>
    %cst_8 = arith.constant dense<0.000000e+00> : vector<64xf32>
    %8 = vector.multi_reduction <add>, %2, %cst_8 [1] : vector<64x98xf32> to vector<64xf32>
    %9 = vector.shape_cast %8 : vector<64xf32> to vector<64x1xf32>
    %10 = arith.addf %7, %9 : vector<64x1xf32>
    %c0_9 = arith.constant 0 : index
    %c0_10 = arith.constant 0 : index
    %11 = vector.load %arg4[%c0_9, %c0_10] : memref<64x1xf32, #tpu.memory_space<vmem>>, vector<64x1xf32>
    tpu.vector_store %arg4[%c0_9, %c0_10], %10 {strides = array<i32>} : memref<64x1xf32, #tpu.memory_space<vmem>>, vector<64x1xf32>,
    %c0_11 = arith.constant 0 : index
    %c0_12 = arith.constant 0 : index
    %12 = vector.load %arg5[%c0_11, %c0_12] : memref<64x1xf32, #tpu.memory_space<vmem>>, vector<64x1xf32>
    %13 = arith.mulf %2, %2 : vector<64x98xf32>
    %cst_13 = arith.constant dense<0.000000e+00> : vector<64xf32>
    %14 = vector.multi_reduction <add>, %13, %cst_13 [1] : vector<64x98xf32> to vector<64xf32>
    %15 = vector.shape_cast %14 : vector<64xf32> to vector<64x1xf32>
    %16 = arith.addf %12, %15 : vector<64x1xf32>
    %c0_14 = arith.constant 0 : index
    %c0_15 = arith.constant 0 : index
    %17 = vector.load %arg5[%c0_14, %c0_15] : memref<64x1xf32, #tpu.memory_space<vmem>>, vector<64x1xf32>
    tpu.vector_store %arg5[%c0_14, %c0_15], %16 {strides = array<i32>} : memref<64x1xf32, #tpu.memory_space<vmem>>, vector<64x1xf32>,
    return
  }
  func.func @transform_0(%arg0: i32) -> (i32, i32) {
    %c0_i32 = arith.constant 0 : i32
    %c0_i32_0 = arith.constant 0 : i32
    %c0_i32_1 = arith.constant 0 : i32
    return %c0_i32, %c0_i32_0 : i32, i32
  }
  func.func @transform_1(%arg0: i32) -> (i32, i32) {
    %c0_i32 = arith.constant 0 : i32
    %c0_i32_0 = arith.constant 0 : i32
    return %c0_i32, %arg0 : i32, i32
  }
  func.func @transform_2(%arg0: i32) -> (i32, i32) {
    %c0_i32 = arith.constant 0 : i32
    %c0_i32_0 = arith.constant 0 : i32
    return %c0_i32, %arg0 : i32, i32
  }
  func.func @transform_3(%arg0: i32) -> (i32, i32) {
    %c0_i32 = arith.constant 0 : i32
    %c0_i32_0 = arith.constant 0 : i32
    %c0_i32_1 = arith.constant 0 : i32
    return %c0_i32, %c0_i32_0 : i32, i32
  }
  func.func @transform_4(%arg0: i32) -> (i32, i32) {
    %c0_i32 = arith.constant 0 : i32
    %c0_i32_0 = arith.constant 0 : i32
    %c0_i32_1 = arith.constant 0 : i32
    return %c0_i32, %c0_i32_0 : i32, i32
  }
}

module attributes {stable_mosaic.version = 11 : i64} {
  func.func @_bn_act_kernel(%arg0: i32, %arg1: memref<64x98xf32, #tpu.memory_space<vmem>>, %arg2: memref<64x1xf32, #tpu.memory_space<vmem>>, %arg3: memref<64x1xf32, #tpu.memory_space<vmem>>, %arg4: memref<64x98xf32, #tpu.memory_space<vmem>>) attributes {dimension_semantics = [#tpu.dimension_semantics<parallel>], iteration_bounds = array<i64: 1>, scalar_prefetch = 0 : i64, scratch_operands = 0 : i64, tpu.core_type = #tpu.core_type<tc>, window_params = [{transform_indices = @transform_0, window_bounds = array<i64: 64, 98>}, {pipeline_mode = #tpu.pipeline_mode<synchronous>, transform_indices = @transform_1, window_bounds = array<i64: 64, 1>}, {pipeline_mode = #tpu.pipeline_mode<synchronous>, transform_indices = @transform_2, window_bounds = array<i64: 64, 1>}, {transform_indices = @transform_3, window_bounds = array<i64: 64, 98>}]} {
    %c0 = arith.constant 0 : index
    %c0_0 = arith.constant 0 : index
    %0 = vector.load %arg1[%c0, %c0_0] : memref<64x98xf32, #tpu.memory_space<vmem>>, vector<64x98xf32>
    %c0_1 = arith.constant 0 : index
    %c0_2 = arith.constant 0 : index
    %1 = vector.load %arg2[%c0_1, %c0_2] : memref<64x1xf32, #tpu.memory_space<vmem>>, vector<64x1xf32>
    %2 = vector.broadcast %1 : vector<64x1xf32> to vector<64x98xf32>
    %3 = arith.mulf %0, %2 : vector<64x98xf32>
    %c0_3 = arith.constant 0 : index
    %c0_4 = arith.constant 0 : index
    %4 = vector.load %arg3[%c0_3, %c0_4] : memref<64x1xf32, #tpu.memory_space<vmem>>, vector<64x1xf32>
    %5 = vector.broadcast %4 : vector<64x1xf32> to vector<64x98xf32>
    %6 = arith.addf %3, %5 : vector<64x98xf32>
    %cst = arith.constant 0.000000e+00 : f32
    %7 = vector.broadcast %cst : f32 to vector<64x98xf32>
    %8 = arith.cmpf oge, %6, %7 : vector<64x98xf32>
    %cst_5 = arith.constant 2.000000e-01 : f32
    %9 = vector.broadcast %cst_5 : f32 to vector<64x98xf32>
    %10 = arith.mulf %9, %6 : vector<64x98xf32>
    %11 = arith.select %8, %6, %10 : vector<64x98xi1>, vector<64x98xf32>
    %c0_6 = arith.constant 0 : index
    %c0_7 = arith.constant 0 : index
    %12 = vector.load %arg4[%c0_6, %c0_7] : memref<64x98xf32, #tpu.memory_space<vmem>>, vector<64x98xf32>
    tpu.vector_store %arg4[%c0_6, %c0_7], %11 {strides = array<i32>} : memref<64x98xf32, #tpu.memory_space<vmem>>, vector<64x98xf32>,
    return
  }
  func.func @transform_0(%arg0: i32) -> (i32, i32) {
    %c0_i32 = arith.constant 0 : i32
    %c0_i32_0 = arith.constant 0 : i32
    return %c0_i32, %arg0 : i32, i32
  }
  func.func @transform_1(%arg0: i32) -> (i32, i32) {
    %c0_i32 = arith.constant 0 : i32
    %c0_i32_0 = arith.constant 0 : i32
    %c0_i32_1 = arith.constant 0 : i32
    return %c0_i32, %c0_i32_0 : i32, i32
  }
  func.func @transform_2(%arg0: i32) -> (i32, i32) {
    %c0_i32 = arith.constant 0 : i32
    %c0_i32_0 = arith.constant 0 : i32
    %c0_i32_1 = arith.constant 0 : i32
    return %c0_i32, %c0_i32_0 : i32, i32
  }
  func.func @transform_3(%arg0: i32) -> (i32, i32) {
    %c0_i32 = arith.constant 0 : i32
    %c0_i32_0 = arith.constant 0 : i32
    return %c0_i32, %arg0 : i32, i32
  }
}

module attributes {stable_mosaic.version = 11 : i64} {
  func.func @_conv_bias_act_kernel(%arg0: i32, %arg1: memref<1x1024xbf16, #tpu.memory_space<vmem>>, %arg2: memref<1024x72xbf16, #tpu.memory_space<vmem>>, %arg3: memref<1x1xf32, #tpu.memory_space<vmem>>, %arg4: memref<1x72xf32, #tpu.memory_space<vmem>>) attributes {dimension_semantics = [#tpu.dimension_semantics<parallel>], iteration_bounds = array<i64: 1>, scalar_prefetch = 0 : i64, scratch_operands = 0 : i64, tpu.core_type = #tpu.core_type<tc>, window_params = [{pipeline_mode = #tpu.pipeline_mode<synchronous>, transform_indices = @transform_0, window_bounds = array<i64: 1, 1024>}, {transform_indices = @transform_1, window_bounds = array<i64: 1024, 72>}, {pipeline_mode = #tpu.pipeline_mode<synchronous>, transform_indices = @transform_2, window_bounds = array<i64: 1, 1>}, {transform_indices = @transform_3, window_bounds = array<i64: 1, 72>}]} {
    %c0 = arith.constant 0 : index
    %c0_0 = arith.constant 0 : index
    %0 = vector.load %arg1[%c0, %c0_0] : memref<1x1024xbf16, #tpu.memory_space<vmem>>, vector<1x1024xbf16>
    %c0_1 = arith.constant 0 : index
    %c0_2 = arith.constant 0 : index
    %1 = vector.load %arg2[%c0_1, %c0_2] : memref<1024x72xbf16, #tpu.memory_space<vmem>>, vector<1024x72xbf16>
    %cst = arith.constant dense<0.000000e+00> : vector<1x72xf32>
    %2 = tpu.matmul %0, %1, %cst {dimension_numbers = #tpu.dot_dimension_numbers<[1], [0], [0], [1], [0, 0, 1, 1], [], []>} : vector<1x1024xbf16>, vector<1024x72xbf16>, vector<1x72xf32> -> vector<1x72xf32>
    %c0_3 = arith.constant 0 : index
    %c0_4 = arith.constant 0 : index
    %3 = vector.load %arg3[%c0_3, %c0_4] : memref<1x1xf32, #tpu.memory_space<vmem>>, vector<1x1xf32>
    %4 = vector.broadcast %3 : vector<1x1xf32> to vector<1x72xf32>
    %5 = arith.addf %2, %4 : vector<1x72xf32>
    %c0_5 = arith.constant 0 : index
    %c0_6 = arith.constant 0 : index
    %6 = vector.load %arg4[%c0_5, %c0_6] : memref<1x72xf32, #tpu.memory_space<vmem>>, vector<1x72xf32>
    tpu.vector_store %arg4[%c0_5, %c0_6], %5 {strides = array<i32>} : memref<1x72xf32, #tpu.memory_space<vmem>>, vector<1x72xf32>,
    return
  }
  func.func @transform_0(%arg0: i32) -> (i32, i32) {
    %c0_i32 = arith.constant 0 : i32
    %c0_i32_0 = arith.constant 0 : i32
    %c0_i32_1 = arith.constant 0 : i32
    return %c0_i32, %c0_i32_0 : i32, i32
  }
  func.func @transform_1(%arg0: i32) -> (i32, i32) {
    %c0_i32 = arith.constant 0 : i32
    %c0_i32_0 = arith.constant 0 : i32
    return %c0_i32, %arg0 : i32, i32
  }
  func.func @transform_2(%arg0: i32) -> (i32, i32) {
    %c0_i32 = arith.constant 0 : i32
    %c0_i32_0 = arith.constant 0 : i32
    %c0_i32_1 = arith.constant 0 : i32
    return %c0_i32, %c0_i32_0 : i32, i32
  }
  func.func @transform_3(%arg0: i32) -> (i32, i32) {
    %c0_i32 = arith.constant 0 : i32
    %c0_i32_0 = arith.constant 0 : i32
    return %c0_i32, %arg0 : i32, i32
  }
}

</mosaic_0001>

<llo_original>
// kernel: _lambda_.8
$region0: #{_lambda_.8}
  #allocation0 [shape = 'u32[]', space=smem, size = 0x4, offset = 0x4, fixed_abs, tag = 'smem constant byte address 0x4 - core index']
  #allocation1 [shape = 'u32[144,128]{1,0:T(1,128)}', space=vmem, size = 0x12000, scoped, tag = 'internal scratch']
  %s0 = inlined_call_operand.vmem [shape: bf16[8,48], index: 0, kind: input, shape index: {}]
  %s1 = inlined_call_operand.vmem [shape: bf16[48,2048], index: 1, kind: input, shape index: {}]
  %s2 = inlined_call_operand.vmem [shape: f32[8,1], index: 2, kind: input, shape index: {}]
  %s3 = inlined_call_operand.vmem [shape: f32[8,2048], index: 3, kind: output, shape index: {}]
  %s4 = sld [smem:[#allocation0]]
  $region68: #{_lambda_.8} parent=0
    _
  %s6 = ssub.s32 1, %s4
  %s7 = scalar_select 0, %s6, %s4
  $region1: #{_lambda_.8} parent=0
    #allocation2 [shape = 'u8[196608]{0}', space=vmem, size = 0x30000, scoped, tag = 'input window, operand 1']
    loop: start=0, step=1, limit=4
    $region2: #{_lambda_.8} parent=1 // loop_pre_header
      _
    $region3: #{_lambda_.8} parent=1 // loop_header
      %s9 = sphi 0, %s13
      %p10 = scmp.ge.s32.totalorder %s9, 4
      %s17 = sphi 0, %s17
      %s19 = sphi 0, %s17
      %s20 = sphi 0, %s19
      %s34 = sphi 0, %s20
      %s40 = sphi 0, %s42
      %s43 = sphi 0, %s40
      %s44 = sphi 0, %s43
      %s60 = sphi 0, %s44
      %s64 = sphi 0, %s64
      %s66 = sphi 0, %s64
      %s67 = sphi 0, %s66
      %s81 = sphi 0, %s67
      %s87 = sphi 0, %s89
      %s90 = sphi 0, %s87
      %s91 = sphi 0, %s90
      %s107 = sphi 0, %s91
    $region4: #{_lambda_.8} parent=1 // loop_header_branch
      %12 = sbr.rel (%p10) target = $region8
    $region5: #{_lambda_.8} parent=1 // loop_body
      %s14 = ssub.s32 %s9, 1
      %s15 = ssub.s32 %s9, 2
      %s16 = sadd.s32 %s9, 1
      %s18 = sadd.s32 %s17, 1
      %p21 = scmp.eq.s32.totalorder %s9, 1
      %p22 = scmp.ne.s32.totalorder %s17, %s19
      %p23 = scmp.eq.s32.totalorder %s9, 0
      %p24 = por %p22, %p23
      %p25 = scmp.ne.s32.totalorder %s17, %s19
      %p26 = scmp.eq.s32.totalorder %s14, 1
      %p27 = por %p25, %p26
      %p28 = scmp.ne.s32.totalorder %s19, %s20
      %p29 = scmp.eq.s32.totalorder %s14, 0
      %p30 = por %p28, %p29
      %p31 = scmp.ne.s32.totalorder %s19, %s20
      %p32 = scmp.eq.s32.totalorder %s15, 1
      %p33 = por %p31, %p32
      %p35 = scmp.ne.s32.totalorder %s20, %s34
      %p36 = scmp.eq.s32.totalorder %s15, 0
      %p37 = por %p35, %p36
      %s38 = ssub.s32 %s9, %s16
      %p39 = scmp.eq.s32.totalorder %s38, 0
      %s41 = sadd.s32 %s40, 1
      %s42 = scalar_select %p39, %s40, %s41
      %p45 = pneg %p39
      %p46 = scmp.eq.s32.totalorder %s9, 1
      %p47 = por %p45, %p46
      %p48 = scmp.ne.s32.totalorder %s40, %s43
      %p49 = scmp.eq.s32.totalorder %s9, 0
      %p50 = por %p48, %p49
      %p51 = scmp.ne.s32.totalorder %s40, %s43
      %p52 = scmp.eq.s32.totalorder %s14, 1
      %p53 = por %p51, %p52
      %p54 = scmp.ne.s32.totalorder %s43, %s44
      %p55 = scmp.eq.s32.totalorder %s14, 0
      %p56 = por %p54, %p55
      %p57 = scmp.ne.s32.totalorder %s43, %s44
      %p58 = scmp.eq.s32.totalorder %s15, 1
      %p59 = por %p57, %p58
      %p61 = scmp.ne.s32.totalorder %s44, %s60
      %p62 = scmp.eq.s32.totalorder %s15, 0
      %p63 = por %p61, %p62
      %s65 = sadd.s32 %s64, 1
      %p68 = scmp.eq.s32.totalorder %s9, 1
      %p69 = scmp.ne.s32.totalorder %s64, %s66
      %p70 = scmp.eq.s32.totalorder %s9, 0
      %p71 = por %p69, %p70
      %p72 = scmp.ne.s32.totalorder %s64, %s66
      %p73 = scmp.eq.s32.totalorder %s14, 1
      %p74 = por %p72, %p73
      %p75 = scmp.ne.s32.totalorder %s66, %s67
      %p76 = scmp.eq.s32.totalorder %s14, 0
      %p77 = por %p75, %p76
      %p78 = scmp.ne.s32.totalorder %s66, %s67
      %p79 = scmp.eq.s32.totalorder %s15, 1
      %p80 = por %p78, %p79
      %p82 = scmp.ne.s32.totalorder %s67, %s81
      %p83 = scmp.eq.s32.totalorder %s15, 0
      %p84 = por %p82, %p83
      %s85 = ssub.s32 %s9, %s16
      %p86 = scmp.eq.s32.totalorder %s85, 0
      %s88 = sadd.s32 %s87, 1
      %s89 = scalar_select %p86, %s87, %s88
      %p92 = pneg %p86
      %p93 = scmp.eq.s32.totalorder %s9, 1
      %p94 = por %p92, %p93
      %p95 = scmp.ne.s32.totalorder %s87, %s90
      %p96 = scmp.eq.s32.totalorder %s9, 0
      %p97 = por %p95, %p96
      %p98 = scmp.ne.s32.totalorder %s87, %s90
      %p99 = scmp.eq.s32.totalorder %s14, 1
      %p100 = por %p98, %p99
      %p101 = scmp.ne.s32.totalorder %s90, %s91
      %p102 = scmp.eq.s32.totalorder %s14, 0
      %p103 = por %p101, %p102
      %p104 = scmp.ne.s32.totalorder %s90, %s91
      %p105 = scmp.eq.s32.totalorder %s15, 1
      %p106 = por %p104, %p105
      %p108 = scmp.ne.s32.totalorder %s91, %s107
      %p109 = scmp.eq.s32.totalorder %s15, 0
      %p110 = por %p108, %p109
      %p111 = scmp.le.s32.totalorder 1, %s9
      %p112 = scmp.lt.s32.totalorder %s9, 3
      %p113 = pnand %p111, %p112
      %p114 = pneg %p113
      // Predicated region
      $region9: #{_lambda_.8} parent=5 // pred_check
        _
      $region10: #{_lambda_.8} parent=5 // pred_check_branch
        %116 = sbr.rel (%p113) target = $region12
      $region11: #{_lambda_.8} parent=5 // pred_region
        %s117 = ssub.s32 %s9, 1
        // Predicated region
        $region13: #{_lambda_.8} parent=11 // pred_check
          %p118 = pneg %p30
        $region14: #{_lambda_.8} parent=11 // pred_check_branch
          %120 = sbr.rel (%p118) target = $region16
        $region15: #{_lambda_.8} parent=11 // pred_region
          _
        $region16: #{_lambda_.8} parent=11 // pred_fallthru
          _
        // Predicated region
        $region17: #{_lambda_.8} parent=11 // pred_check
          %p121 = pneg %p77
        $region18: #{_lambda_.8} parent=11 // pred_check_branch
          %123 = sbr.rel (%p121) target = $region20
        $region19: #{_lambda_.8} parent=11 // pred_region
          _
        $region20: #{_lambda_.8} parent=11 // pred_fallthru
          _
      $region12: #{_lambda_.8} parent=5 // pred_fallthru
        _
      %p124 = scmp.lt.s32.totalorder %s9, 2
      // Predicated region
      $region21: #{_lambda_.8} parent=5 // pred_check
        %p125 = pneg %p124
      $region22: #{_lambda_.8} parent=5 // pred_check_branch
        %127 = sbr.rel (%p125) target = $region24
      $region23: #{_lambda_.8} parent=5 // pred_region
        // Predicated region
        $region25: #{_lambda_.8} parent=23 // pred_check
          %p128 = pneg %p50
        $region26: #{_lambda_.8} parent=23 // pred_check_branch
          %130 = sbr.rel (%p128) target = $region28
        $region27: #{_lambda_.8} parent=23 // pred_region
          %s131 = sand.u32 %s40, 1
          %s132 = sand.u32 %s40, 1
          %s133 = smul.addr %s132, 192
          %s134 = scalar_lea.vmem [#allocation2], %s133
          %s135 = smul.u32 8, %s9
          %s136 = smul.addr %s135, 4
          %s137 = scalar_lea.vmem %s1, %s136
          // Predicated region
          $region29: #{_lambda_.8} parent=27 // pred_check
            _
          $region30: #{_lambda_.8} parent=27 // pred_check_branch
            %139 = sbr.rel (0) target = $region32
          $region31: #{_lambda_.8} parent=27 // pred_region
            // Predicated region
            $region33: #{_lambda_.8} parent=31 // pred_check
              _
            $region34: #{_lambda_.8} parent=31 // pred_check_branch
              %141 = sbr.rel (0) target = $region36
            $region35: #{_lambda_.8} parent=31 // pred_region
              loop: start=0, step=1, limit=1
              $region37: #{_lambda_.8} parent=35 // loop_pre_header
                _
              $region38: #{_lambda_.8} parent=35 // loop_header
                %s143 = sphi 0, %s147
                %p144 = scmp.ge.s32.totalorder %s143, 1
                %s148 = sphi %s137, %s137
                %s149 = sphi %s134, %s134
              $region39: #{_lambda_.8} parent=35 // loop_header_branch
                %146 = sbr.rel (%p144) target = $region43
              $region40: #{_lambda_.8} parent=35 // loop_body
                %v150 = vld [vmem:[%s148] sm:$0xff]
                %151 = vst [vmem:[%s149] sm:$0xff] %v150
                %v152 = vld [vmem:[%s148 + $0x8] sm:$0xff]
                %153 = vst [vmem:[%s149 + $0x8] sm:$0xff] %v152
                %v154 = vld [vmem:[%s148 + $0x10] sm:$0xff]
                %155 = vst [vmem:[%s149 + $0x10] sm:$0xff] %v154
                %v156 = vld [vmem:[%s148 + $0x18] sm:$0xff]
                %157 = vst [vmem:[%s149 + $0x18] sm:$0xff] %v156
                %v158 = vld [vmem:[%s148 + $0x40] sm:$0xff]
                %159 = vst [vmem:[%s149 + $0x20] sm:$0xff] %v158
                %v160 = vld [vmem:[%s148 + $0x48] sm:$0xff]
                %161 = vst [vmem:[%s149 + $0x28] sm:$0xff] %v160
                %v162 = vld [vmem:[%s148 + $0x50] sm:$0xff]
                %163 = vst [vmem:[%s149 + $0x30] sm:$0xff] %v162
                %v164 = vld [vmem:[%s148 + $0x58] sm:$0xff]
                %165 = vst [vmem:[%s149 + $0x38] sm:$0xff] %v164
                %v166 = vld [vmem:[%s148 + $0x80] sm:$0xff]
                %167 = vst [vmem:[%s149 + $0x40] sm:$0xff] %v166
                %v168 = vld [vmem:[%s148 + $0x88] sm:$0xff]
                %169 = vst [vmem:[%s149 + $0x48] sm:$0xff] %v168
                %v170 = vld [vmem:[%s148 + $0x90] sm:$0xff]
                %171 = vst [vmem:[%s149 + $0x50] sm:$0xff] %v170
                %v172 = vld [vmem:[%s148 + $0x98] sm:$0xff]
                %173 = vst [vmem:[%s149 + $0x58] sm:$0xff] %v172
                %v174 = vld [vmem:[%s148 + $0xc0] sm:$0xff]
                %175 = vst [vmem:[%s149 + $0x60] sm:$0xff] %v174
                %v176 = vld [vmem:[%s148 + $0xc8] sm:$0xff]
                %177 = vst [vmem:[%s149 + $0x68] sm:$0xff] %v176
                %v178 = vld [vmem:[%s148 + $0xd0] sm:$0xff]
                %179 = vst [vmem:[%s149 + $0x70] sm:$0xff] %v178
                %v180 = vld [vmem:[%s148 + $0xd8] sm:$0xff]
                %181 = vst [vmem:[%s149 + $0x78] sm:$0xff] %v180
                %v182 = vld [vmem:[%s148 + $0x100] sm:$0xff]
                %183 = vst [vmem:[%s149 + $0x80] sm:$0xff] %v182
                %v184 = vld [vmem:[%s148 + $0x108] sm:$0xff]
                %185 = vst [vmem:[%s149 + $0x88] sm:$0xff] %v184
                %v186 = vld [vmem:[%s148 + $0x110] sm:$0xff]
                %187 = vst [vmem:[%s149 + $0x90] sm:$0xff] %v186
                %v188 = vld [vmem:[%s148 + $0x118] sm:$0xff]
                %189 = vst [vmem:[%s149 + $0x98] sm:$0xff] %v188
                %v190 = vld [vmem:[%s148 + $0x140] sm:$0xff]
                %191 = vst [vmem:[%s149 + $0xa0] sm:$0xff] %v190
                %v192 = vld [vmem:[%s148 + $0x148] sm:$0xff]
                %193 = vst [vmem:[%s149 + $0xa8] sm:$0xff] %v192
                %v194 = vld [vmem:[%s148 + $0x150] sm:$0xff]
                %195 = vst [vmem:[%s149 + $0xb0] sm:$0xff] %v194
                %v196 = vld [vmem:[%s148 + $0x158] sm:$0xff]
                %197 = vst [vmem:[%s149 + $0xb8] sm:$0xff] %v196
              $region41: #{_lambda_.8} parent=35 // loop_footer
                %s147 = sadd.s32 1, %s143
              $region42: #{_lambda_.8} parent=35 // loop_footer_branch
                %142 = sbr.rel target = $region38
              $region43: #{_lambda_.8} parent=35 // loop_exit
                _
            $region36: #{_lambda_.8} parent=31 // pred_fallthru
              _
            // Predicated region
            $region44: #{_lambda_.8} parent=31 // pred_check
              _
            $region45: #{_lambda_.8} parent=31 // pred_check_branch
              %199 = sbr.rel target = $region47
            $region46: #{_lambda_.8} parent=31 // pred_region
              _
            $region47: #{_lambda_.8} parent=31 // pred_fallthru
              _
          $region32: #{_lambda_.8} parent=27 // pred_fallthru
            _
          %200 = vnop
        $region28: #{_lambda_.8} parent=23 // pred_fallthru
          _
      $region24: #{_lambda_.8} parent=5 // pred_fallthru
        _
      %p201 = scmp.le.s32.totalorder 1, %s9
      %p202 = scmp.lt.s32.totalorder %s9, 3
      %p203 = pnand %p201, %p202
      %p204 = pneg %p203
      // Predicated region
      $region48: #{_lambda_.8} parent=5 // pred_check
        _
      $region49: #{_lambda_.8} parent=5 // pred_check_branch
        %206 = sbr.rel (%p203) target = $region51
      $region50: #{_lambda_.8} parent=5 // pred_region
        %s207 = ssub.s32 %s9, 1
        %s208 = sand.u32 %s43, 1
        %s209 = sand.u32 %s43, 1
        %s210 = smul.addr %s209, 192
        %s211 = scalar_lea.vmem [#allocation2], %s210
        // Predicated region
        $region52: #{_lambda_.8} parent=50 // pred_check
          %p212 = pneg %p56
        $region53: #{_lambda_.8} parent=50 // pred_check_branch
          %214 = sbr.rel (%p212) target = $region55
        $region54: #{_lambda_.8} parent=50 // pred_region
          _
        $region55: #{_lambda_.8} parent=50 // pred_fallthru
          _
        %p215 = pneg %p30
        %p216 = pneg %p27
        %s217 = sand.u32 %s43, 1
        %s218 = sand.u32 %s43, 1
        %s219 = smul.addr %s218, 192
        %s220 = scalar_lea.vmem [#allocation2], %s219
        %p221 = pneg %p56
        %p222 = pneg %p53
        %p223 = pneg %p77
        %p224 = pneg %p74
        %p225 = pneg %p103
        %p226 = pneg %p100
        %s227 = smul.u32 8, %s14
        %p228 = scmp.lt.s32.totalorder %s227, 15
        %s229 = scalar_select %p228, %s227, 15
        %s230 = smul.addr %s229, 8
        %s231 = scalar_lea.vmem %s3, %s230
        %s232 = smul.u32 8, %s14
        %s233 = smul.u32 8, %s14
        %p234 = scmp.lt.s32.totalorder %s233, 15
        %s235 = scalar_select %p234, %s233, 15
        %s236 = smul.addr %s235, 8
        %s237 = scalar_lea.vmem %s3, %s236
        %s238 = smul.u32 8, %s14
        %v240 = vld [vmem:[%s0] sm:$0xf]
        %v241 = vld [vmem:[%s211] sm:$0xff]
        %v242 = vld [vmem:[%s211 + $0x8] sm:$0xff]
        %v243 = vld [vmem:[%s211 + $0x10] sm:$0xff]
        %v244 = vld [vmem:[%s211 + $0x18] sm:$0xff]
        %v245 = vld [vmem:[%s211 + $0x20] sm:$0xff]
        %v246 = vld [vmem:[%s211 + $0x28] sm:$0xff]
        %v247 = vld [vmem:[%s211 + $0x30] sm:$0xff]
        %v248 = vld [vmem:[%s211 + $0x38] sm:$0xff]
        %v249 = vld [vmem:[%s211 + $0x40] sm:$0xff]
        %v250 = vld [vmem:[%s211 + $0x48] sm:$0xff]
        %v251 = vld [vmem:[%s211 + $0x50] sm:$0xff]
        %v252 = vld [vmem:[%s211 + $0x58] sm:$0xff]
        %v253 = vld [vmem:[%s211 + $0x60] sm:$0xff]
        %v254 = vld [vmem:[%s211 + $0x68] sm:$0xff]
        %v255 = vld [vmem:[%s211 + $0x70] sm:$0xff]
        %v256 = vld [vmem:[%s211 + $0x78] sm:$0xff]
        %v257 = vld [vmem:[%s211 + $0x80] sm:$0xff]
        %v258 = vld [vmem:[%s211 + $0x88] sm:$0xff]
        %v259 = vld [vmem:[%s211 + $0x90] sm:$0xff]
        %v260 = vld [vmem:[%s211 + $0x98] sm:$0xff]
        %v261 = vld [vmem:[%s211 + $0xa0] sm:$0xff]
        %v262 = vld [vmem:[%s211 + $0xa8] sm:$0xff]
        %v263 = vld [vmem:[%s211 + $0xb0] sm:$0xff]
        %v264 = vld [vmem:[%s211 + $0xb8] sm:$0xff]
        %v265 = vld [vmem:[%s2] sm:$0xff]
        %267 = vset.pattern.permute.xlu0 0
        %268 = vperm.xlu0 %267, %v265
        %v269 = vpop.permute.xlu0 %268
        %v295 = vunpack.c.l.b16 %v241
        %v296 = vunpack.c.h.b16 %v241
        %v297 = vunpack.c.l.b16 %v242
        %v298 = vunpack.c.h.b16 %v242
        %v299 = vunpack.c.l.b16 %v243
        %v300 = vunpack.c.h.b16 %v243
        %v301 = vunpack.c.l.b16 %v244
        %v302 = vunpack.c.h.b16 %v244
        %v303 = vunpack.c.l.b16 %v245
        %v304 = vunpack.c.h.b16 %v245
        %v305 = vunpack.c.l.b16 %v246
        %v306 = vunpack.c.h.b16 %v246
        %v307 = vunpack.c.l.b16 %v247
        %v308 = vunpack.c.h.b16 %v247
        %v309 = vunpack.c.l.b16 %v248
        %v310 = vunpack.c.h.b16 %v248
        %v311 = vunpack.c.l.b16 %v249
        %v312 = vunpack.c.h.b16 %v249
        %v313 = vunpack.c.l.b16 %v250
        %v314 = vunpack.c.h.b16 %v250
        %v315 = vunpack.c.l.b16 %v251
        %v316 = vunpack.c.h.b16 %v251
        %v317 = vunpack.c.l.b16 %v252
        %v318 = vunpack.c.h.b16 %v252
        %v319 = vunpack.c.l.b16 %v253
        %v320 = vunpack.c.h.b16 %v253
        %v321 = vunpack.c.l.b16 %v254
        %v322 = vunpack.c.h.b16 %v254
        %v323 = vunpack.c.l.b16 %v255
        %v324 = vunpack.c.h.b16 %v255
        %v325 = vunpack.c.l.b16 %v256
        %v326 = vunpack.c.h.b16 %v256
        %v327 = vunpack.c.l.b16 %v257
        %v328 = vunpack.c.h.b16 %v257
        %v329 = vunpack.c.l.b16 %v258
        %v330 = vunpack.c.h.b16 %v258
        %v331 = vunpack.c.l.b16 %v259
        %v332 = vunpack.c.h.b16 %v259
        %v333 = vunpack.c.l.b16 %v260
        %v334 = vunpack.c.h.b16 %v260
        %v335 = vunpack.c.l.b16 %v261
        %v336 = vunpack.c.h.b16 %v261
        %v337 = vunpack.c.l.b16 %v262
        %v338 = vunpack.c.h.b16 %v262
        %v339 = vunpack.c.l.b16 %v263
        %v340 = vunpack.c.h.b16 %v263
        %v341 = vunpack.c.l.b16 %v264
        %v342 = vunpack.c.h.b16 %v264
        %v343 = vpack.c.b16 %v303, %v295
        %v344 = vpack.c.b16 %v304, %v296
        %v345 = vpack.c.b16 %v305, %v297
        %v346 = vpack.c.b16 %v306, %v298
        %v347 = vpack.c.b16 %v307, %v299
        %v348 = vpack.c.b16 %v308, %v300
        %v349 = vpack.c.b16 %v309, %v301
        %v350 = vpack.c.b16 %v310, %v302
        %v351 = vpack.c.b16 %v319, %v311
        %v352 = vpack.c.b16 %v320, %v312
        %v353 = vpack.c.b16 %v321, %v313
        %v354 = vpack.c.b16 %v322, %v314
        %v355 = vpack.c.b16 %v323, %v315
        %v356 = vpack.c.b16 %v324, %v316
        %v357 = vpack.c.b16 %v325, %v317
        %v358 = vpack.c.b16 %v326, %v318
        %v359 = vpack.c.b16 %v335, %v327
        %v360 = vpack.c.b16 %v336, %v328
        %v361 = vpack.c.b16 %v337, %v329
        %v362 = vpack.c.b16 %v338, %v330
        %v363 = vpack.c.b16 %v339, %v331
        %v364 = vpack.c.b16 %v340, %v332
        %v365 = vpack.c.b16 %v341, %v333
        %v366 = vpack.c.b16 %v342, %v334
        %vm391 = vcmask 392192
        %v393 = vsel %vm391, %v240, 0
        %395 = vmatprep.subr.bf16.mxu0 %v344
        %396 = vmatpush1.bf16.msra.mxu0 %v343
        %397 = vmatprep.subr.bf16.mxu0 %v352
        %398 = vmatpush1.bf16.msra.mxu0 %v351
        %399 = vmatprep.subr.bf16.mxu0 %v360
        %400 = vmatpush1.bf16.msra.mxu0 %v359
        %401 = vmatprep.subr.bf16.mxu0 0
        %402 = vmatpush1.bf16.msra.mxu0 0
        %403 = vmatprep.subr.bf16.mxu0 0
        %404 = vmatpush1.bf16.msra.mxu0 0
        %405 = vmatprep.subr.bf16.mxu0 0
        %406 = vmatpush1.bf16.msra.mxu0 0
        %407 = vmatprep.subr.bf16.mxu0 0
        %408 = vmatpush1.bf16.msra.mxu0 0
        %409 = vmatprep.subr.bf16.mxu0 0
        %410 = vmatpush1.bf16.msra.mxu0 0
        %411 = vmatprep.subr.bf16.mxu0 0
        %412 = vmatpush1.bf16.msra.mxu0 0
        %413 = vmatprep.subr.bf16.mxu0 0
        %414 = vmatpush1.bf16.msra.mxu0 0
        %415 = vmatprep.subr.bf16.mxu0 0
        %416 = vmatpush1.bf16.msra.mxu0 0
        %417 = vmatprep.subr.bf16.mxu0 0
        %418 = vmatpush1.bf16.msra.mxu0 0
        %419 = vmatprep.subr.bf16.mxu0 0
        %420 = vmatpush1.bf16.msra.mxu0 0
        %421 = vmatprep.subr.bf16.mxu0 0
        %422 = vmatpush1.bf16.msra.mxu0 0
        %423 = vmatprep.subr.bf16.mxu0 0
        %424 = vmatpush1.bf16.msra.mxu0 0
        %425 = vmatprep.subr.bf16.mxu0 0
        %426 = vmatpush1.bf16.msra.mxu0 0
        %427 = vmatprep.mubr.bf16.mxu0 0
        %428 = vmatmul.mubr.bf16.gmra.mrb[0].mxu0 %v393
        %v429 = vpop.f32.mrb[0].mxu0
        %v430 = vadd.f32 %v269, %v429
        %v431 = vpop.f32.mrb[0].mxu0
        %v432 = vadd.f32 %v269, %v431
        %v433 = vpop.f32.mrb[0].mxu0
        %v434 = vpop.f32.mrb[0].mxu0
        %435 = vdwg.mxu0
        %436 = vmatprep.subr.bf16.mxu0 %v346
        %437 = vmatpush1.bf16.msra.mxu0 %v345
        %438 = vmatprep.subr.bf16.mxu0 %v354
        %439 = vmatpush1.bf16.msra.mxu0 %v353
        %440 = vmatprep.subr.bf16.mxu0 %v362
        %441 = vmatpush1.bf16.msra.mxu0 %v361
        %442 = vmatprep.subr.bf16.mxu0 0
        %443 = vmatpush1.bf16.msra.mxu0 0
        %444 = vmatprep.subr.bf16.mxu0 0
        %445 = vmatpush1.bf16.msra.mxu0 0
        %446 = vmatprep.subr.bf16.mxu0 0
        %447 = vmatpush1.bf16.msra.mxu0 0
        %448 = vmatprep.subr.bf16.mxu0 0
        %449 = vmatpush1.bf16.msra.mxu0 0
        %450 = vmatprep.subr.bf16.mxu0 0
        %451 = vmatpush1.bf16.msra.mxu0 0
        %452 = vmatprep.subr.bf16.mxu0 0
        %453 = vmatpush1.bf16.msra.mxu0 0
        %454 = vmatprep.subr.bf16.mxu0 0
        %455 = vmatpush1.bf16.msra.mxu0 0
        %456 = vmatprep.subr.bf16.mxu0 0
        %457 = vmatpush1.bf16.msra.mxu0 0
        %458 = vmatprep.subr.bf16.mxu0 0
        %459 = vmatpush1.bf16.msra.mxu0 0
        %460 = vmatprep.subr.bf16.mxu0 0
        %461 = vmatpush1.bf16.msra.mxu0 0
        %462 = vmatprep.subr.bf16.mxu0 0
        %463 = vmatpush1.bf16.msra.mxu0 0
        %464 = vmatprep.subr.bf16.mxu0 0
        %465 = vmatpush1.bf16.msra.mxu0 0
        %466 = vmatprep.subr.bf16.mxu0 0
        %467 = vmatpush1.bf16.msra.mxu0 0
        %468 = vmatprep.mubr.bf16.mxu0 0
        %469 = vmatmul.mubr.bf16.gmra.mrb[0].mxu0 %v393
        %v470 = vpop.f32.mrb[0].mxu0
        %v471 = vadd.f32 %v269, %v470
        %v472 = vpop.f32.mrb[0].mxu0
        %v473 = vadd.f32 %v269, %v472
        %v474 = vpop.f32.mrb[0].mxu0
        %v475 = vpop.f32.mrb[0].mxu0
        %476 = vdwg.mxu0
        %477 = vmatprep.subr.bf16.mxu0 %v348
        %478 = vmatpush1.bf16.msra.mxu0 %v347
        %479 = vmatprep.subr.bf16.mxu0 %v356
        %480 = vmatpush1.bf16.msra.mxu0 %v355
        %481 = vmatprep.subr.bf16.mxu0 %v364
        %482 = vmatpush1.bf16.msra.mxu0 %v363
        %483 = vmatprep.subr.bf16.mxu0 0
        %484 = vmatpush1.bf16.msra.mxu0 0
        %485 = vmatprep.subr.bf16.mxu0 0
        %486 = vmatpush1.bf16.msra.mxu0 0
        %487 = vmatprep.subr.bf16.mxu0 0
        %488 = vmatpush1.bf16.msra.mxu0 0
        %489 = vmatprep.subr.bf16.mxu0 0
        %490 = vmatpush1.bf16.msra.mxu0 0
        %491 = vmatprep.subr.bf16.mxu0 0
        %492 = vmatpush1.bf16.msra.mxu0 0
        %493 = vmatprep.subr.bf16.mxu0 0
        %494 = vmatpush1.bf16.msra.mxu0 0
        %495 = vmatprep.subr.bf16.mxu0 0
        %496 = vmatpush1.bf16.msra.mxu0 0
        %497 = vmatprep.subr.bf16.mxu0 0
        %498 = vmatpush1.bf16.msra.mxu0 0
        %499 = vmatprep.subr.bf16.mxu0 0
        %500 = vmatpush1.bf16.msra.mxu0 0
        %501 = vmatprep.subr.bf16.mxu0 0
        %502 = vmatpush1.bf16.msra.mxu0 0
        %503 = vmatprep.subr.bf16.mxu0 0
        %504 = vmatpush1.bf16.msra.mxu0 0
        %505 = vmatprep.subr.bf16.mxu0 0
        %506 = vmatpush1.bf16.msra.mxu0 0
        %507 = vmatprep.subr.bf16.mxu0 0
        %508 = vmatpush1.bf16.msra.mxu0 0
        %509 = vmatprep.mubr.bf16.mxu0 0
        %510 = vmatmul.mubr.bf16.gmra.mrb[0].mxu0 %v393
        %v511 = vpop.f32.mrb[0].mxu0
        %v512 = vadd.f32 %v269, %v511
        %v513 = vpop.f32.mrb[0].mxu0
        %v514 = vadd.f32 %v269, %v513
        %v515 = vpop.f32.mrb[0].mxu0
        %v516 = vpop.f32.mrb[0].mxu0
        %517 = vdwg.mxu0
        %518 = vmatprep.subr.bf16.mxu0 %v350
        %519 = vmatpush1.bf16.msra.mxu0 %v349
        %520 = vmatprep.subr.bf16.mxu0 %v358
        %521 = vmatpush1.bf16.msra.mxu0 %v357
        %522 = vmatprep.subr.bf16.mxu0 %v366
        %523 = vmatpush1.bf16.msra.mxu0 %v365
        %524 = vmatprep.subr.bf16.mxu0 0
        %525 = vmatpush1.bf16.msra.mxu0 0
        %526 = vmatprep.subr.bf16.mxu0 0
        %527 = vmatpush1.bf16.msra.mxu0 0
        %528 = vmatprep.subr.bf16.mxu0 0
        %529 = vmatpush1.bf16.msra.mxu0 0
        %530 = vmatprep.subr.bf16.mxu0 0
        %531 = vmatpush1.bf16.msra.mxu0 0
        %532 = vmatprep.subr.bf16.mxu0 0
        %533 = vmatpush1.bf16.msra.mxu0 0
        %534 = vmatprep.subr.bf16.mxu0 0
        %535 = vmatpush1.bf16.msra.mxu0 0
        %536 = vmatprep.subr.bf16.mxu0 0
        %537 = vmatpush1.bf16.msra.mxu0 0
        %538 = vmatprep.subr.bf16.mxu0 0
        %539 = vmatpush1.bf16.msra.mxu0 0
        %540 = vmatprep.subr.bf16.mxu0 0
        %541 = vmatpush1.bf16.msra.mxu0 0
        %542 = vmatprep.subr.bf16.mxu0 0
        %543 = vmatpush1.bf16.msra.mxu0 0
        %544 = vmatprep.subr.bf16.mxu0 0
        %545 = vmatpush1.bf16.msra.mxu0 0
        %546 = vmatprep.subr.bf16.mxu0 0
        %547 = vmatpush1.bf16.msra.mxu0 0
        %548 = vmatprep.subr.bf16.mxu0 0
        %549 = vmatpush1.bf16.msra.mxu0 0
        %550 = vmatprep.mubr.bf16.mxu0 0
        %551 = vmatmul.mubr.bf16.gmra.mrb[0].mxu0 %v393
        %v552 = vpop.f32.mrb[0].mxu0
        %v553 = vadd.f32 %v269, %v552
        %v554 = vpop.f32.mrb[0].mxu0
        %v555 = vadd.f32 %v269, %v554
        %v556 = vpop.f32.mrb[0].mxu0
        %v557 = vpop.f32.mrb[0].mxu0
        %558 = vdwg.mxu0
        %vm559 = vcmp.ge.f32.partialorder %v430, 0.0
        %vm560 = vcmp.ge.f32.partialorder %v432, 0.0
        %vm561 = vcmp.ge.f32.partialorder %v471, 0.0
        %vm562 = vcmp.ge.f32.partialorder %v473, 0.0
        %vm563 = vcmp.ge.f32.partialorder %v512, 0.0
        %vm564 = vcmp.ge.f32.partialorder %v514, 0.0
        %vm565 = vcmp.ge.f32.partialorder %v553, 0.0
        %vm566 = vcmp.ge.f32.partialorder %v555, 0.0
        %v567 = vmul.f32 %v430, 0.2
        %v568 = vmul.f32 %v432, 0.2
        %v569 = vmul.f32 %v471, 0.2
        %v570 = vmul.f32 %v473, 0.2
        %v571 = vmul.f32 %v512, 0.2
        %v572 = vmul.f32 %v514, 0.2
        %v573 = vmul.f32 %v553, 0.2
        %v574 = vmul.f32 %v555, 0.2
        %v575 = vsel %vm559, %v430, %v567
        %v576 = vsel %vm560, %v432, %v568
        %v577 = vsel %vm561, %v471, %v569
        %v578 = vsel %vm562, %v473, %v570
        %v579 = vsel %vm563, %v512, %v571
        %v580 = vsel %vm564, %v514, %v572
        %v581 = vsel %vm565, %v553, %v573
        %v582 = vsel %vm566, %v555, %v574
        %583 = vst [vmem:[%s237] sm:$0xff] %v575
        %584 = vst [vmem:[%s237 + $0x8] sm:$0xff] %v576
        %585 = vst [vmem:[%s237 + $0x10] sm:$0xff] %v577
        %586 = vst [vmem:[%s237 + $0x18] sm:$0xff] %v578
        %587 = vst [vmem:[%s237 + $0x20] sm:$0xff] %v579
        %588 = vst [vmem:[%s237 + $0x28] sm:$0xff] %v580
        %589 = vst [vmem:[%s237 + $0x30] sm:$0xff] %v581
        %590 = vst [vmem:[%s237 + $0x38] sm:$0xff] %v582
        %s591 = smul.u32 8, %s14
        %p592 = scmp.lt.s32.totalorder %s591, 15
        %s593 = scalar_select %p592, %s591, 15
        %s594 = smul.addr %s593, 8
        %s595 = scalar_lea.vmem %s3, %s594
        // Predicated region
        $region56: #{_lambda_.8} parent=50 // pred_check
          %p596 = pneg %p100
        $region57: #{_lambda_.8} parent=50 // pred_check_branch
          %598 = sbr.rel (%p596) target = $region59
        $region58: #{_lambda_.8} parent=50 // pred_region
          %s599 = smul.u32 8, %s14
        $region59: #{_lambda_.8} parent=50 // pred_fallthru
          _
      $region51: #{_lambda_.8} parent=5 // pred_fallthru
        _
      %p600 = scmp.le.s32.totalorder 2, %s9
      // Predicated region
      $region60: #{_lambda_.8} parent=5 // pred_check
        %p601 = pneg %p600
      $region61: #{_lambda_.8} parent=5 // pred_check_branch
        %603 = sbr.rel (%p601) target = $region63
      $region62: #{_lambda_.8} parent=5 // pred_region
        %s604 = ssub.s32 %s9, 2
        // Predicated region
        $region64: #{_lambda_.8} parent=62 // pred_check
          %p605 = pneg %p106
        $region65: #{_lambda_.8} parent=62 // pred_check_branch
          %607 = sbr.rel (%p605) target = $region67
        $region66: #{_lambda_.8} parent=62 // pred_region
          %s608 = smul.u32 8, %s15
          %p609 = scmp.lt.s32.totalorder %s608, 15
          %s610 = scalar_select %p609, %s608, 15
          %s611 = smul.addr %s610, 8
          %s612 = scalar_lea.vmem %s3, %s611
        $region67: #{_lambda_.8} parent=62 // pred_fallthru
          _
      $region63: #{_lambda_.8} parent=5 // pred_fallthru
        _
    $region6: #{_lambda_.8} parent=1 // loop_footer
      %s13 = sadd.s32 1, %s9
    $region7: #{_lambda_.8} parent=1 // loop_footer_branch
      %8 = sbr.rel target = $region3
    $region8: #{_lambda_.8} parent=1 // loop_exit
      _

// kernel: _lambda_.9
$region0: #{_lambda_.9}
  #allocation0 [shape = 'u32[]', space=smem, size = 0x4, offset = 0x4, fixed_abs, tag = 'smem constant byte address 0x4 - core index']
  #allocation1 [shape = 'u32[144,128]{1,0:T(1,128)}', space=vmem, size = 0x12000, scoped, tag = 'internal scratch']
  %s0 = inlined_call_operand.vmem [shape: bf16[16,128], index: 0, kind: input, shape index: {}]
  %s1 = inlined_call_operand.vmem [shape: bf16[128,512], index: 1, kind: input, shape index: {}]
  %s2 = inlined_call_operand.vmem [shape: f32[16,512], index: 2, kind: output, shape index: {0}]
  %s3 = inlined_call_operand.vmem [shape: f32[16,1], index: 3, kind: output, shape index: {1}]
  %s4 = inlined_call_operand.vmem [shape: f32[16,1], index: 4, kind: output, shape index: {2}]
  %5 = xla_tuple %s2, %s3, %s4
  %s6 = sld [smem:[#allocation0]]
  $region118: #{_lambda_.9} parent=0
    _
  %s8 = ssub.s32 1, %s6
  %s9 = scalar_select 0, %s8, %s6
  $region1: #{_lambda_.9} parent=0
    #allocation2 [shape = 'u8[131072]{0}', space=vmem, size = 0x20000, scoped, tag = 'input window, operand 1']
    #allocation3 [shape = 'u8[32768]{0}', space=vmem, size = 0x8000, scoped, tag = 'output window, operand 0']
    loop: start=0, step=1, limit=4
    $region2: #{_lambda_.9} parent=1 // loop_pre_header
      _
    $region3: #{_lambda_.9} parent=1 // loop_header
      %s11 = sphi 0, %s15
      %p12 = scmp.ge.s32.totalorder %s11, 4
      %s19 = sphi 0, %s19
      %s21 = sphi 0, %s19
      %s22 = sphi 0, %s21
      %s36 = sphi 0, %s22
      %s42 = sphi 0, %s44
      %s45 = sphi 0, %s42
      %s46 = sphi 0, %s45
      %s62 = sphi 0, %s46
      %s68 = sphi 0, %s70
      %s71 = sphi 0, %s68
      %s72 = sphi 0, %s71
      %s88 = sphi 0, %s72
      %s92 = sphi 0, %s92
      %s94 = sphi 0, %s92
      %s95 = sphi 0, %s94
      %s109 = sphi 0, %s95
      %s113 = sphi 0, %s113
      %s115 = sphi 0, %s113
      %s116 = sphi 0, %s115
      %s130 = sphi 0, %s116
    $region4: #{_lambda_.9} parent=1 // loop_header_branch
      %14 = sbr.rel (%p12) target = $region8
    $region5: #{_lambda_.9} parent=1 // loop_body
      %s16 = ssub.s32 %s11, 1
      %s17 = ssub.s32 %s11, 2
      %s18 = sadd.s32 %s11, 1
      %s20 = sadd.s32 %s19, 1
      %p23 = scmp.eq.s32.totalorder %s11, 1
      %p24 = scmp.ne.s32.totalorder %s19, %s21
      %p25 = scmp.eq.s32.totalorder %s11, 0
      %p26 = por %p24, %p25
      %p27 = scmp.ne.s32.totalorder %s19, %s21
      %p28 = scmp.eq.s32.totalorder %s16, 1
      %p29 = por %p27, %p28
      %p30 = scmp.ne.s32.totalorder %s21, %s22
      %p31 = scmp.eq.s32.totalorder %s16, 0
      %p32 = por %p30, %p31
      %p33 = scmp.ne.s32.totalorder %s21, %s22
      %p34 = scmp.eq.s32.totalorder %s17, 1
      %p35 = por %p33, %p34
      %p37 = scmp.ne.s32.totalorder %s22, %s36
      %p38 = scmp.eq.s32.totalorder %s17, 0
      %p39 = por %p37, %p38
      %s40 = ssub.s32 %s11, %s18
      %p41 = scmp.eq.s32.totalorder %s40, 0
      %s43 = sadd.s32 %s42, 1
      %s44 = scalar_select %p41, %s42, %s43
      %p47 = pneg %p41
      %p48 = scmp.eq.s32.totalorder %s11, 1
      %p49 = por %p47, %p48
      %p50 = scmp.ne.s32.totalorder %s42, %s45
      %p51 = scmp.eq.s32.totalorder %s11, 0
      %p52 = por %p50, %p51
      %p53 = scmp.ne.s32.totalorder %s42, %s45
      %p54 = scmp.eq.s32.totalorder %s16, 1
      %p55 = por %p53, %p54
      %p56 = scmp.ne.s32.totalorder %s45, %s46
      %p57 = scmp.eq.s32.totalorder %s16, 0
      %p58 = por %p56, %p57
      %p59 = scmp.ne.s32.totalorder %s45, %s46
      %p60 = scmp.eq.s32.totalorder %s17, 1
      %p61 = por %p59, %p60
      %p63 = scmp.ne.s32.totalorder %s46, %s62
      %p64 = scmp.eq.s32.totalorder %s17, 0
      %p65 = por %p63, %p64
      %s66 = ssub.s32 %s11, %s18
      %p67 = scmp.eq.s32.totalorder %s66, 0
      %s69 = sadd.s32 %s68, 1
      %s70 = scalar_select %p67, %s68, %s69
      %p73 = pneg %p67
      %p74 = scmp.eq.s32.totalorder %s11, 1
      %p75 = por %p73, %p74
      %p76 = scmp.ne.s32.totalorder %s68, %s71
      %p77 = scmp.eq.s32.totalorder %s11, 0
      %p78 = por %p76, %p77
      %p79 = scmp.ne.s32.totalorder %s68, %s71
      %p80 = scmp.eq.s32.totalorder %s16, 1
      %p81 = por %p79, %p80
      %p82 = scmp.ne.s32.totalorder %s71, %s72
      %p83 = scmp.eq.s32.totalorder %s16, 0
      %p84 = por %p82, %p83
      %p85 = scmp.ne.s32.totalorder %s71, %s72
      %p86 = scmp.eq.s32.totalorder %s17, 1
      %p87 = por %p85, %p86
      %p89 = scmp.ne.s32.totalorder %s72, %s88
      %p90 = scmp.eq.s32.totalorder %s17, 0
      %p91 = por %p89, %p90
      %s93 = sadd.s32 %s92, 1
      %p96 = scmp.eq.s32.totalorder %s11, 1
      %p97 = scmp.ne.s32.totalorder %s92, %s94
      %p98 = scmp.eq.s32.totalorder %s11, 0
      %p99 = por %p97, %p98
      %p100 = scmp.ne.s32.totalorder %s92, %s94
      %p101 = scmp.eq.s32.totalorder %s16, 1
      %p102 = por %p100, %p101
      %p103 = scmp.ne.s32.totalorder %s94, %s95
      %p104 = scmp.eq.s32.totalorder %s16, 0
      %p105 = por %p103, %p104
      %p106 = scmp.ne.s32.totalorder %s94, %s95
      %p107 = scmp.eq.s32.totalorder %s17, 1
      %p108 = por %p106, %p107
      %p110 = scmp.ne.s32.totalorder %s95, %s109
      %p111 = scmp.eq.s32.totalorder %s17, 0
      %p112 = por %p110, %p111
      %s114 = sadd.s32 %s113, 1
      %p117 = scmp.eq.s32.totalorder %s11, 1
      %p118 = scmp.ne.s32.totalorder %s113, %s115
      %p119 = scmp.eq.s32.totalorder %s11, 0
      %p120 = por %p118, %p119
      %p121 = scmp.ne.s32.totalorder %s113, %s115
      %p122 = scmp.eq.s32.totalorder %s16, 1
      %p123 = por %p121, %p122
      %p124 = scmp.ne.s32.totalorder %s115, %s116
      %p125 = scmp.eq.s32.totalorder %s16, 0
      %p126 = por %p124, %p125
      %p127 = scmp.ne.s32.totalorder %s115, %s116
      %p128 = scmp.eq.s32.totalorder %s17, 1
      %p129 = por %p127, %p128
      %p131 = scmp.ne.s32.totalorder %s116, %s130
      %p132 = scmp.eq.s32.totalorder %s17, 0
      %p133 = por %p131, %p132
      %p134 = scmp.le.s32.totalorder 1, %s11
      %p135 = scmp.lt.s32.totalorder %s11, 3
      %p136 = pnand %p134, %p135
      %p137 = pneg %p136
      // Predicated region
      $region9: #{_lambda_.9} parent=5 // pred_check
        _
      $region10: #{_lambda_.9} parent=5 // pred_check_branch
        %139 = sbr.rel (%p136) target = $region12
      $region11: #{_lambda_.9} parent=5 // pred_region
        %s140 = ssub.s32 %s11, 1
        // Predicated region
        $region13: #{_lambda_.9} parent=11 // pred_check
          %p141 = pneg %p32
        $region14: #{_lambda_.9} parent=11 // pred_check_branch
          %143 = sbr.rel (%p141) target = $region16
        $region15: #{_lambda_.9} parent=11 // pred_region
          _
        $region16: #{_lambda_.9} parent=11 // pred_fallthru
          _
      $region12: #{_lambda_.9} parent=5 // pred_fallthru
        _
      %p144 = scmp.lt.s32.totalorder %s11, 2
      // Predicated region
      $region17: #{_lambda_.9} parent=5 // pred_check
        %p145 = pneg %p144
      $region18: #{_lambda_.9} parent=5 // pred_check_branch
        %147 = sbr.rel (%p145) target = $region20
      $region19: #{_lambda_.9} parent=5 // pred_region
        // Predicated region
        $region21: #{_lambda_.9} parent=19 // pred_check
          %p148 = pneg %p52
        $region22: #{_lambda_.9} parent=19 // pred_check_branch
          %150 = sbr.rel (%p148) target = $region24
        $region23: #{_lambda_.9} parent=19 // pred_region
          %s151 = sand.u32 %s42, 1
          %s152 = sand.u32 %s42, 1
          %s153 = smul.addr %s152, 128
          %s154 = scalar_lea.vmem [#allocation2], %s153
          %s155 = smul.u32 2, %s11
          %s156 = smul.addr %s155, 4
          %s157 = scalar_lea.vmem %s1, %s156
          // Predicated region
          $region25: #{_lambda_.9} parent=23 // pred_check
            _
          $region26: #{_lambda_.9} parent=23 // pred_check_branch
            %159 = sbr.rel (0) target = $region28
          $region27: #{_lambda_.9} parent=23 // pred_region
            // Predicated region
            $region29: #{_lambda_.9} parent=27 // pred_check
              _
            $region30: #{_lambda_.9} parent=27 // pred_check_branch
              %161 = sbr.rel (0) target = $region32
            $region31: #{_lambda_.9} parent=27 // pred_region
              // Predicated region
              $region44: #{_lambda_.9} parent=31 // pred_check
                _
              $region45: #{_lambda_.9} parent=31 // pred_check_branch
                %206 = sbr.rel (0) target = $region47
              $region46: #{_lambda_.9} parent=31 // pred_region
                loop: start=0, step=1, limit=1
                $region48: #{_lambda_.9} parent=46 // loop_pre_header
                  _
                $region49: #{_lambda_.9} parent=46 // loop_header
                  %s208 = sphi 0, %s212
                  %p209 = scmp.ge.s32.totalorder %s208, 1
                  %s213 = sphi %s157, %s157
                  %s214 = sphi %s154, %s154
                $region50: #{_lambda_.9} parent=46 // loop_header_branch
                  %211 = sbr.rel (%p209) target = $region54
                $region51: #{_lambda_.9} parent=46 // loop_body
                  %v215 = vld [vmem:[%s213] sm:$0xff]
                  %216 = vst [vmem:[%s214] sm:$0xff] %v215
                  %v217 = vld [vmem:[%s213 + $0x10] sm:$0xff]
                  %218 = vst [vmem:[%s214 + $0x8] sm:$0xff] %v217
                  %v219 = vld [vmem:[%s213 + $0x20] sm:$0xff]
                  %220 = vst [vmem:[%s214 + $0x10] sm:$0xff] %v219
                  %v221 = vld [vmem:[%s213 + $0x30] sm:$0xff]
                  %222 = vst [vmem:[%s214 + $0x18] sm:$0xff] %v221
                  %v223 = vld [vmem:[%s213 + $0x40] sm:$0xff]
                  %224 = vst [vmem:[%s214 + $0x20] sm:$0xff] %v223
                  %v225 = vld [vmem:[%s213 + $0x50] sm:$0xff]
                  %226 = vst [vmem:[%s214 + $0x28] sm:$0xff] %v225
                  %v227 = vld [vmem:[%s213 + $0x60] sm:$0xff]
                  %228 = vst [vmem:[%s214 + $0x30] sm:$0xff] %v227
                  %v229 = vld [vmem:[%s213 + $0x70] sm:$0xff]
                  %230 = vst [vmem:[%s214 + $0x38] sm:$0xff] %v229
                  %v231 = vld [vmem:[%s213 + $0x80] sm:$0xff]
                  %232 = vst [vmem:[%s214 + $0x40] sm:$0xff] %v231
                  %v233 = vld [vmem:[%s213 + $0x90] sm:$0xff]
                  %234 = vst [vmem:[%s214 + $0x48] sm:$0xff] %v233
                  %v235 = vld [vmem:[%s213 + $0xa0] sm:$0xff]
                  %236 = vst [vmem:[%s214 + $0x50] sm:$0xff] %v235
                  %v237 = vld [vmem:[%s213 + $0xb0] sm:$0xff]
                  %238 = vst [vmem:[%s214 + $0x58] sm:$0xff] %v237
                  %v239 = vld [vmem:[%s213 + $0xc0] sm:$0xff]
                  %240 = vst [vmem:[%s214 + $0x60] sm:$0xff] %v239
                  %v241 = vld [vmem:[%s213 + $0xd0] sm:$0xff]
                  %242 = vst [vmem:[%s214 + $0x68] sm:$0xff] %v241
                  %v243 = vld [vmem:[%s213 + $0xe0] sm:$0xff]
                  %244 = vst [vmem:[%s214 + $0x70] sm:$0xff] %v243
                  %v245 = vld [vmem:[%s213 + $0xf0] sm:$0xff]
                  %246 = vst [vmem:[%s214 + $0x78] sm:$0xff] %v245
                $region52: #{_lambda_.9} parent=46 // loop_footer
                  %s212 = sadd.s32 1, %s208
                $region53: #{_lambda_.9} parent=46 // loop_footer_branch
                  %207 = sbr.rel target = $region49
                $region54: #{_lambda_.9} parent=46 // loop_exit
                  _
              $region47: #{_lambda_.9} parent=31 // pred_fallthru
                _
              // Predicated region
              $region55: #{_lambda_.9} parent=31 // pred_check
                _
              $region56: #{_lambda_.9} parent=31 // pred_check_branch
                %248 = sbr.rel target = $region58
              $region57: #{_lambda_.9} parent=31 // pred_region
                _
              $region58: #{_lambda_.9} parent=31 // pred_fallthru
                _
            $region32: #{_lambda_.9} parent=27 // pred_fallthru
              _
            // Predicated region
            $region33: #{_lambda_.9} parent=27 // pred_check
              _
            $region34: #{_lambda_.9} parent=27 // pred_check_branch
              %163 = sbr.rel target = $region36
            $region35: #{_lambda_.9} parent=27 // pred_region
              loop: start=0, step=1, limit=1
              $region37: #{_lambda_.9} parent=35 // loop_pre_header
                _
              $region38: #{_lambda_.9} parent=35 // loop_header
                %s166 = sphi 0, %s170
                %p167 = scmp.ge.s32.totalorder %s166, 1
                %s171 = sphi %s157, %s157
                %s172 = sphi %s154, %s154
              $region39: #{_lambda_.9} parent=35 // loop_header_branch
                %169 = sbr.rel (%p167) target = $region43
              $region40: #{_lambda_.9} parent=35 // loop_body
                %v173 = vld [vmem:[%s171] sm:$0xff]
                %174 = vst [vmem:[%s172] sm:$0xff] %v173
                %v175 = vld [vmem:[%s171 + $0x10] sm:$0xff]
                %176 = vst [vmem:[%s172 + $0x8] sm:$0xff] %v175
                %v177 = vld [vmem:[%s171 + $0x20] sm:$0xff]
                %178 = vst [vmem:[%s172 + $0x10] sm:$0xff] %v177
                %v179 = vld [vmem:[%s171 + $0x30] sm:$0xff]
                %180 = vst [vmem:[%s172 + $0x18] sm:$0xff] %v179
                %v181 = vld [vmem:[%s171 + $0x40] sm:$0xff]
                %182 = vst [vmem:[%s172 + $0x20] sm:$0xff] %v181
                %v183 = vld [vmem:[%s171 + $0x50] sm:$0xff]
                %184 = vst [vmem:[%s172 + $0x28] sm:$0xff] %v183
                %v185 = vld [vmem:[%s171 + $0x60] sm:$0xff]
                %186 = vst [vmem:[%s172 + $0x30] sm:$0xff] %v185
                %v187 = vld [vmem:[%s171 + $0x70] sm:$0xff]
                %188 = vst [vmem:[%s172 + $0x38] sm:$0xff] %v187
                %v189 = vld [vmem:[%s171 + $0x80] sm:$0xff]
                %190 = vst [vmem:[%s172 + $0x40] sm:$0xff] %v189
                %v191 = vld [vmem:[%s171 + $0x90] sm:$0xff]
                %192 = vst [vmem:[%s172 + $0x48] sm:$0xff] %v191
                %v193 = vld [vmem:[%s171 + $0xa0] sm:$0xff]
                %194 = vst [vmem:[%s172 + $0x50] sm:$0xff] %v193
                %v195 = vld [vmem:[%s171 + $0xb0] sm:$0xff]
                %196 = vst [vmem:[%s172 + $0x58] sm:$0xff] %v195
                %v197 = vld [vmem:[%s171 + $0xc0] sm:$0xff]
                %198 = vst [vmem:[%s172 + $0x60] sm:$0xff] %v197
                %v199 = vld [vmem:[%s171 + $0xd0] sm:$0xff]
                %200 = vst [vmem:[%s172 + $0x68] sm:$0xff] %v199
                %v201 = vld [vmem:[%s171 + $0xe0] sm:$0xff]
                %202 = vst [vmem:[%s172 + $0x70] sm:$0xff] %v201
                %v203 = vld [vmem:[%s171 + $0xf0] sm:$0xff]
                %204 = vst [vmem:[%s172 + $0x78] sm:$0xff] %v203
              $region41: #{_lambda_.9} parent=35 // loop_footer
                %s170 = sadd.s32 1, %s166
              $region42: #{_lambda_.9} parent=35 // loop_footer_branch
                %165 = sbr.rel target = $region38
              $region43: #{_lambda_.9} parent=35 // loop_exit
                _
            $region36: #{_lambda_.9} parent=27 // pred_fallthru
              _
          $region28: #{_lambda_.9} parent=23 // pred_fallthru
            _
          %249 = vnop
        $region24: #{_lambda_.9} parent=19 // pred_fallthru
          _
      $region20: #{_lambda_.9} parent=5 // pred_fallthru
        _
      %p250 = scmp.le.s32.totalorder 1, %s11
      %p251 = scmp.lt.s32.totalorder %s11, 3
      %p252 = pnand %p250, %p251
      %p253 = pneg %p252
      // Predicated region
      $region59: #{_lambda_.9} parent=5 // pred_check
        _
      $region60: #{_lambda_.9} parent=5 // pred_check_branch
        %255 = sbr.rel (%p252) target = $region62
      $region61: #{_lambda_.9} parent=5 // pred_region
        %s256 = ssub.s32 %s11, 1
        %s257 = sand.u32 %s45, 1
        %s258 = sand.u32 %s45, 1
        %s259 = smul.addr %s258, 128
        %s260 = scalar_lea.vmem [#allocation2], %s259
        // Predicated region
        $region63: #{_lambda_.9} parent=61 // pred_check
          %p261 = pneg %p58
        $region64: #{_lambda_.9} parent=61 // pred_check_branch
          %263 = sbr.rel (%p261) target = $region66
        $region65: #{_lambda_.9} parent=61 // pred_region
          _
        $region66: #{_lambda_.9} parent=61 // pred_fallthru
          _
        %p264 = pneg %p32
        %p265 = pneg %p29
        %s266 = sand.u32 %s45, 1
        %s267 = sand.u32 %s45, 1
        %s268 = smul.addr %s267, 128
        %s269 = scalar_lea.vmem [#allocation2], %s268
        %p270 = pneg %p58
        %p271 = pneg %p55
        %p272 = pneg %p84
        %p273 = pneg %p81
        %s274 = sand.u32 %s71, 1
        %s275 = sand.u32 %s71, 1
        %s276 = smul.addr %s275, 32
        %s277 = scalar_lea.vmem [#allocation3], %s276
        %p278 = pneg %p105
        %p279 = pneg %p102
        %p280 = pneg %p126
        %p281 = pneg %p123
        %s282 = smul.u32 2, %s16
        %s283 = smul.u32 2, %s16
        %v285 = vld [vmem:[%s0] sm:$0xf]
        %v286 = vld [vmem:[%s0 + $0x4] sm:$0xf]
        %v287 = vld [vmem:[%s260] sm:$0xff]
        %v288 = vld [vmem:[%s260 + $0x8] sm:$0xff]
        %v289 = vld [vmem:[%s260 + $0x10] sm:$0xff]
        %v290 = vld [vmem:[%s260 + $0x18] sm:$0xff]
        %v291 = vld [vmem:[%s260 + $0x20] sm:$0xff]
        %v292 = vld [vmem:[%s260 + $0x28] sm:$0xff]
        %v293 = vld [vmem:[%s260 + $0x30] sm:$0xff]
        %v294 = vld [vmem:[%s260 + $0x38] sm:$0xff]
        %v295 = vld [vmem:[%s260 + $0x40] sm:$0xff]
        %v296 = vld [vmem:[%s260 + $0x48] sm:$0xff]
        %v297 = vld [vmem:[%s260 + $0x50] sm:$0xff]
        %v298 = vld [vmem:[%s260 + $0x58] sm:$0xff]
        %v299 = vld [vmem:[%s260 + $0x60] sm:$0xff]
        %v300 = vld [vmem:[%s260 + $0x68] sm:$0xff]
        %v301 = vld [vmem:[%s260 + $0x70] sm:$0xff]
        %v302 = vld [vmem:[%s260 + $0x78] sm:$0xff]
        %v305 = vunpack.c.l.b16 %v285
        %v306 = vunpack.c.l.b16 %v286
        %v307 = vpack.c.b16 %v306, %v305
        %v325 = vunpack.c.l.b16 %v287
        %v326 = vunpack.c.h.b16 %v287
        %v327 = vunpack.c.l.b16 %v288
        %v328 = vunpack.c.h.b16 %v288
        %v329 = vunpack.c.l.b16 %v289
        %v330 = vunpack.c.h.b16 %v289
        %v331 = vunpack.c.l.b16 %v290
        %v332 = vunpack.c.h.b16 %v290
        %v333 = vunpack.c.l.b16 %v291
        %v334 = vunpack.c.h.b16 %v291
        %v335 = vunpack.c.l.b16 %v292
        %v336 = vunpack.c.h.b16 %v292
        %v337 = vunpack.c.l.b16 %v293
        %v338 = vunpack.c.h.b16 %v293
        %v339 = vunpack.c.l.b16 %v294
        %v340 = vunpack.c.h.b16 %v294
        %v341 = vunpack.c.l.b16 %v295
        %v342 = vunpack.c.h.b16 %v295
        %v343 = vunpack.c.l.b16 %v296
        %v344 = vunpack.c.h.b16 %v296
        %v345 = vunpack.c.l.b16 %v297
        %v346 = vunpack.c.h.b16 %v297
        %v347 = vunpack.c.l.b16 %v298
        %v348 = vunpack.c.h.b16 %v298
        %v349 = vunpack.c.l.b16 %v299
        %v350 = vunpack.c.h.b16 %v299
        %v351 = vunpack.c.l.b16 %v300
        %v352 = vunpack.c.h.b16 %v300
        %v353 = vunpack.c.l.b16 %v301
        %v354 = vunpack.c.h.b16 %v301
        %v355 = vunpack.c.l.b16 %v302
        %v356 = vunpack.c.h.b16 %v302
        %v357 = vpack.c.b16 %v327, %v325
        %v358 = vpack.c.b16 %v328, %v326
        %v359 = vpack.c.b16 %v331, %v329
        %v360 = vpack.c.b16 %v332, %v330
        %v361 = vpack.c.b16 %v335, %v333
        %v362 = vpack.c.b16 %v336, %v334
        %v363 = vpack.c.b16 %v339, %v337
        %v364 = vpack.c.b16 %v340, %v338
        %v365 = vpack.c.b16 %v343, %v341
        %v366 = vpack.c.b16 %v344, %v342
        %v367 = vpack.c.b16 %v347, %v345
        %v368 = vpack.c.b16 %v348, %v346
        %v369 = vpack.c.b16 %v351, %v349
        %v370 = vpack.c.b16 %v352, %v350
        %v371 = vpack.c.b16 %v355, %v353
        %v372 = vpack.c.b16 %v356, %v354
        %389 = vmatprep.subr.bf16.mxu0 %v358
        %390 = vmatpush1.bf16.msra.mxu0 %v357
        %391 = vmatprep.subr.bf16.mxu0 %v360
        %392 = vmatpush1.bf16.msra.mxu0 %v359
        %393 = vmatprep.subr.bf16.mxu0 %v362
        %394 = vmatpush1.bf16.msra.mxu0 %v361
        %395 = vmatprep.subr.bf16.mxu0 %v364
        %396 = vmatpush1.bf16.msra.mxu0 %v363
        %397 = vmatprep.subr.bf16.mxu0 %v366
        %398 = vmatpush1.bf16.msra.mxu0 %v365
        %399 = vmatprep.subr.bf16.mxu0 %v368
        %400 = vmatpush1.bf16.msra.mxu0 %v367
        %401 = vmatprep.subr.bf16.mxu0 %v370
        %402 = vmatpush1.bf16.msra.mxu0 %v369
        %403 = vmatprep.subr.bf16.mxu0 %v372
        %404 = vmatpush1.bf16.msra.mxu0 %v371
        %405 = vmatprep.subr.bf16.mxu0 0
        %406 = vmatpush1.bf16.msra.mxu0 0
        %407 = vmatprep.subr.bf16.mxu0 0
        %408 = vmatpush1.bf16.msra.mxu0 0
        %409 = vmatprep.subr.bf16.mxu0 0
        %410 = vmatpush1.bf16.msra.mxu0 0
        %411 = vmatprep.subr.bf16.mxu0 0
        %412 = vmatpush1.bf16.msra.mxu0 0
        %413 = vmatprep.subr.bf16.mxu0 0
        %414 = vmatpush1.bf16.msra.mxu0 0
        %415 = vmatprep.subr.bf16.mxu0 0
        %416 = vmatpush1.bf16.msra.mxu0 0
        %417 = vmatprep.subr.bf16.mxu0 0
        %418 = vmatpush1.bf16.msra.mxu0 0
        %419 = vmatprep.subr.bf16.mxu0 0
        %420 = vmatpush1.bf16.msra.mxu0 0
        %421 = vmatprep.mubr.bf16.mxu0 0
        %422 = vmatmul.mubr.bf16.gmra.mrb[0].mxu0 %v307
        %v423 = vpop.f32.mrb[0].mxu0
        %v424 = vadd.f32 0.0, %v423
        %v425 = vpop.f32.mrb[0].mxu0
        %v426 = vadd.f32 0.0, %v425
        %v427 = vpop.f32.mrb[0].mxu0
        %v428 = vadd.f32 0.0, %v427
        %v429 = vpop.f32.mrb[0].mxu0
        %v430 = vadd.f32 0.0, %v429
        %431 = vdwg.mxu0
        %432 = vst [vmem:[%s277] sm:$0xff] %v424
        %433 = vst [vmem:[%s277 + $0x8] sm:$0xff] %v426
        %434 = vst [vmem:[%s277 + $0x10] sm:$0xff] %v428
        %435 = vst [vmem:[%s277 + $0x18] sm:$0xff] %v430
        %p436 = scmp.eq.s32.totalorder %s16, 0
        // Predicated region
        $region67: #{_lambda_.9} parent=61 // pred_check
          %p437 = pneg %p436
        $region68: #{_lambda_.9} parent=61 // pred_check_branch
          %439 = sbr.rel (%p437) target = $region70
        $region69: #{_lambda_.9} parent=61 // pred_region
          %vm440 = vcmask 7168
          %441 = vst.msk [vmem:[%s3] sm:$0xff] %vm440, 0.0
          %442 = vst.msk [vmem:[%s3 + $0x8] sm:$0xff] %vm440, 0.0
          %443 = vst.msk [vmem:[%s4] sm:$0xff] %vm440, 0.0
          %444 = vst.msk [vmem:[%s4 + $0x8] sm:$0xff] %vm440, 0.0
        $region70: #{_lambda_.9} parent=61 // pred_fallthru
          _
        %v445 = vld [vmem:[%s3] sm:$0xff]
        %v446 = vld [vmem:[%s3 + $0x8] sm:$0xff]
        %v447 = vadd.f32 %v424, %v426
        %448 = vadd.xlane.f32.xlu0 %v447
        %v449 = vpop.xlane.xlu0 %448
        %v450 = vadd.f32 %v428, %v430
        %451 = vadd.xlane.f32.xlu0 %v450
        %v452 = vpop.xlane.xlu0 %451
        %v453 = vadd.f32 %v445, %v449
        %v454 = vadd.f32 %v446, %v452
        %vm455 = vcmask 7168
        %456 = vst.msk [vmem:[%s3] sm:$0xff] %vm455, %v453
        %457 = vst.msk [vmem:[%s3 + $0x8] sm:$0xff] %vm455, %v454
        %v458 = vld [vmem:[%s4] sm:$0xff]
        %v459 = vld [vmem:[%s4 + $0x8] sm:$0xff]
        %v460 = vmul.f32 %v424, %v424
        %v461 = vmul.f32 %v426, %v426
        %v462 = vmul.f32 %v428, %v428
        %v463 = vmul.f32 %v430, %v430
        %v464 = vadd.f32 %v460, %v461
        %465 = vadd.xlane.f32.xlu0 %v464
        %v466 = vpop.xlane.xlu0 %465
        %v467 = vadd.f32 %v462, %v463
        %468 = vadd.xlane.f32.xlu0 %v467
        %v469 = vpop.xlane.xlu0 %468
        %v470 = vadd.f32 %v458, %v466
        %v471 = vadd.f32 %v459, %v469
        %472 = vst.msk [vmem:[%s4] sm:$0xff] %vm455, %v470
        %473 = vst.msk [vmem:[%s4 + $0x8] sm:$0xff] %vm455, %v471
        %s474 = sand.u32 %s71, 1
        %s475 = sand.u32 %s71, 1
        %s476 = smul.addr %s475, 32
        %s477 = scalar_lea.vmem [#allocation3], %s476
        // Predicated region
        $region71: #{_lambda_.9} parent=61 // pred_check
          %p478 = pneg %p81
        $region72: #{_lambda_.9} parent=61 // pred_check_branch
          %480 = sbr.rel (%p478) target = $region74
        $region73: #{_lambda_.9} parent=61 // pred_region
          %s481 = smul.u32 2, %s16
          %s482 = smul.addr %s481, 8
          %s483 = scalar_lea.vmem %s2, %s482
          // Predicated region
          $region75: #{_lambda_.9} parent=73 // pred_check
            _
          $region76: #{_lambda_.9} parent=73 // pred_check_branch
            %485 = sbr.rel (0) target = $region78
          $region77: #{_lambda_.9} parent=73 // pred_region
            // Predicated region
            $region79: #{_lambda_.9} parent=77 // pred_check
              _
            $region80: #{_lambda_.9} parent=77 // pred_check_branch
              %487 = sbr.rel (0) target = $region82
            $region81: #{_lambda_.9} parent=77 // pred_region
              loop: start=0, step=1, limit=1
              $region83: #{_lambda_.9} parent=81 // loop_pre_header
                _
              $region84: #{_lambda_.9} parent=81 // loop_header
                %s489 = sphi 0, %s493
                %p490 = scmp.ge.s32.totalorder %s489, 1
                %s494 = sphi %s477, %s477
                %s495 = sphi %s483, %s483
              $region85: #{_lambda_.9} parent=81 // loop_header_branch
                %492 = sbr.rel (%p490) target = $region89
              $region86: #{_lambda_.9} parent=81 // loop_body
                %v496 = vld [vmem:[%s494] sm:$0xff]
                %497 = vst [vmem:[%s495] sm:$0xff] %v496
                %v498 = vld [vmem:[%s494 + $0x8] sm:$0xff]
                %499 = vst [vmem:[%s495 + $0x8] sm:$0xff] %v498
                %v500 = vld [vmem:[%s494 + $0x10] sm:$0xff]
                %501 = vst [vmem:[%s495 + $0x20] sm:$0xff] %v500
                %v502 = vld [vmem:[%s494 + $0x18] sm:$0xff]
                %503 = vst [vmem:[%s495 + $0x28] sm:$0xff] %v502
              $region87: #{_lambda_.9} parent=81 // loop_footer
                %s493 = sadd.s32 1, %s489
              $region88: #{_lambda_.9} parent=81 // loop_footer_branch
                %488 = sbr.rel target = $region84
              $region89: #{_lambda_.9} parent=81 // loop_exit
                _
            $region82: #{_lambda_.9} parent=77 // pred_fallthru
              _
            // Predicated region
            $region90: #{_lambda_.9} parent=77 // pred_check
              _
            $region91: #{_lambda_.9} parent=77 // pred_check_branch
              %505 = sbr.rel target = $region93
            $region92: #{_lambda_.9} parent=77 // pred_region
              _
            $region93: #{_lambda_.9} parent=77 // pred_fallthru
              _
          $region78: #{_lambda_.9} parent=73 // pred_fallthru
            _
          %506 = vnop
        $region74: #{_lambda_.9} parent=61 // pred_fallthru
          _
        // Predicated region
        $region94: #{_lambda_.9} parent=61 // pred_check
          %p507 = pneg %p102
        $region95: #{_lambda_.9} parent=61 // pred_check_branch
          %509 = sbr.rel (%p507) target = $region97
        $region96: #{_lambda_.9} parent=61 // pred_region
          _
        $region97: #{_lambda_.9} parent=61 // pred_fallthru
          _
        // Predicated region
        $region98: #{_lambda_.9} parent=61 // pred_check
          %p510 = pneg %p123
        $region99: #{_lambda_.9} parent=61 // pred_check_branch
          %512 = sbr.rel (%p510) target = $region101
        $region100: #{_lambda_.9} parent=61 // pred_region
          _
        $region101: #{_lambda_.9} parent=61 // pred_fallthru
          _
        // Predicated region
        $region102: #{_lambda_.9} parent=61 // pred_check
          %p513 = pneg %p102
        $region103: #{_lambda_.9} parent=61 // pred_check_branch
          %515 = sbr.rel (%p513) target = $region105
        $region104: #{_lambda_.9} parent=61 // pred_region
          _
        $region105: #{_lambda_.9} parent=61 // pred_fallthru
          _
        // Predicated region
        $region106: #{_lambda_.9} parent=61 // pred_check
          %p516 = pneg %p123
        $region107: #{_lambda_.9} parent=61 // pred_check_branch
          %518 = sbr.rel (%p516) target = $region109
        $region108: #{_lambda_.9} parent=61 // pred_region
          _
        $region109: #{_lambda_.9} parent=61 // pred_fallthru
          _
      $region62: #{_lambda_.9} parent=5 // pred_fallthru
        _
      %p519 = scmp.le.s32.totalorder 2, %s11
      // Predicated region
      $region110: #{_lambda_.9} parent=5 // pred_check
        %p520 = pneg %p519
      $region111: #{_lambda_.9} parent=5 // pred_check_branch
        %522 = sbr.rel (%p520) target = $region113
      $region112: #{_lambda_.9} parent=5 // pred_region
        %s523 = ssub.s32 %s11, 2
        // Predicated region
        $region114: #{_lambda_.9} parent=112 // pred_check
          %p524 = pneg %p87
        $region115: #{_lambda_.9} parent=112 // pred_check_branch
          %526 = sbr.rel (%p524) target = $region117
        $region116: #{_lambda_.9} parent=112 // pred_region
          %s527 = sand.u32 %s72, 1
          %s528 = sand.u32 %s72, 1
          %s529 = smul.addr %s528, 32
          %s530 = scalar_lea.vmem [#allocation3], %s529
        $region117: #{_lambda_.9} parent=112 // pred_fallthru
          _
      $region113: #{_lambda_.9} parent=5 // pred_fallthru
        _
    $region6: #{_lambda_.9} parent=1 // loop_footer
      %s15 = sadd.s32 1, %s11
    $region7: #{_lambda_.9} parent=1 // loop_footer_branch
      %10 = sbr.rel target = $region3
    $region8: #{_lambda_.9} parent=1 // loop_exit
      _

// kernel: _lambda_.10
$region0: #{_lambda_.10}
  #allocation0 [shape = 'u32[]', space=smem, size = 0x4, offset = 0x4, fixed_abs, tag = 'smem constant byte address 0x4 - core index']
  #allocation1 [shape = 'u32[144,128]{1,0:T(1,128)}', space=vmem, size = 0x12000, scoped, tag = 'internal scratch']
  %s0 = inlined_call_operand.vmem [shape: f32[16,512], index: 0, kind: input, shape index: {}]
  %s1 = inlined_call_operand.vmem [shape: f32[16,1], index: 1, kind: input, shape index: {}]
  %s2 = inlined_call_operand.vmem [shape: f32[16,1], index: 2, kind: input, shape index: {}]
  %s3 = inlined_call_operand.vmem [shape: f32[16,512], index: 3, kind: output, shape index: {}]
  %s4 = sld [smem:[#allocation0]]
  $region87: #{_lambda_.10} parent=0
    _
  %s6 = ssub.s32 1, %s4
  %s7 = scalar_select 0, %s6, %s4
  $region1: #{_lambda_.10} parent=0
    #allocation2 [shape = 'u8[32768]{0}', space=vmem, size = 0x8000, scoped, tag = 'input window, operand 0']
    #allocation3 [shape = 'u8[32768]{0}', space=vmem, size = 0x8000, scoped, tag = 'output window, operand 0']
    loop: start=0, step=1, limit=4
    $region2: #{_lambda_.10} parent=1 // loop_pre_header
      _
    $region3: #{_lambda_.10} parent=1 // loop_header
      %s9 = sphi 0, %s13
      %p10 = scmp.ge.s32.totalorder %s9, 4
      %s19 = sphi 0, %s21
      %s22 = sphi 0, %s19
      %s23 = sphi 0, %s22
      %s39 = sphi 0, %s23
      %s43 = sphi 0, %s43
      %s45 = sphi 0, %s43
      %s46 = sphi 0, %s45
      %s60 = sphi 0, %s46
      %s64 = sphi 0, %s64
      %s66 = sphi 0, %s64
      %s67 = sphi 0, %s66
      %s81 = sphi 0, %s67
      %s87 = sphi 0, %s89
      %s90 = sphi 0, %s87
      %s91 = sphi 0, %s90
      %s107 = sphi 0, %s91
    $region4: #{_lambda_.10} parent=1 // loop_header_branch
      %12 = sbr.rel (%p10) target = $region8
    $region5: #{_lambda_.10} parent=1 // loop_body
      %s14 = ssub.s32 %s9, 1
      %s15 = ssub.s32 %s9, 2
      %s16 = sadd.s32 %s9, 1
      %s17 = ssub.s32 %s9, %s16
      %p18 = scmp.eq.s32.totalorder %s17, 0
      %s20 = sadd.s32 %s19, 1
      %s21 = scalar_select %p18, %s19, %s20
      %p24 = pneg %p18
      %p25 = scmp.eq.s32.totalorder %s9, 1
      %p26 = por %p24, %p25
      %p27 = scmp.ne.s32.totalorder %s19, %s22
      %p28 = scmp.eq.s32.totalorder %s9, 0
      %p29 = por %p27, %p28
      %p30 = scmp.ne.s32.totalorder %s19, %s22
      %p31 = scmp.eq.s32.totalorder %s14, 1
      %p32 = por %p30, %p31
      %p33 = scmp.ne.s32.totalorder %s22, %s23
      %p34 = scmp.eq.s32.totalorder %s14, 0
      %p35 = por %p33, %p34
      %p36 = scmp.ne.s32.totalorder %s22, %s23
      %p37 = scmp.eq.s32.totalorder %s15, 1
      %p38 = por %p36, %p37
      %p40 = scmp.ne.s32.totalorder %s23, %s39
      %p41 = scmp.eq.s32.totalorder %s15, 0
      %p42 = por %p40, %p41
      %s44 = sadd.s32 %s43, 1
      %p47 = scmp.eq.s32.totalorder %s9, 1
      %p48 = scmp.ne.s32.totalorder %s43, %s45
      %p49 = scmp.eq.s32.totalorder %s9, 0
      %p50 = por %p48, %p49
      %p51 = scmp.ne.s32.totalorder %s43, %s45
      %p52 = scmp.eq.s32.totalorder %s14, 1
      %p53 = por %p51, %p52
      %p54 = scmp.ne.s32.totalorder %s45, %s46
      %p55 = scmp.eq.s32.totalorder %s14, 0
      %p56 = por %p54, %p55
      %p57 = scmp.ne.s32.totalorder %s45, %s46
      %p58 = scmp.eq.s32.totalorder %s15, 1
      %p59 = por %p57, %p58
      %p61 = scmp.ne.s32.totalorder %s46, %s60
      %p62 = scmp.eq.s32.totalorder %s15, 0
      %p63 = por %p61, %p62
      %s65 = sadd.s32 %s64, 1
      %p68 = scmp.eq.s32.totalorder %s9, 1
      %p69 = scmp.ne.s32.totalorder %s64, %s66
      %p70 = scmp.eq.s32.totalorder %s9, 0
      %p71 = por %p69, %p70
      %p72 = scmp.ne.s32.totalorder %s64, %s66
      %p73 = scmp.eq.s32.totalorder %s14, 1
      %p74 = por %p72, %p73
      %p75 = scmp.ne.s32.totalorder %s66, %s67
      %p76 = scmp.eq.s32.totalorder %s14, 0
      %p77 = por %p75, %p76
      %p78 = scmp.ne.s32.totalorder %s66, %s67
      %p79 = scmp.eq.s32.totalorder %s15, 1
      %p80 = por %p78, %p79
      %p82 = scmp.ne.s32.totalorder %s67, %s81
      %p83 = scmp.eq.s32.totalorder %s15, 0
      %p84 = por %p82, %p83
      %s85 = ssub.s32 %s9, %s16
      %p86 = scmp.eq.s32.totalorder %s85, 0
      %s88 = sadd.s32 %s87, 1
      %s89 = scalar_select %p86, %s87, %s88
      %p92 = pneg %p86
      %p93 = scmp.eq.s32.totalorder %s9, 1
      %p94 = por %p92, %p93
      %p95 = scmp.ne.s32.totalorder %s87, %s90
      %p96 = scmp.eq.s32.totalorder %s9, 0
      %p97 = por %p95, %p96
      %p98 = scmp.ne.s32.totalorder %s87, %s90
      %p99 = scmp.eq.s32.totalorder %s14, 1
      %p100 = por %p98, %p99
      %p101 = scmp.ne.s32.totalorder %s90, %s91
      %p102 = scmp.eq.s32.totalorder %s14, 0
      %p103 = por %p101, %p102
      %p104 = scmp.ne.s32.totalorder %s90, %s91
      %p105 = scmp.eq.s32.totalorder %s15, 1
      %p106 = por %p104, %p105
      %p108 = scmp.ne.s32.totalorder %s91, %s107
      %p109 = scmp.eq.s32.totalorder %s15, 0
      %p110 = por %p108, %p109
      %p111 = scmp.le.s32.totalorder 1, %s9
      %p112 = scmp.lt.s32.totalorder %s9, 3
      %p113 = pnand %p111, %p112
      %p114 = pneg %p113
      // Predicated region
      $region9: #{_lambda_.10} parent=5 // pred_check
        _
      $region10: #{_lambda_.10} parent=5 // pred_check_branch
        %116 = sbr.rel (%p113) target = $region12
      $region11: #{_lambda_.10} parent=5 // pred_region
        %s117 = ssub.s32 %s9, 1
        // Predicated region
        $region13: #{_lambda_.10} parent=11 // pred_check
          %p118 = pneg %p56
        $region14: #{_lambda_.10} parent=11 // pred_check_branch
          %120 = sbr.rel (%p118) target = $region16
        $region15: #{_lambda_.10} parent=11 // pred_region
          _
        $region16: #{_lambda_.10} parent=11 // pred_fallthru
          _
        // Predicated region
        $region17: #{_lambda_.10} parent=11 // pred_check
          %p121 = pneg %p77
        $region18: #{_lambda_.10} parent=11 // pred_check_branch
          %123 = sbr.rel (%p121) target = $region20
        $region19: #{_lambda_.10} parent=11 // pred_region
          _
        $region20: #{_lambda_.10} parent=11 // pred_fallthru
          _
      $region12: #{_lambda_.10} parent=5 // pred_fallthru
        _
      %p124 = scmp.lt.s32.totalorder %s9, 2
      // Predicated region
      $region21: #{_lambda_.10} parent=5 // pred_check
        %p125 = pneg %p124
      $region22: #{_lambda_.10} parent=5 // pred_check_branch
        %127 = sbr.rel (%p125) target = $region24
      $region23: #{_lambda_.10} parent=5 // pred_region
        // Predicated region
        $region25: #{_lambda_.10} parent=23 // pred_check
          %p128 = pneg %p29
        $region26: #{_lambda_.10} parent=23 // pred_check_branch
          %130 = sbr.rel (%p128) target = $region28
        $region27: #{_lambda_.10} parent=23 // pred_region
          %s131 = sand.u32 %s19, 1
          %s132 = sand.u32 %s19, 1
          %s133 = smul.addr %s132, 32
          %s134 = scalar_lea.vmem [#allocation2], %s133
          %s135 = smul.u32 2, %s9
          %s136 = smul.addr %s135, 8
          %s137 = scalar_lea.vmem %s0, %s136
          // Predicated region
          $region29: #{_lambda_.10} parent=27 // pred_check
            _
          $region30: #{_lambda_.10} parent=27 // pred_check_branch
            %139 = sbr.rel (0) target = $region32
          $region31: #{_lambda_.10} parent=27 // pred_region
            // Predicated region
            $region33: #{_lambda_.10} parent=31 // pred_check
              _
            $region34: #{_lambda_.10} parent=31 // pred_check_branch
              %141 = sbr.rel (0) target = $region36
            $region35: #{_lambda_.10} parent=31 // pred_region
              loop: start=0, step=1, limit=1
              $region37: #{_lambda_.10} parent=35 // loop_pre_header
                _
              $region38: #{_lambda_.10} parent=35 // loop_header
                %s143 = sphi 0, %s147
                %p144 = scmp.ge.s32.totalorder %s143, 1
                %s148 = sphi %s137, %s137
                %s149 = sphi %s134, %s134
              $region39: #{_lambda_.10} parent=35 // loop_header_branch
                %146 = sbr.rel (%p144) target = $region43
              $region40: #{_lambda_.10} parent=35 // loop_body
                %v150 = vld [vmem:[%s148] sm:$0xff]
                %151 = vst [vmem:[%s149] sm:$0xff] %v150
                %v152 = vld [vmem:[%s148 + $0x8] sm:$0xff]
                %153 = vst [vmem:[%s149 + $0x8] sm:$0xff] %v152
                %v154 = vld [vmem:[%s148 + $0x20] sm:$0xff]
                %155 = vst [vmem:[%s149 + $0x10] sm:$0xff] %v154
                %v156 = vld [vmem:[%s148 + $0x28] sm:$0xff]
                %157 = vst [vmem:[%s149 + $0x18] sm:$0xff] %v156
              $region41: #{_lambda_.10} parent=35 // loop_footer
                %s147 = sadd.s32 1, %s143
              $region42: #{_lambda_.10} parent=35 // loop_footer_branch
                %142 = sbr.rel target = $region38
              $region43: #{_lambda_.10} parent=35 // loop_exit
                _
            $region36: #{_lambda_.10} parent=31 // pred_fallthru
              _
            // Predicated region
            $region44: #{_lambda_.10} parent=31 // pred_check
              _
            $region45: #{_lambda_.10} parent=31 // pred_check_branch
              %159 = sbr.rel target = $region47
            $region46: #{_lambda_.10} parent=31 // pred_region
              _
            $region47: #{_lambda_.10} parent=31 // pred_fallthru
              _
          $region32: #{_lambda_.10} parent=27 // pred_fallthru
            _
          %160 = vnop
        $region28: #{_lambda_.10} parent=23 // pred_fallthru
          _
      $region24: #{_lambda_.10} parent=5 // pred_fallthru
        _
      %p161 = scmp.le.s32.totalorder 1, %s9
      %p162 = scmp.lt.s32.totalorder %s9, 3
      %p163 = pnand %p161, %p162
      %p164 = pneg %p163
      // Predicated region
      $region48: #{_lambda_.10} parent=5 // pred_check
        _
      $region49: #{_lambda_.10} parent=5 // pred_check_branch
        %166 = sbr.rel (%p163) target = $region51
      $region50: #{_lambda_.10} parent=5 // pred_region
        %s167 = ssub.s32 %s9, 1
        %s168 = sand.u32 %s22, 1
        %s169 = sand.u32 %s22, 1
        %s170 = smul.addr %s169, 32
        %s171 = scalar_lea.vmem [#allocation2], %s170
        // Predicated region
        $region52: #{_lambda_.10} parent=50 // pred_check
          %p172 = pneg %p35
        $region53: #{_lambda_.10} parent=50 // pred_check_branch
          %174 = sbr.rel (%p172) target = $region55
        $region54: #{_lambda_.10} parent=50 // pred_region
          _
        $region55: #{_lambda_.10} parent=50 // pred_fallthru
          _
        %s175 = sand.u32 %s22, 1
        %s176 = sand.u32 %s22, 1
        %s177 = smul.addr %s176, 32
        %s178 = scalar_lea.vmem [#allocation2], %s177
        %p179 = pneg %p35
        %p180 = pneg %p32
        %p181 = pneg %p56
        %p182 = pneg %p53
        %p183 = pneg %p77
        %p184 = pneg %p74
        %p185 = pneg %p103
        %p186 = pneg %p100
        %s187 = sand.u32 %s90, 1
        %s188 = sand.u32 %s90, 1
        %s189 = smul.addr %s188, 32
        %s190 = scalar_lea.vmem [#allocation3], %s189
        %s191 = smul.u32 2, %s14
        %s192 = smul.u32 2, %s14
        %v193 = vld [vmem:[%s171] sm:$0xff]
        %v194 = vld [vmem:[%s171 + $0x8] sm:$0xff]
        %v195 = vld [vmem:[%s171 + $0x10] sm:$0xff]
        %v196 = vld [vmem:[%s171 + $0x18] sm:$0xff]
        %v197 = vld [vmem:[%s1] sm:$0xff]
        %v198 = vld [vmem:[%s1 + $0x8] sm:$0xff]
        %200 = vset.pattern.permute.xlu0 0
        %201 = vperm.xlu0 %200, %v197
        %v202 = vpop.permute.xlu0 %201
        %205 = vset.pattern.permute.xlu0 0
        %206 = vperm.xlu0 %205, %v198
        %v207 = vpop.permute.xlu0 %206
        %v209 = vmul.f32 %v193, %v202
        %v210 = vmul.f32 %v194, %v202
        %v211 = vmul.f32 %v195, %v207
        %v212 = vmul.f32 %v196, %v207
        %v213 = vld [vmem:[%s2] sm:$0xff]
        %v214 = vld [vmem:[%s2 + $0x8] sm:$0xff]
        %216 = vset.pattern.permute.xlu0 0
        %217 = vperm.xlu0 %216, %v213
        %v218 = vpop.permute.xlu0 %217
        %221 = vset.pattern.permute.xlu0 0
        %222 = vperm.xlu0 %221, %v214
        %v223 = vpop.permute.xlu0 %222
        %v225 = vadd.f32 %v209, %v218
        %v226 = vadd.f32 %v210, %v218
        %v227 = vadd.f32 %v211, %v223
        %v228 = vadd.f32 %v212, %v223
        %vm229 = vcmp.ge.f32.partialorder %v225, 0.0
        %vm230 = vcmp.ge.f32.partialorder %v226, 0.0
        %vm231 = vcmp.ge.f32.partialorder %v227, 0.0
        %vm232 = vcmp.ge.f32.partialorder %v228, 0.0
        %v233 = vmul.f32 %v225, 0.2
        %v234 = vmul.f32 %v226, 0.2
        %v235 = vmul.f32 %v227, 0.2
        %v236 = vmul.f32 %v228, 0.2
        %v237 = vsel %vm229, %v225, %v233
        %v238 = vsel %vm230, %v226, %v234
        %v239 = vsel %vm231, %v227, %v235
        %v240 = vsel %vm232, %v228, %v236
        %241 = vst [vmem:[%s190] sm:$0xff] %v237
        %242 = vst [vmem:[%s190 + $0x8] sm:$0xff] %v238
        %243 = vst [vmem:[%s190 + $0x10] sm:$0xff] %v239
        %244 = vst [vmem:[%s190 + $0x18] sm:$0xff] %v240
        %s245 = sand.u32 %s90, 1
        %s246 = sand.u32 %s90, 1
        %s247 = smul.addr %s246, 32
        %s248 = scalar_lea.vmem [#allocation3], %s247
        // Predicated region
        $region56: #{_lambda_.10} parent=50 // pred_check
          %p249 = pneg %p100
        $region57: #{_lambda_.10} parent=50 // pred_check_branch
          %251 = sbr.rel (%p249) target = $region59
        $region58: #{_lambda_.10} parent=50 // pred_region
          %s252 = smul.u32 2, %s14
          %s253 = smul.addr %s252, 8
          %s254 = scalar_lea.vmem %s3, %s253
          // Predicated region
          $region60: #{_lambda_.10} parent=58 // pred_check
            _
          $region61: #{_lambda_.10} parent=58 // pred_check_branch
            %256 = sbr.rel (0) target = $region63
          $region62: #{_lambda_.10} parent=58 // pred_region
            // Predicated region
            $region64: #{_lambda_.10} parent=62 // pred_check
              _
            $region65: #{_lambda_.10} parent=62 // pred_check_branch
              %258 = sbr.rel (0) target = $region67
            $region66: #{_lambda_.10} parent=62 // pred_region
              loop: start=0, step=1, limit=1
              $region68: #{_lambda_.10} parent=66 // loop_pre_header
                _
              $region69: #{_lambda_.10} parent=66 // loop_header
                %s260 = sphi 0, %s264
                %p261 = scmp.ge.s32.totalorder %s260, 1
                %s265 = sphi %s248, %s248
                %s266 = sphi %s254, %s254
              $region70: #{_lambda_.10} parent=66 // loop_header_branch
                %263 = sbr.rel (%p261) target = $region74
              $region71: #{_lambda_.10} parent=66 // loop_body
                %v267 = vld [vmem:[%s265] sm:$0xff]
                %268 = vst [vmem:[%s266] sm:$0xff] %v267
                %v269 = vld [vmem:[%s265 + $0x8] sm:$0xff]
                %270 = vst [vmem:[%s266 + $0x8] sm:$0xff] %v269
                %v271 = vld [vmem:[%s265 + $0x10] sm:$0xff]
                %272 = vst [vmem:[%s266 + $0x20] sm:$0xff] %v271
                %v273 = vld [vmem:[%s265 + $0x18] sm:$0xff]
                %274 = vst [vmem:[%s266 + $0x28] sm:$0xff] %v273
              $region72: #{_lambda_.10} parent=66 // loop_footer
                %s264 = sadd.s32 1, %s260
              $region73: #{_lambda_.10} parent=66 // loop_footer_branch
                %259 = sbr.rel target = $region69
              $region74: #{_lambda_.10} parent=66 // loop_exit
                _
            $region67: #{_lambda_.10} parent=62 // pred_fallthru
              _
            // Predicated region
            $region75: #{_lambda_.10} parent=62 // pred_check
              _
            $region76: #{_lambda_.10} parent=62 // pred_check_branch
              %276 = sbr.rel target = $region78
            $region77: #{_lambda_.10} parent=62 // pred_region
              _
            $region78: #{_lambda_.10} parent=62 // pred_fallthru
              _
          $region63: #{_lambda_.10} parent=58 // pred_fallthru
            _
          %277 = vnop
        $region59: #{_lambda_.10} parent=50 // pred_fallthru
          _
      $region51: #{_lambda_.10} parent=5 // pred_fallthru
        _
      %p278 = scmp.le.s32.totalorder 2, %s9
      // Predicated region
      $region79: #{_lambda_.10} parent=5 // pred_check
        %p279 = pneg %p278
      $region80: #{_lambda_.10} parent=5 // pred_check_branch
        %281 = sbr.rel (%p279) target = $region82
      $region81: #{_lambda_.10} parent=5 // pred_region
        %s282 = ssub.s32 %s9, 2
        // Predicated region
        $region83: #{_lambda_.10} parent=81 // pred_check
          %p283 = pneg %p106
        $region84: #{_lambda_.10} parent=81 // pred_check_branch
          %285 = sbr.rel (%p283) target = $region86
        $region85: #{_lambda_.10} parent=81 // pred_region
          %s286 = sand.u32 %s91, 1
          %s287 = sand.u32 %s91, 1
          %s288 = smul.addr %s287, 32
          %s289 = scalar_lea.vmem [#allocation3], %s288
        $region86: #{_lambda_.10} parent=81 // pred_fallthru
          _
      $region82: #{_lambda_.10} parent=5 // pred_fallthru
        _
    $region6: #{_lambda_.10} parent=1 // loop_footer
      %s13 = sadd.s32 1, %s9
    $region7: #{_lambda_.10} parent=1 // loop_footer_branch
      %8 = sbr.rel target = $region3
    $region8: #{_lambda_.10} parent=1 // loop_exit
      _

// kernel: _lambda_.11
$region0: #{_lambda_.11}
  #allocation0 [shape = 'u32[]', space=smem, size = 0x4, offset = 0x4, fixed_abs, tag = 'smem constant byte address 0x4 - core index']
  #allocation1 [shape = 'u32[144,128]{1,0:T(1,128)}', space=vmem, size = 0x12000, scoped, tag = 'internal scratch']
  %s0 = inlined_call_operand.vmem [shape: bf16[32,256], index: 0, kind: input, shape index: {}]
  %s1 = inlined_call_operand.vmem [shape: bf16[256,128], index: 1, kind: input, shape index: {}]
  %s2 = inlined_call_operand.vmem [shape: f32[32,128], index: 2, kind: output, shape index: {0}]
  %s3 = inlined_call_operand.vmem [shape: f32[32,1], index: 3, kind: output, shape index: {1}]
  %s4 = inlined_call_operand.vmem [shape: f32[32,1], index: 4, kind: output, shape index: {2}]
  %5 = xla_tuple %s2, %s3, %s4
  %s6 = sld [smem:[#allocation0]]
  $region38: #{_lambda_.11} parent=0
    _
  %s8 = ssub.s32 1, %s6
  %s9 = scalar_select 0, %s8, %s6
  // Predicated region
  $region2: #{_lambda_.11} parent=0 // pred_check
    _
  $region3: #{_lambda_.11} parent=0 // pred_check_branch
    %11 = sbr.rel (0) target = $region5
  $region4: #{_lambda_.11} parent=0 // pred_region
    _
  $region5: #{_lambda_.11} parent=0 // pred_fallthru
    _
  // Predicated region
  $region6: #{_lambda_.11} parent=0 // pred_check
    _
  $region7: #{_lambda_.11} parent=0 // pred_check_branch
    %13 = sbr.rel (0) target = $region9
  $region8: #{_lambda_.11} parent=0 // pred_region
    _
  $region9: #{_lambda_.11} parent=0 // pred_fallthru
    _
  %v15 = vld [vmem:[%s0] sm:$0xff]
  %v16 = vld [vmem:[%s0 + $0x8] sm:$0xff]
  %v17 = vld [vmem:[%s0 + $0x10] sm:$0xff]
  %v18 = vld [vmem:[%s0 + $0x18] sm:$0xff]
  %v19 = vld [vmem:[%s1] sm:$0xf]
  %v20 = vld [vmem:[%s1 + $0x4] sm:$0xf]
  %v21 = vld [vmem:[%s1 + $0x8] sm:$0xf]
  %v22 = vld [vmem:[%s1 + $0xc] sm:$0xf]
  %v23 = vld [vmem:[%s1 + $0x10] sm:$0xf]
  %v24 = vld [vmem:[%s1 + $0x14] sm:$0xf]
  %v25 = vld [vmem:[%s1 + $0x18] sm:$0xf]
  %v26 = vld [vmem:[%s1 + $0x1c] sm:$0xf]
  %v27 = vld [vmem:[%s1 + $0x20] sm:$0xf]
  %v28 = vld [vmem:[%s1 + $0x24] sm:$0xf]
  %v29 = vld [vmem:[%s1 + $0x28] sm:$0xf]
  %v30 = vld [vmem:[%s1 + $0x2c] sm:$0xf]
  %v31 = vld [vmem:[%s1 + $0x30] sm:$0xf]
  %v32 = vld [vmem:[%s1 + $0x34] sm:$0xf]
  %v33 = vld [vmem:[%s1 + $0x38] sm:$0xf]
  %v34 = vld [vmem:[%s1 + $0x3c] sm:$0xf]
  %v35 = vld [vmem:[%s1 + $0x40] sm:$0xf]
  %v36 = vld [vmem:[%s1 + $0x44] sm:$0xf]
  %v37 = vld [vmem:[%s1 + $0x48] sm:$0xf]
  %v38 = vld [vmem:[%s1 + $0x4c] sm:$0xf]
  %v39 = vld [vmem:[%s1 + $0x50] sm:$0xf]
  %v40 = vld [vmem:[%s1 + $0x54] sm:$0xf]
  %v41 = vld [vmem:[%s1 + $0x58] sm:$0xf]
  %v42 = vld [vmem:[%s1 + $0x5c] sm:$0xf]
  %v43 = vld [vmem:[%s1 + $0x60] sm:$0xf]
  %v44 = vld [vmem:[%s1 + $0x64] sm:$0xf]
  %v45 = vld [vmem:[%s1 + $0x68] sm:$0xf]
  %v46 = vld [vmem:[%s1 + $0x6c] sm:$0xf]
  %v47 = vld [vmem:[%s1 + $0x70] sm:$0xf]
  %v48 = vld [vmem:[%s1 + $0x74] sm:$0xf]
  %v49 = vld [vmem:[%s1 + $0x78] sm:$0xf]
  %v50 = vld [vmem:[%s1 + $0x7c] sm:$0xf]
  %v55 = vunpack.c.l.b16 %v15
  %v56 = vunpack.c.h.b16 %v15
  %v57 = vunpack.c.l.b16 %v16
  %v58 = vunpack.c.h.b16 %v16
  %v59 = vunpack.c.l.b16 %v17
  %v60 = vunpack.c.h.b16 %v17
  %v61 = vunpack.c.l.b16 %v18
  %v62 = vunpack.c.h.b16 %v18
  %v63 = vpack.c.b16 %v57, %v55
  %v64 = vpack.c.b16 %v58, %v56
  %v65 = vpack.c.b16 %v61, %v59
  %v66 = vpack.c.b16 %v62, %v60
  %v103 = vunpack.c.l.b16 %v19
  %v104 = vunpack.c.l.b16 %v20
  %v105 = vunpack.c.l.b16 %v21
  %v106 = vunpack.c.l.b16 %v22
  %v107 = vunpack.c.l.b16 %v23
  %v108 = vunpack.c.l.b16 %v24
  %v109 = vunpack.c.l.b16 %v25
  %v110 = vunpack.c.l.b16 %v26
  %v111 = vunpack.c.l.b16 %v27
  %v112 = vunpack.c.l.b16 %v28
  %v113 = vunpack.c.l.b16 %v29
  %v114 = vunpack.c.l.b16 %v30
  %v115 = vunpack.c.l.b16 %v31
  %v116 = vunpack.c.l.b16 %v32
  %v117 = vunpack.c.l.b16 %v33
  %v118 = vunpack.c.l.b16 %v34
  %v119 = vunpack.c.l.b16 %v35
  %v120 = vunpack.c.l.b16 %v36
  %v121 = vunpack.c.l.b16 %v37
  %v122 = vunpack.c.l.b16 %v38
  %v123 = vunpack.c.l.b16 %v39
  %v124 = vunpack.c.l.b16 %v40
  %v125 = vunpack.c.l.b16 %v41
  %v126 = vunpack.c.l.b16 %v42
  %v127 = vunpack.c.l.b16 %v43
  %v128 = vunpack.c.l.b16 %v44
  %v129 = vunpack.c.l.b16 %v45
  %v130 = vunpack.c.l.b16 %v46
  %v131 = vunpack.c.l.b16 %v47
  %v132 = vunpack.c.l.b16 %v48
  %v133 = vunpack.c.l.b16 %v49
  %v134 = vunpack.c.l.b16 %v50
  %v135 = vpack.c.b16 %v104, %v103
  %v136 = vpack.c.b16 %v106, %v105
  %v137 = vpack.c.b16 %v108, %v107
  %v138 = vpack.c.b16 %v110, %v109
  %v139 = vpack.c.b16 %v112, %v111
  %v140 = vpack.c.b16 %v114, %v113
  %v141 = vpack.c.b16 %v116, %v115
  %v142 = vpack.c.b16 %v118, %v117
  %v143 = vpack.c.b16 %v120, %v119
  %v144 = vpack.c.b16 %v122, %v121
  %v145 = vpack.c.b16 %v124, %v123
  %v146 = vpack.c.b16 %v126, %v125
  %v147 = vpack.c.b16 %v128, %v127
  %v148 = vpack.c.b16 %v130, %v129
  %v149 = vpack.c.b16 %v132, %v131
  %v150 = vpack.c.b16 %v134, %v133
  %167 = vmatprep.subr.bf16.mxu0 0
  %168 = vmatpush1.bf16.msra.mxu0 %v135
  %169 = vmatprep.subr.bf16.mxu0 0
  %170 = vmatpush1.bf16.msra.mxu0 %v136
  %171 = vmatprep.subr.bf16.mxu0 0
  %172 = vmatpush1.bf16.msra.mxu0 %v137
  %173 = vmatprep.subr.bf16.mxu0 0
  %174 = vmatpush1.bf16.msra.mxu0 %v138
  %175 = vmatprep.subr.bf16.mxu0 0
  %176 = vmatpush1.bf16.msra.mxu0 %v139
  %177 = vmatprep.subr.bf16.mxu0 0
  %178 = vmatpush1.bf16.msra.mxu0 %v140
  %179 = vmatprep.subr.bf16.mxu0 0
  %180 = vmatpush1.bf16.msra.mxu0 %v141
  %181 = vmatprep.subr.bf16.mxu0 0
  %182 = vmatpush1.bf16.msra.mxu0 %v142
  %183 = vmatprep.subr.bf16.mxu0 0
  %184 = vmatpush1.bf16.msra.mxu0 %v143
  %185 = vmatprep.subr.bf16.mxu0 0
  %186 = vmatpush1.bf16.msra.mxu0 %v144
  %187 = vmatprep.subr.bf16.mxu0 0
  %188 = vmatpush1.bf16.msra.mxu0 %v145
  %189 = vmatprep.subr.bf16.mxu0 0
  %190 = vmatpush1.bf16.msra.mxu0 %v146
  %191 = vmatprep.subr.bf16.mxu0 0
  %192 = vmatpush1.bf16.msra.mxu0 %v147
  %193 = vmatprep.subr.bf16.mxu0 0
  %194 = vmatpush1.bf16.msra.mxu0 %v148
  %195 = vmatprep.subr.bf16.mxu0 0
  %196 = vmatpush1.bf16.msra.mxu0 %v149
  %197 = vmatprep.subr.bf16.mxu0 0
  %198 = vmatpush1.bf16.msra.mxu0 %v150
  %199 = vmatprep.mubr.bf16.mxu0 %v64
  %200 = vmatmul.mubr.bf16.gmra.mrb[0].mxu0 %v63
  %v201 = vpop.f32.mrb[0].mxu0
  %v202 = vadd.f32 0.0, %v201
  %v203 = vpop.f32.mrb[0].mxu0
  %v204 = vpop.f32.mrb[0].mxu0
  %v205 = vadd.f32 0.0, %v204
  %v206 = vpop.f32.mrb[0].mxu0
  %207 = vmatprep.mubr.bf16.mxu0 %v66
  %208 = vmatmul.mubr.bf16.gmra.mrb[0].mxu0 %v65
  %v209 = vpop.f32.mrb[0].mxu0
  %v210 = vadd.f32 0.0, %v209
  %v211 = vpop.f32.mrb[0].mxu0
  %v212 = vpop.f32.mrb[0].mxu0
  %v213 = vadd.f32 0.0, %v212
  %v214 = vpop.f32.mrb[0].mxu0
  %215 = vdwg.mxu0
  %216 = vst [vmem:[%s2] sm:$0xff] %v202
  %217 = vst [vmem:[%s2 + $0x8] sm:$0xff] %v205
  %218 = vst [vmem:[%s2 + $0x10] sm:$0xff] %v210
  %219 = vst [vmem:[%s2 + $0x18] sm:$0xff] %v213
  %p220 = scmp.eq.s32.totalorder 0, 0
  // Predicated region
  $region10: #{_lambda_.11} parent=0 // pred_check
    %p221 = pneg %p220
  $region11: #{_lambda_.11} parent=0 // pred_check_branch
    %223 = sbr.rel (%p221) target = $region13
  $region12: #{_lambda_.11} parent=0 // pred_region
    %vm224 = vcmask 7168
    %225 = vst.msk [vmem:[%s3] sm:$0xff] %vm224, 0.0
    %226 = vst.msk [vmem:[%s3 + $0x8] sm:$0xff] %vm224, 0.0
    %227 = vst.msk [vmem:[%s3 + $0x10] sm:$0xff] %vm224, 0.0
    %228 = vst.msk [vmem:[%s3 + $0x18] sm:$0xff] %vm224, 0.0
    %229 = vst.msk [vmem:[%s4] sm:$0xff] %vm224, 0.0
    %230 = vst.msk [vmem:[%s4 + $0x8] sm:$0xff] %vm224, 0.0
    %231 = vst.msk [vmem:[%s4 + $0x10] sm:$0xff] %vm224, 0.0
    %232 = vst.msk [vmem:[%s4 + $0x18] sm:$0xff] %vm224, 0.0
  $region13: #{_lambda_.11} parent=0 // pred_fallthru
    _
  %v233 = vld [vmem:[%s3] sm:$0xff]
  %v234 = vld [vmem:[%s3 + $0x8] sm:$0xff]
  %v235 = vld [vmem:[%s3 + $0x10] sm:$0xff]
  %v236 = vld [vmem:[%s3 + $0x18] sm:$0xff]
  %237 = vadd.xlane.f32.xlu0 %v202
  %v238 = vpop.xlane.xlu0 %237
  %239 = vadd.xlane.f32.xlu0 %v205
  %v240 = vpop.xlane.xlu0 %239
  %241 = vadd.xlane.f32.xlu0 %v210
  %v242 = vpop.xlane.xlu0 %241
  %243 = vadd.xlane.f32.xlu0 %v213
  %v244 = vpop.xlane.xlu0 %243
  %v245 = vadd.f32 %v233, %v238
  %v246 = vadd.f32 %v234, %v240
  %v247 = vadd.f32 %v235, %v242
  %v248 = vadd.f32 %v236, %v244
  %vm249 = vcmask 7168
  %250 = vst.msk [vmem:[%s3] sm:$0xff] %vm249, %v245
  %251 = vst.msk [vmem:[%s3 + $0x8] sm:$0xff] %vm249, %v246
  %252 = vst.msk [vmem:[%s3 + $0x10] sm:$0xff] %vm249, %v247
  %253 = vst.msk [vmem:[%s3 + $0x18] sm:$0xff] %vm249, %v248
  %v254 = vld [vmem:[%s4] sm:$0xff]
  %v255 = vld [vmem:[%s4 + $0x8] sm:$0xff]
  %v256 = vld [vmem:[%s4 + $0x10] sm:$0xff]
  %v257 = vld [vmem:[%s4 + $0x18] sm:$0xff]
  %v258 = vmul.f32 %v202, %v202
  %v259 = vmul.f32 %v205, %v205
  %v260 = vmul.f32 %v210, %v210
  %v261 = vmul.f32 %v213, %v213
  %262 = vadd.xlane.f32.xlu0 %v258
  %v263 = vpop.xlane.xlu0 %262
  %264 = vadd.xlane.f32.xlu0 %v259
  %v265 = vpop.xlane.xlu0 %264
  %266 = vadd.xlane.f32.xlu0 %v260
  %v267 = vpop.xlane.xlu0 %266
  %268 = vadd.xlane.f32.xlu0 %v261
  %v269 = vpop.xlane.xlu0 %268
  %v270 = vadd.f32 %v254, %v263
  %v271 = vadd.f32 %v255, %v265
  %v272 = vadd.f32 %v256, %v267
  %v273 = vadd.f32 %v257, %v269
  %274 = vst.msk [vmem:[%s4] sm:$0xff] %vm249, %v270
  %275 = vst.msk [vmem:[%s4 + $0x8] sm:$0xff] %vm249, %v271
  %276 = vst.msk [vmem:[%s4 + $0x10] sm:$0xff] %vm249, %v272
  %277 = vst.msk [vmem:[%s4 + $0x18] sm:$0xff] %vm249, %v273
  // Predicated region
  $region14: #{_lambda_.11} parent=0 // pred_check
    _
  $region15: #{_lambda_.11} parent=0 // pred_check_branch
    %279 = sbr.rel (0) target = $region17
  $region16: #{_lambda_.11} parent=0 // pred_region
    _
  $region17: #{_lambda_.11} parent=0 // pred_fallthru
    _
  // Predicated region
  $region18: #{_lambda_.11} parent=0 // pred_check
    _
  $region19: #{_lambda_.11} parent=0 // pred_check_branch
    %281 = sbr.rel (0) target = $region21
  $region20: #{_lambda_.11} parent=0 // pred_region
    _
  $region21: #{_lambda_.11} parent=0 // pred_fallthru
    _
  // Predicated region
  $region22: #{_lambda_.11} parent=0 // pred_check
    _
  $region23: #{_lambda_.11} parent=0 // pred_check_branch
    %283 = sbr.rel (0) target = $region25
  $region24: #{_lambda_.11} parent=0 // pred_region
    _
  $region25: #{_lambda_.11} parent=0 // pred_fallthru
    _
  // Predicated region
  $region26: #{_lambda_.11} parent=0 // pred_check
    _
  $region27: #{_lambda_.11} parent=0 // pred_check_branch
    %285 = sbr.rel (0) target = $region29
  $region28: #{_lambda_.11} parent=0 // pred_region
    _
  $region29: #{_lambda_.11} parent=0 // pred_fallthru
    _
  // Predicated region
  $region30: #{_lambda_.11} parent=0 // pred_check
    _
  $region31: #{_lambda_.11} parent=0 // pred_check_branch
    %287 = sbr.rel (0) target = $region33
  $region32: #{_lambda_.11} parent=0 // pred_region
    _
  $region33: #{_lambda_.11} parent=0 // pred_fallthru
    _
  // Predicated region
  $region34: #{_lambda_.11} parent=0 // pred_check
    _
  $region35: #{_lambda_.11} parent=0 // pred_check_branch
    %289 = sbr.rel (0) target = $region37
  $region36: #{_lambda_.11} parent=0 // pred_region
    _
  $region37: #{_lambda_.11} parent=0 // pred_fallthru
    _

// kernel: _lambda_.12
$region0: #{_lambda_.12}
  #allocation0 [shape = 'u32[]', space=smem, size = 0x4, offset = 0x4, fixed_abs, tag = 'smem constant byte address 0x4 - core index']
  #allocation1 [shape = 'u32[144,128]{1,0:T(1,128)}', space=vmem, size = 0x12000, scoped, tag = 'internal scratch']
  %s0 = inlined_call_operand.vmem [shape: f32[32,128], index: 0, kind: input, shape index: {}]
  %s1 = inlined_call_operand.vmem [shape: f32[32,1], index: 1, kind: input, shape index: {}]
  %s2 = inlined_call_operand.vmem [shape: f32[32,1], index: 2, kind: input, shape index: {}]
  %s3 = inlined_call_operand.vmem [shape: f32[32,128], index: 3, kind: output, shape index: {}]
  %s4 = sld [smem:[#allocation0]]
  $region22: #{_lambda_.12} parent=0
    _
  %s6 = ssub.s32 1, %s4
  %s7 = scalar_select 0, %s6, %s4
  // Predicated region
  $region2: #{_lambda_.12} parent=0 // pred_check
    _
  $region3: #{_lambda_.12} parent=0 // pred_check_branch
    %9 = sbr.rel (0) target = $region5
  $region4: #{_lambda_.12} parent=0 // pred_region
    _
  $region5: #{_lambda_.12} parent=0 // pred_fallthru
    _
  // Predicated region
  $region6: #{_lambda_.12} parent=0 // pred_check
    _
  $region7: #{_lambda_.12} parent=0 // pred_check_branch
    %11 = sbr.rel (0) target = $region9
  $region8: #{_lambda_.12} parent=0 // pred_region
    _
  $region9: #{_lambda_.12} parent=0 // pred_fallthru
    _
  // Predicated region
  $region10: #{_lambda_.12} parent=0 // pred_check
    _
  $region11: #{_lambda_.12} parent=0 // pred_check_branch
    %13 = sbr.rel (0) target = $region13
  $region12: #{_lambda_.12} parent=0 // pred_region
    _
  $region13: #{_lambda_.12} parent=0 // pred_fallthru
    _
  %v14 = vld [vmem:[%s0] sm:$0xff]
  %v15 = vld [vmem:[%s0 + $0x8] sm:$0xff]
  %v16 = vld [vmem:[%s0 + $0x10] sm:$0xff]
  %v17 = vld [vmem:[%s0 + $0x18] sm:$0xff]
  %v18 = vld [vmem:[%s1] sm:$0xff]
  %v19 = vld [vmem:[%s1 + $0x8] sm:$0xff]
  %v20 = vld [vmem:[%s1 + $0x10] sm:$0xff]
  %v21 = vld [vmem:[%s1 + $0x18] sm:$0xff]
  %23 = vset.pattern.permute.xlu0 0
  %24 = vperm.xlu0 %23, %v18
  %v25 = vpop.permute.xlu0 %24
  %28 = vset.pattern.permute.xlu0 0
  %29 = vperm.xlu0 %28, %v19
  %v30 = vpop.permute.xlu0 %29
  %33 = vset.pattern.permute.xlu0 0
  %34 = vperm.xlu0 %33, %v20
  %v35 = vpop.permute.xlu0 %34
  %38 = vset.pattern.permute.xlu0 0
  %39 = vperm.xlu0 %38, %v21
  %v40 = vpop.permute.xlu0 %39
  %v42 = vmul.f32 %v14, %v25
  %v43 = vmul.f32 %v15, %v30
  %v44 = vmul.f32 %v16, %v35
  %v45 = vmul.f32 %v17, %v40
  %v46 = vld [vmem:[%s2] sm:$0xff]
  %v47 = vld [vmem:[%s2 + $0x8] sm:$0xff]
  %v48 = vld [vmem:[%s2 + $0x10] sm:$0xff]
  %v49 = vld [vmem:[%s2 + $0x18] sm:$0xff]
  %51 = vset.pattern.permute.xlu0 0
  %52 = vperm.xlu0 %51, %v46
  %v53 = vpop.permute.xlu0 %52
  %56 = vset.pattern.permute.xlu0 0
  %57 = vperm.xlu0 %56, %v47
  %v58 = vpop.permute.xlu0 %57
  %61 = vset.pattern.permute.xlu0 0
  %62 = vperm.xlu0 %61, %v48
  %v63 = vpop.permute.xlu0 %62
  %66 = vset.pattern.permute.xlu0 0
  %67 = vperm.xlu0 %66, %v49
  %v68 = vpop.permute.xlu0 %67
  %v70 = vadd.f32 %v42, %v53
  %v71 = vadd.f32 %v43, %v58
  %v72 = vadd.f32 %v44, %v63
  %v73 = vadd.f32 %v45, %v68
  %vm74 = vcmp.ge.f32.partialorder %v70, 0.0
  %vm75 = vcmp.ge.f32.partialorder %v71, 0.0
  %vm76 = vcmp.ge.f32.partialorder %v72, 0.0
  %vm77 = vcmp.ge.f32.partialorder %v73, 0.0
  %v78 = vmul.f32 %v70, 0.2
  %v79 = vmul.f32 %v71, 0.2
  %v80 = vmul.f32 %v72, 0.2
  %v81 = vmul.f32 %v73, 0.2
  %v82 = vsel %vm74, %v70, %v78
  %v83 = vsel %vm75, %v71, %v79
  %v84 = vsel %vm76, %v72, %v80
  %v85 = vsel %vm77, %v73, %v81
  %86 = vst [vmem:[%s3] sm:$0xff] %v82
  %87 = vst [vmem:[%s3 + $0x8] sm:$0xff] %v83
  %88 = vst [vmem:[%s3 + $0x10] sm:$0xff] %v84
  %89 = vst [vmem:[%s3 + $0x18] sm:$0xff] %v85
  // Predicated region
  $region14: #{_lambda_.12} parent=0 // pred_check
    _
  $region15: #{_lambda_.12} parent=0 // pred_check_branch
    %91 = sbr.rel (0) target = $region17
  $region16: #{_lambda_.12} parent=0 // pred_region
    _
  $region17: #{_lambda_.12} parent=0 // pred_fallthru
    _
  // Predicated region
  $region18: #{_lambda_.12} parent=0 // pred_check
    _
  $region19: #{_lambda_.12} parent=0 // pred_check_branch
    %93 = sbr.rel (0) target = $region21
  $region20: #{_lambda_.12} parent=0 // pred_region
    _
  $region21: #{_lambda_.12} parent=0 // pred_fallthru
    _

// kernel: _lambda_.13
$region0: #{_lambda_.13}
  #allocation0 [shape = 'u32[]', space=smem, size = 0x4, offset = 0x4, fixed_abs, tag = 'smem constant byte address 0x4 - core index']
  #allocation1 [shape = 'u32[144,128]{1,0:T(1,128)}', space=vmem, size = 0x12000, scoped, tag = 'internal scratch']
  %s0 = inlined_call_operand.vmem [shape: bf16[64,512], index: 0, kind: input, shape index: {}]
  %s1 = inlined_call_operand.vmem [shape: bf16[512,98], index: 1, kind: input, shape index: {}]
  %s2 = inlined_call_operand.vmem [shape: f32[64,98], index: 2, kind: output, shape index: {0}]
  %s3 = inlined_call_operand.vmem [shape: f32[64,1], index: 3, kind: output, shape index: {1}]
  %s4 = inlined_call_operand.vmem [shape: f32[64,1], index: 4, kind: output, shape index: {2}]
  %5 = xla_tuple %s2, %s3, %s4
  %s6 = sld [smem:[#allocation0]]
  $region38: #{_lambda_.13} parent=0
    _
  %s8 = ssub.s32 1, %s6
  %s9 = scalar_select 0, %s8, %s6
  // Predicated region
  $region2: #{_lambda_.13} parent=0 // pred_check
    _
  $region3: #{_lambda_.13} parent=0 // pred_check_branch
    %11 = sbr.rel (0) target = $region5
  $region4: #{_lambda_.13} parent=0 // pred_region
    _
  $region5: #{_lambda_.13} parent=0 // pred_fallthru
    _
  // Predicated region
  $region6: #{_lambda_.13} parent=0 // pred_check
    _
  $region7: #{_lambda_.13} parent=0 // pred_check_branch
    %13 = sbr.rel (0) target = $region9
  $region8: #{_lambda_.13} parent=0 // pred_region
    _
  $region9: #{_lambda_.13} parent=0 // pred_fallthru
    _
  %v15 = vld [vmem:[%s0] sm:$0xff]
  %v16 = vld [vmem:[%s0 + $0x8] sm:$0xff]
  %v17 = vld [vmem:[%s0 + $0x10] sm:$0xff]
  %v18 = vld [vmem:[%s0 + $0x18] sm:$0xff]
  %v19 = vld [vmem:[%s0 + $0x20] sm:$0xff]
  %v20 = vld [vmem:[%s0 + $0x28] sm:$0xff]
  %v21 = vld [vmem:[%s0 + $0x30] sm:$0xff]
  %v22 = vld [vmem:[%s0 + $0x38] sm:$0xff]
  %v23 = vld [vmem:[%s0 + $0x40] sm:$0xff]
  %v24 = vld [vmem:[%s0 + $0x48] sm:$0xff]
  %v25 = vld [vmem:[%s0 + $0x50] sm:$0xff]
  %v26 = vld [vmem:[%s0 + $0x58] sm:$0xff]
  %v27 = vld [vmem:[%s0 + $0x60] sm:$0xff]
  %v28 = vld [vmem:[%s0 + $0x68] sm:$0xff]
  %v29 = vld [vmem:[%s0 + $0x70] sm:$0xff]
  %v30 = vld [vmem:[%s0 + $0x78] sm:$0xff]
  %v31 = vld [vmem:[%s1] sm:$0xf]
  %v32 = vld [vmem:[%s1 + $0x4] sm:$0xf]
  %v33 = vld [vmem:[%s1 + $0x8] sm:$0xf]
  %v34 = vld [vmem:[%s1 + $0xc] sm:$0xf]
  %v35 = vld [vmem:[%s1 + $0x10] sm:$0xf]
  %v36 = vld [vmem:[%s1 + $0x14] sm:$0xf]
  %v37 = vld [vmem:[%s1 + $0x18] sm:$0xf]
  %v38 = vld [vmem:[%s1 + $0x1c] sm:$0xf]
  %v39 = vld [vmem:[%s1 + $0x20] sm:$0xf]
  %v40 = vld [vmem:[%s1 + $0x24] sm:$0xf]
  %v41 = vld [vmem:[%s1 + $0x28] sm:$0xf]
  %v42 = vld [vmem:[%s1 + $0x2c] sm:$0xf]
  %v43 = vld [vmem:[%s1 + $0x30] sm:$0xf]
  %v44 = vld [vmem:[%s1 + $0x34] sm:$0xf]
  %v45 = vld [vmem:[%s1 + $0x38] sm:$0xf]
  %v46 = vld [vmem:[%s1 + $0x3c] sm:$0xf]
  %v47 = vld [vmem:[%s1 + $0x40] sm:$0xf]
  %v48 = vld [vmem:[%s1 + $0x44] sm:$0xf]
  %v49 = vld [vmem:[%s1 + $0x48] sm:$0xf]
  %v50 = vld [vmem:[%s1 + $0x4c] sm:$0xf]
  %v51 = vld [vmem:[%s1 + $0x50] sm:$0xf]
  %v52 = vld [vmem:[%s1 + $0x54] sm:$0xf]
  %v53 = vld [vmem:[%s1 + $0x58] sm:$0xf]
  %v54 = vld [vmem:[%s1 + $0x5c] sm:$0xf]
  %v55 = vld [vmem:[%s1 + $0x60] sm:$0xf]
  %v56 = vld [vmem:[%s1 + $0x64] sm:$0xf]
  %v57 = vld [vmem:[%s1 + $0x68] sm:$0xf]
  %v58 = vld [vmem:[%s1 + $0x6c] sm:$0xf]
  %v59 = vld [vmem:[%s1 + $0x70] sm:$0xf]
  %v60 = vld [vmem:[%s1 + $0x74] sm:$0xf]
  %v61 = vld [vmem:[%s1 + $0x78] sm:$0xf]
  %v62 = vld [vmem:[%s1 + $0x7c] sm:$0xf]
  %v63 = vld [vmem:[%s1 + $0x80] sm:$0xf]
  %v64 = vld [vmem:[%s1 + $0x84] sm:$0xf]
  %v65 = vld [vmem:[%s1 + $0x88] sm:$0xf]
  %v66 = vld [vmem:[%s1 + $0x8c] sm:$0xf]
  %v67 = vld [vmem:[%s1 + $0x90] sm:$0xf]
  %v68 = vld [vmem:[%s1 + $0x94] sm:$0xf]
  %v69 = vld [vmem:[%s1 + $0x98] sm:$0xf]
  %v70 = vld [vmem:[%s1 + $0x9c] sm:$0xf]
  %v71 = vld [vmem:[%s1 + $0xa0] sm:$0xf]
  %v72 = vld [vmem:[%s1 + $0xa4] sm:$0xf]
  %v73 = vld [vmem:[%s1 + $0xa8] sm:$0xf]
  %v74 = vld [vmem:[%s1 + $0xac] sm:$0xf]
  %v75 = vld [vmem:[%s1 + $0xb0] sm:$0xf]
  %v76 = vld [vmem:[%s1 + $0xb4] sm:$0xf]
  %v77 = vld [vmem:[%s1 + $0xb8] sm:$0xf]
  %v78 = vld [vmem:[%s1 + $0xbc] sm:$0xf]
  %v79 = vld [vmem:[%s1 + $0xc0] sm:$0xf]
  %v80 = vld [vmem:[%s1 + $0xc4] sm:$0xf]
  %v81 = vld [vmem:[%s1 + $0xc8] sm:$0xf]
  %v82 = vld [vmem:[%s1 + $0xcc] sm:$0xf]
  %v83 = vld [vmem:[%s1 + $0xd0] sm:$0xf]
  %v84 = vld [vmem:[%s1 + $0xd4] sm:$0xf]
  %v85 = vld [vmem:[%s1 + $0xd8] sm:$0xf]
  %v86 = vld [vmem:[%s1 + $0xdc] sm:$0xf]
  %v87 = vld [vmem:[%s1 + $0xe0] sm:$0xf]
  %v88 = vld [vmem:[%s1 + $0xe4] sm:$0xf]
  %v89 = vld [vmem:[%s1 + $0xe8] sm:$0xf]
  %v90 = vld [vmem:[%s1 + $0xec] sm:$0xf]
  %v91 = vld [vmem:[%s1 + $0xf0] sm:$0xf]
  %v92 = vld [vmem:[%s1 + $0xf4] sm:$0xf]
  %v93 = vld [vmem:[%s1 + $0xf8] sm:$0xf]
  %v94 = vld [vmem:[%s1 + $0xfc] sm:$0xf]
  %v111 = vunpack.c.l.b16 %v15
  %v112 = vunpack.c.h.b16 %v15
  %v113 = vunpack.c.l.b16 %v16
  %v114 = vunpack.c.h.b16 %v16
  %v115 = vunpack.c.l.b16 %v17
  %v116 = vunpack.c.h.b16 %v17
  %v117 = vunpack.c.l.b16 %v18
  %v118 = vunpack.c.h.b16 %v18
  %v119 = vunpack.c.l.b16 %v19
  %v120 = vunpack.c.h.b16 %v19
  %v121 = vunpack.c.l.b16 %v20
  %v122 = vunpack.c.h.b16 %v20
  %v123 = vunpack.c.l.b16 %v21
  %v124 = vunpack.c.h.b16 %v21
  %v125 = vunpack.c.l.b16 %v22
  %v126 = vunpack.c.h.b16 %v22
  %v127 = vunpack.c.l.b16 %v23
  %v128 = vunpack.c.h.b16 %v23
  %v129 = vunpack.c.l.b16 %v24
  %v130 = vunpack.c.h.b16 %v24
  %v131 = vunpack.c.l.b16 %v25
  %v132 = vunpack.c.h.b16 %v25
  %v133 = vunpack.c.l.b16 %v26
  %v134 = vunpack.c.h.b16 %v26
  %v135 = vunpack.c.l.b16 %v27
  %v136 = vunpack.c.h.b16 %v27
  %v137 = vunpack.c.l.b16 %v28
  %v138 = vunpack.c.h.b16 %v28
  %v139 = vunpack.c.l.b16 %v29
  %v140 = vunpack.c.h.b16 %v29
  %v141 = vunpack.c.l.b16 %v30
  %v142 = vunpack.c.h.b16 %v30
  %v143 = vpack.c.b16 %v115, %v111
  %v144 = vpack.c.b16 %v116, %v112
  %v145 = vpack.c.b16 %v117, %v113
  %v146 = vpack.c.b16 %v118, %v114
  %v147 = vpack.c.b16 %v123, %v119
  %v148 = vpack.c.b16 %v124, %v120
  %v149 = vpack.c.b16 %v125, %v121
  %v150 = vpack.c.b16 %v126, %v122
  %v151 = vpack.c.b16 %v131, %v127
  %v152 = vpack.c.b16 %v132, %v128
  %v153 = vpack.c.b16 %v133, %v129
  %v154 = vpack.c.b16 %v134, %v130
  %v155 = vpack.c.b16 %v139, %v135
  %v156 = vpack.c.b16 %v140, %v136
  %v157 = vpack.c.b16 %v141, %v137
  %v158 = vpack.c.b16 %v142, %v138
  %v239 = vunpack.c.l.b16 %v31
  %v240 = vunpack.c.l.b16 %v32
  %v241 = vunpack.c.l.b16 %v33
  %v242 = vunpack.c.l.b16 %v34
  %v243 = vunpack.c.l.b16 %v35
  %v244 = vunpack.c.l.b16 %v36
  %v245 = vunpack.c.l.b16 %v37
  %v246 = vunpack.c.l.b16 %v38
  %v247 = vunpack.c.l.b16 %v39
  %v248 = vunpack.c.l.b16 %v40
  %v249 = vunpack.c.l.b16 %v41
  %v250 = vunpack.c.l.b16 %v42
  %v251 = vunpack.c.l.b16 %v43
  %v252 = vunpack.c.l.b16 %v44
  %v253 = vunpack.c.l.b16 %v45
  %v254 = vunpack.c.l.b16 %v46
  %v255 = vunpack.c.l.b16 %v47
  %v256 = vunpack.c.l.b16 %v48
  %v257 = vunpack.c.l.b16 %v49
  %v258 = vunpack.c.l.b16 %v50
  %v259 = vunpack.c.l.b16 %v51
  %v260 = vunpack.c.l.b16 %v52
  %v261 = vunpack.c.l.b16 %v53
  %v262 = vunpack.c.l.b16 %v54
  %v263 = vunpack.c.l.b16 %v55
  %v264 = vunpack.c.l.b16 %v56
  %v265 = vunpack.c.l.b16 %v57
  %v266 = vunpack.c.l.b16 %v58
  %v267 = vunpack.c.l.b16 %v59
  %v268 = vunpack.c.l.b16 %v60
  %v269 = vunpack.c.l.b16 %v61
  %v270 = vunpack.c.l.b16 %v62
  %v271 = vunpack.c.l.b16 %v63
  %v272 = vunpack.c.l.b16 %v64
  %v273 = vunpack.c.l.b16 %v65
  %v274 = vunpack.c.l.b16 %v66
  %v275 = vunpack.c.l.b16 %v67
  %v276 = vunpack.c.l.b16 %v68
  %v277 = vunpack.c.l.b16 %v69
  %v278 = vunpack.c.l.b16 %v70
  %v279 = vunpack.c.l.b16 %v71
  %v280 = vunpack.c.l.b16 %v72
  %v281 = vunpack.c.l.b16 %v73
  %v282 = vunpack.c.l.b16 %v74
  %v283 = vunpack.c.l.b16 %v75
  %v284 = vunpack.c.l.b16 %v76
  %v285 = vunpack.c.l.b16 %v77
  %v286 = vunpack.c.l.b16 %v78
  %v287 = vunpack.c.l.b16 %v79
  %v288 = vunpack.c.l.b16 %v80
  %v289 = vunpack.c.l.b16 %v81
  %v290 = vunpack.c.l.b16 %v82
  %v291 = vunpack.c.l.b16 %v83
  %v292 = vunpack.c.l.b16 %v84
  %v293 = vunpack.c.l.b16 %v85
  %v294 = vunpack.c.l.b16 %v86
  %v295 = vunpack.c.l.b16 %v87
  %v296 = vunpack.c.l.b16 %v88
  %v297 = vunpack.c.l.b16 %v89
  %v298 = vunpack.c.l.b16 %v90
  %v299 = vunpack.c.l.b16 %v91
  %v300 = vunpack.c.l.b16 %v92
  %v301 = vunpack.c.l.b16 %v93
  %v302 = vunpack.c.l.b16 %v94
  %v303 = vpack.c.b16 %v240, %v239
  %v304 = vpack.c.b16 %v242, %v241
  %v305 = vpack.c.b16 %v244, %v243
  %v306 = vpack.c.b16 %v246, %v245
  %v307 = vpack.c.b16 %v248, %v247
  %v308 = vpack.c.b16 %v250, %v249
  %v309 = vpack.c.b16 %v252, %v251
  %v310 = vpack.c.b16 %v254, %v253
  %v311 = vpack.c.b16 %v256, %v255
  %v312 = vpack.c.b16 %v258, %v257
  %v313 = vpack.c.b16 %v260, %v259
  %v314 = vpack.c.b16 %v262, %v261
  %v315 = vpack.c.b16 %v264, %v263
  %v316 = vpack.c.b16 %v266, %v265
  %v317 = vpack.c.b16 %v268, %v267
  %v318 = vpack.c.b16 %v270, %v269
  %v319 = vpack.c.b16 %v272, %v271
  %v320 = vpack.c.b16 %v274, %v273
  %v321 = vpack.c.b16 %v276, %v275
  %v322 = vpack.c.b16 %v278, %v277
  %v323 = vpack.c.b16 %v280, %v279
  %v324 = vpack.c.b16 %v282, %v281
  %v325 = vpack.c.b16 %v284, %v283
  %v326 = vpack.c.b16 %v286, %v285
  %v327 = vpack.c.b16 %v288, %v287
  %v328 = vpack.c.b16 %v290, %v289
  %v329 = vpack.c.b16 %v292, %v291
  %v330 = vpack.c.b16 %v294, %v293
  %v331 = vpack.c.b16 %v296, %v295
  %v332 = vpack.c.b16 %v298, %v297
  %v333 = vpack.c.b16 %v300, %v299
  %v334 = vpack.c.b16 %v302, %v301
  %367 = vmatprep.subr.bf16.mxu0 0
  %368 = vmatpush1.bf16.msra.mxu0 %v303
  %369 = vmatprep.subr.bf16.mxu0 0
  %370 = vmatpush1.bf16.msra.mxu0 %v304
  %371 = vmatprep.subr.bf16.mxu0 0
  %372 = vmatpush1.bf16.msra.mxu0 %v305
  %373 = vmatprep.subr.bf16.mxu0 0
  %374 = vmatpush1.bf16.msra.mxu0 %v306
  %375 = vmatprep.subr.bf16.mxu0 0
  %376 = vmatpush1.bf16.msra.mxu0 %v307
  %377 = vmatprep.subr.bf16.mxu0 0
  %378 = vmatpush1.bf16.msra.mxu0 %v308
  %379 = vmatprep.subr.bf16.mxu0 0
  %380 = vmatpush1.bf16.msra.mxu0 %v309
  %381 = vmatprep.subr.bf16.mxu0 0
  %382 = vmatpush1.bf16.msra.mxu0 %v310
  %383 = vmatprep.subr.bf16.mxu0 0
  %384 = vmatpush1.bf16.msra.mxu0 %v311
  %385 = vmatprep.subr.bf16.mxu0 0
  %386 = vmatpush1.bf16.msra.mxu0 %v312
  %387 = vmatprep.subr.bf16.mxu0 0
  %388 = vmatpush1.bf16.msra.mxu0 %v313
  %389 = vmatprep.subr.bf16.mxu0 0
  %390 = vmatpush1.bf16.msra.mxu0 %v314
  %391 = vmatprep.subr.bf16.mxu0 0
  %392 = vmatpush1.bf16.msra.mxu0 %v315
  %393 = vmatprep.subr.bf16.mxu0 0
  %394 = vmatpush1.bf16.msra.mxu0 %v316
  %395 = vmatprep.subr.bf16.mxu0 0
  %396 = vmatpush1.bf16.msra.mxu0 %v317
  %397 = vmatprep.subr.bf16.mxu0 0
  %398 = vmatpush1.bf16.msra.mxu0 %v318
  %399 = vmatprep.mubr.bf16.mxu0 %v144
  %400 = vmatmul.mubr.bf16.gmra.mrb[0].mxu0 %v143
  %v401 = vpop.f32.mrb[0].mxu0
  %v402 = vadd.f32 0.0, %v401
  %v403 = vpop.f32.mrb[0].mxu0
  %v404 = vpop.f32.mrb[0].mxu0
  %v405 = vadd.f32 0.0, %v404
  %v406 = vpop.f32.mrb[0].mxu0
  %407 = vmatprep.mubr.bf16.mxu0 %v148
  %408 = vmatmul.mubr.bf16.gmra.mrb[0].mxu0 %v147
  %v409 = vpop.f32.mrb[0].mxu0
  %v410 = vadd.f32 0.0, %v409
  %v411 = vpop.f32.mrb[0].mxu0
  %v412 = vpop.f32.mrb[0].mxu0
  %v413 = vadd.f32 0.0, %v412
  %v414 = vpop.f32.mrb[0].mxu0
  %415 = vmatprep.mubr.bf16.mxu0 %v152
  %416 = vmatmul.mubr.bf16.gmra.mrb[0].mxu0 %v151
  %v417 = vpop.f32.mrb[0].mxu0
  %v418 = vadd.f32 0.0, %v417
  %v419 = vpop.f32.mrb[0].mxu0
  %v420 = vpop.f32.mrb[0].mxu0
  %v421 = vadd.f32 0.0, %v420
  %v422 = vpop.f32.mrb[0].mxu0
  %423 = vmatprep.mubr.bf16.mxu0 %v156
  %424 = vmatmul.mubr.bf16.gmra.mrb[0].mxu0 %v155
  %v425 = vpop.f32.mrb[0].mxu0
  %v426 = vadd.f32 0.0, %v425
  %v427 = vpop.f32.mrb[0].mxu0
  %v428 = vpop.f32.mrb[0].mxu0
  %v429 = vadd.f32 0.0, %v428
  %v430 = vpop.f32.mrb[0].mxu0
  %431 = vdwg.mxu0
  %432 = vmatprep.subr.bf16.mxu0 0
  %433 = vmatpush1.bf16.msra.mxu0 %v319
  %434 = vmatprep.subr.bf16.mxu0 0
  %435 = vmatpush1.bf16.msra.mxu0 %v320
  %436 = vmatprep.subr.bf16.mxu0 0
  %437 = vmatpush1.bf16.msra.mxu0 %v321
  %438 = vmatprep.subr.bf16.mxu0 0
  %439 = vmatpush1.bf16.msra.mxu0 %v322
  %440 = vmatprep.subr.bf16.mxu0 0
  %441 = vmatpush1.bf16.msra.mxu0 %v323
  %442 = vmatprep.subr.bf16.mxu0 0
  %443 = vmatpush1.bf16.msra.mxu0 %v324
  %444 = vmatprep.subr.bf16.mxu0 0
  %445 = vmatpush1.bf16.msra.mxu0 %v325
  %446 = vmatprep.subr.bf16.mxu0 0
  %447 = vmatpush1.bf16.msra.mxu0 %v326
  %448 = vmatprep.subr.bf16.mxu0 0
  %449 = vmatpush1.bf16.msra.mxu0 %v327
  %450 = vmatprep.subr.bf16.mxu0 0
  %451 = vmatpush1.bf16.msra.mxu0 %v328
  %452 = vmatprep.subr.bf16.mxu0 0
  %453 = vmatpush1.bf16.msra.mxu0 %v329
  %454 = vmatprep.subr.bf16.mxu0 0
  %455 = vmatpush1.bf16.msra.mxu0 %v330
  %456 = vmatprep.subr.bf16.mxu0 0
  %457 = vmatpush1.bf16.msra.mxu0 %v331
  %458 = vmatprep.subr.bf16.mxu0 0
  %459 = vmatpush1.bf16.msra.mxu0 %v332
  %460 = vmatprep.subr.bf16.mxu0 0
  %461 = vmatpush1.bf16.msra.mxu0 %v333
  %462 = vmatprep.subr.bf16.mxu0 0
  %463 = vmatpush1.bf16.msra.mxu0 %v334
  %464 = vmatprep.mubr.bf16.mxu0 %v146
  %465 = vmatmul.mubr.bf16.gmra.mrb[0].mxu0 %v145
  %v466 = vpop.f32.mrb[0].mxu0
  %v467 = vadd.f32 %v402, %v466
  %v468 = vpop.f32.mrb[0].mxu0
  %v469 = vpop.f32.mrb[0].mxu0
  %v470 = vadd.f32 %v405, %v469
  %v471 = vpop.f32.mrb[0].mxu0
  %472 = vmatprep.mubr.bf16.mxu0 %v150
  %473 = vmatmul.mubr.bf16.gmra.mrb[0].mxu0 %v149
  %v474 = vpop.f32.mrb[0].mxu0
  %v475 = vadd.f32 %v410, %v474
  %v476 = vpop.f32.mrb[0].mxu0
  %v477 = vpop.f32.mrb[0].mxu0
  %v478 = vadd.f32 %v413, %v477
  %v479 = vpop.f32.mrb[0].mxu0
  %480 = vmatprep.mubr.bf16.mxu0 %v154
  %481 = vmatmul.mubr.bf16.gmra.mrb[0].mxu0 %v153
  %v482 = vpop.f32.mrb[0].mxu0
  %v483 = vadd.f32 %v418, %v482
  %v484 = vpop.f32.mrb[0].mxu0
  %v485 = vpop.f32.mrb[0].mxu0
  %v486 = vadd.f32 %v421, %v485
  %v487 = vpop.f32.mrb[0].mxu0
  %488 = vmatprep.mubr.bf16.mxu0 %v158
  %489 = vmatmul.mubr.bf16.gmra.mrb[0].mxu0 %v157
  %v490 = vpop.f32.mrb[0].mxu0
  %v491 = vadd.f32 %v426, %v490
  %v492 = vpop.f32.mrb[0].mxu0
  %v493 = vpop.f32.mrb[0].mxu0
  %v494 = vadd.f32 %v429, %v493
  %v495 = vpop.f32.mrb[0].mxu0
  %496 = vdwg.mxu0
  %vm497 = vcmask 801792
  %498 = vst.msk [vmem:[%s2] sm:$0xff] %vm497, %v467
  %499 = vst.msk [vmem:[%s2 + $0x8] sm:$0xff] %vm497, %v470
  %500 = vst.msk [vmem:[%s2 + $0x10] sm:$0xff] %vm497, %v475
  %501 = vst.msk [vmem:[%s2 + $0x18] sm:$0xff] %vm497, %v478
  %502 = vst.msk [vmem:[%s2 + $0x20] sm:$0xff] %vm497, %v483
  %503 = vst.msk [vmem:[%s2 + $0x28] sm:$0xff] %vm497, %v486
  %504 = vst.msk [vmem:[%s2 + $0x30] sm:$0xff] %vm497, %v491
  %505 = vst.msk [vmem:[%s2 + $0x38] sm:$0xff] %vm497, %v494
  %p506 = scmp.eq.s32.totalorder 0, 0
  // Predicated region
  $region10: #{_lambda_.13} parent=0 // pred_check
    %p507 = pneg %p506
  $region11: #{_lambda_.13} parent=0 // pred_check_branch
    %509 = sbr.rel (%p507) target = $region13
  $region12: #{_lambda_.13} parent=0 // pred_region
    %vm510 = vcmask 7168
    %511 = vst.msk [vmem:[%s3] sm:$0xff] %vm510, 0.0
    %512 = vst.msk [vmem:[%s3 + $0x8] sm:$0xff] %vm510, 0.0
    %513 = vst.msk [vmem:[%s3 + $0x10] sm:$0xff] %vm510, 0.0
    %514 = vst.msk [vmem:[%s3 + $0x18] sm:$0xff] %vm510, 0.0
    %515 = vst.msk [vmem:[%s3 + $0x20] sm:$0xff] %vm510, 0.0
    %516 = vst.msk [vmem:[%s3 + $0x28] sm:$0xff] %vm510, 0.0
    %517 = vst.msk [vmem:[%s3 + $0x30] sm:$0xff] %vm510, 0.0
    %518 = vst.msk [vmem:[%s3 + $0x38] sm:$0xff] %vm510, 0.0
    %519 = vst.msk [vmem:[%s4] sm:$0xff] %vm510, 0.0
    %520 = vst.msk [vmem:[%s4 + $0x8] sm:$0xff] %vm510, 0.0
    %521 = vst.msk [vmem:[%s4 + $0x10] sm:$0xff] %vm510, 0.0
    %522 = vst.msk [vmem:[%s4 + $0x18] sm:$0xff] %vm510, 0.0
    %523 = vst.msk [vmem:[%s4 + $0x20] sm:$0xff] %vm510, 0.0
    %524 = vst.msk [vmem:[%s4 + $0x28] sm:$0xff] %vm510, 0.0
    %525 = vst.msk [vmem:[%s4 + $0x30] sm:$0xff] %vm510, 0.0
    %526 = vst.msk [vmem:[%s4 + $0x38] sm:$0xff] %vm510, 0.0
  $region13: #{_lambda_.13} parent=0 // pred_fallthru
    _
  %v527 = vld [vmem:[%s3] sm:$0xff]
  %v528 = vld [vmem:[%s3 + $0x8] sm:$0xff]
  %v529 = vld [vmem:[%s3 + $0x10] sm:$0xff]
  %v530 = vld [vmem:[%s3 + $0x18] sm:$0xff]
  %v531 = vld [vmem:[%s3 + $0x20] sm:$0xff]
  %v532 = vld [vmem:[%s3 + $0x28] sm:$0xff]
  %v533 = vld [vmem:[%s3 + $0x30] sm:$0xff]
  %v534 = vld [vmem:[%s3 + $0x38] sm:$0xff]
  %v535 = vsel %vm497, %v467, 0.0
  %536 = vadd.xlane.f32.xlu0 %v535
  %v537 = vpop.xlane.xlu0 %536
  %v538 = vsel %vm497, %v470, 0.0
  %539 = vadd.xlane.f32.xlu0 %v538
  %v540 = vpop.xlane.xlu0 %539
  %v541 = vsel %vm497, %v475, 0.0
  %542 = vadd.xlane.f32.xlu0 %v541
  %v543 = vpop.xlane.xlu0 %542
  %v544 = vsel %vm497, %v478, 0.0
  %545 = vadd.xlane.f32.xlu0 %v544
  %v546 = vpop.xlane.xlu0 %545
  %v547 = vsel %vm497, %v483, 0.0
  %548 = vadd.xlane.f32.xlu0 %v547
  %v549 = vpop.xlane.xlu0 %548
  %v550 = vsel %vm497, %v486, 0.0
  %551 = vadd.xlane.f32.xlu0 %v550
  %v552 = vpop.xlane.xlu0 %551
  %v553 = vsel %vm497, %v491, 0.0
  %554 = vadd.xlane.f32.xlu0 %v553
  %v555 = vpop.xlane.xlu0 %554
  %v556 = vsel %vm497, %v494, 0.0
  %557 = vadd.xlane.f32.xlu0 %v556
  %v558 = vpop.xlane.xlu0 %557
  %v559 = vadd.f32 %v527, %v537
  %v560 = vadd.f32 %v528, %v540
  %v561 = vadd.f32 %v529, %v543
  %v562 = vadd.f32 %v530, %v546
  %v563 = vadd.f32 %v531, %v549
  %v564 = vadd.f32 %v532, %v552
  %v565 = vadd.f32 %v533, %v555
  %v566 = vadd.f32 %v534, %v558
  %vm567 = vcmask 7168
  %568 = vst.msk [vmem:[%s3] sm:$0xff] %vm567, %v559
  %569 = vst.msk [vmem:[%s3 + $0x8] sm:$0xff] %vm567, %v560
  %570 = vst.msk [vmem:[%s3 + $0x10] sm:$0xff] %vm567, %v561
  %571 = vst.msk [vmem:[%s3 + $0x18] sm:$0xff] %vm567, %v562
  %572 = vst.msk [vmem:[%s3 + $0x20] sm:$0xff] %vm567, %v563
  %573 = vst.msk [vmem:[%s3 + $0x28] sm:$0xff] %vm567, %v564
  %574 = vst.msk [vmem:[%s3 + $0x30] sm:$0xff] %vm567, %v565
  %575 = vst.msk [vmem:[%s3 + $0x38] sm:$0xff] %vm567, %v566
  %v576 = vld [vmem:[%s4] sm:$0xff]
  %v577 = vld [vmem:[%s4 + $0x8] sm:$0xff]
  %v578 = vld [vmem:[%s4 + $0x10] sm:$0xff]
  %v579 = vld [vmem:[%s4 + $0x18] sm:$0xff]
  %v580 = vld [vmem:[%s4 + $0x20] sm:$0xff]
  %v581 = vld [vmem:[%s4 + $0x28] sm:$0xff]
  %v582 = vld [vmem:[%s4 + $0x30] sm:$0xff]
  %v583 = vld [vmem:[%s4 + $0x38] sm:$0xff]
  %v584 = vmul.f32 %v467, %v467
  %v585 = vmul.f32 %v470, %v470
  %v586 = vmul.f32 %v475, %v475
  %v587 = vmul.f32 %v478, %v478
  %v588 = vmul.f32 %v483, %v483
  %v589 = vmul.f32 %v486, %v486
  %v590 = vmul.f32 %v491, %v491
  %v591 = vmul.f32 %v494, %v494
  %v592 = vsel %vm497, %v584, 0.0
  %593 = vadd.xlane.f32.xlu0 %v592
  %v594 = vpop.xlane.xlu0 %593
  %v595 = vsel %vm497, %v585, 0.0
  %596 = vadd.xlane.f32.xlu0 %v595
  %v597 = vpop.xlane.xlu0 %596
  %v598 = vsel %vm497, %v586, 0.0
  %599 = vadd.xlane.f32.xlu0 %v598
  %v600 = vpop.xlane.xlu0 %599
  %v601 = vsel %vm497, %v587, 0.0
  %602 = vadd.xlane.f32.xlu0 %v601
  %v603 = vpop.xlane.xlu0 %602
  %v604 = vsel %vm497, %v588, 0.0
  %605 = vadd.xlane.f32.xlu0 %v604
  %v606 = vpop.xlane.xlu0 %605
  %v607 = vsel %vm497, %v589, 0.0
  %608 = vadd.xlane.f32.xlu0 %v607
  %v609 = vpop.xlane.xlu0 %608
  %v610 = vsel %vm497, %v590, 0.0
  %611 = vadd.xlane.f32.xlu0 %v610
  %v612 = vpop.xlane.xlu0 %611
  %v613 = vsel %vm497, %v591, 0.0
  %614 = vadd.xlane.f32.xlu0 %v613
  %v615 = vpop.xlane.xlu0 %614
  %v616 = vadd.f32 %v576, %v594
  %v617 = vadd.f32 %v577, %v597
  %v618 = vadd.f32 %v578, %v600
  %v619 = vadd.f32 %v579, %v603
  %v620 = vadd.f32 %v580, %v606
  %v621 = vadd.f32 %v581, %v609
  %v622 = vadd.f32 %v582, %v612
  %v623 = vadd.f32 %v583, %v615
  %624 = vst.msk [vmem:[%s4] sm:$0xff] %vm567, %v616
  %625 = vst.msk [vmem:[%s4 + $0x8] sm:$0xff] %vm567, %v617
  %626 = vst.msk [vmem:[%s4 + $0x10] sm:$0xff] %vm567, %v618
  %627 = vst.msk [vmem:[%s4 + $0x18] sm:$0xff] %vm567, %v619
  %628 = vst.msk [vmem:[%s4 + $0x20] sm:$0xff] %vm567, %v620
  %629 = vst.msk [vmem:[%s4 + $0x28] sm:$0xff] %vm567, %v621
  %630 = vst.msk [vmem:[%s4 + $0x30] sm:$0xff] %vm567, %v622
  %631 = vst.msk [vmem:[%s4 + $0x38] sm:$0xff] %vm567, %v623
  // Predicated region
  $region14: #{_lambda_.13} parent=0 // pred_check
    _
  $region15: #{_lambda_.13} parent=0 // pred_check_branch
    %633 = sbr.rel (0) target = $region17
  $region16: #{_lambda_.13} parent=0 // pred_region
    _
  $region17: #{_lambda_.13} parent=0 // pred_fallthru
    _
  // Predicated region
  $region18: #{_lambda_.13} parent=0 // pred_check
    _
  $region19: #{_lambda_.13} parent=0 // pred_check_branch
    %635 = sbr.rel (0) target = $region21
  $region20: #{_lambda_.13} parent=0 // pred_region
    _
  $region21: #{_lambda_.13} parent=0 // pred_fallthru
    _
  // Predicated region
  $region22: #{_lambda_.13} parent=0 // pred_check
    _
  $region23: #{_lambda_.13} parent=0 // pred_check_branch
    %637 = sbr.rel (0) target = $region25
  $region24: #{_lambda_.13} parent=0 // pred_region
    _
  $region25: #{_lambda_.13} parent=0 // pred_fallthru
    _
  // Predicated region
  $region26: #{_lambda_.13} parent=0 // pred_check
    _
  $region27: #{_lambda_.13} parent=0 // pred_check_branch
    %639 = sbr.rel (0) target = $region29
  $region28: #{_lambda_.13} parent=0 // pred_region
    _
  $region29: #{_lambda_.13} parent=0 // pred_fallthru
    _
  // Predicated region
  $region30: #{_lambda_.13} parent=0 // pred_check
    _
  $region31: #{_lambda_.13} parent=0 // pred_check_branch
    %641 = sbr.rel (0) target = $region33
  $region32: #{_lambda_.13} parent=0 // pred_region
    _
  $region33: #{_lambda_.13} parent=0 // pred_fallthru
    _
  // Predicated region
  $region34: #{_lambda_.13} parent=0 // pred_check
    _
  $region35: #{_lambda_.13} parent=0 // pred_check_branch
    %643 = sbr.rel (0) target = $region37
  $region36: #{_lambda_.13} parent=0 // pred_region
    _
  $region37: #{_lambda_.13} parent=0 // pred_fallthru
    _

// kernel: _lambda_.14
$region0: #{_lambda_.14}
  #allocation0 [shape = 'u32[]', space=smem, size = 0x4, offset = 0x4, fixed_abs, tag = 'smem constant byte address 0x4 - core index']
  #allocation1 [shape = 'u32[144,128]{1,0:T(1,128)}', space=vmem, size = 0x12000, scoped, tag = 'internal scratch']
  %s0 = inlined_call_operand.vmem [shape: f32[64,98], index: 0, kind: input, shape index: {}]
  %s1 = inlined_call_operand.vmem [shape: f32[64,1], index: 1, kind: input, shape index: {}]
  %s2 = inlined_call_operand.vmem [shape: f32[64,1], index: 2, kind: input, shape index: {}]
  %s3 = inlined_call_operand.vmem [shape: f32[64,98], index: 3, kind: output, shape index: {}]
  %s4 = sld [smem:[#allocation0]]
  $region22: #{_lambda_.14} parent=0
    _
  %s6 = ssub.s32 1, %s4
  %s7 = scalar_select 0, %s6, %s4
  // Predicated region
  $region2: #{_lambda_.14} parent=0 // pred_check
    _
  $region3: #{_lambda_.14} parent=0 // pred_check_branch
    %9 = sbr.rel (0) target = $region5
  $region4: #{_lambda_.14} parent=0 // pred_region
    _
  $region5: #{_lambda_.14} parent=0 // pred_fallthru
    _
  // Predicated region
  $region6: #{_lambda_.14} parent=0 // pred_check
    _
  $region7: #{_lambda_.14} parent=0 // pred_check_branch
    %11 = sbr.rel (0) target = $region9
  $region8: #{_lambda_.14} parent=0 // pred_region
    _
  $region9: #{_lambda_.14} parent=0 // pred_fallthru
    _
  // Predicated region
  $region10: #{_lambda_.14} parent=0 // pred_check
    _
  $region11: #{_lambda_.14} parent=0 // pred_check_branch
    %13 = sbr.rel (0) target = $region13
  $region12: #{_lambda_.14} parent=0 // pred_region
    _
  $region13: #{_lambda_.14} parent=0 // pred_fallthru
    _
  %v14 = vld [vmem:[%s0] sm:$0xff]
  %v15 = vld [vmem:[%s0 + $0x8] sm:$0xff]
  %v16 = vld [vmem:[%s0 + $0x10] sm:$0xff]
  %v17 = vld [vmem:[%s0 + $0x18] sm:$0xff]
  %v18 = vld [vmem:[%s0 + $0x20] sm:$0xff]
  %v19 = vld [vmem:[%s0 + $0x28] sm:$0xff]
  %v20 = vld [vmem:[%s0 + $0x30] sm:$0xff]
  %v21 = vld [vmem:[%s0 + $0x38] sm:$0xff]
  %v22 = vld [vmem:[%s1] sm:$0xff]
  %v23 = vld [vmem:[%s1 + $0x8] sm:$0xff]
  %v24 = vld [vmem:[%s1 + $0x10] sm:$0xff]
  %v25 = vld [vmem:[%s1 + $0x18] sm:$0xff]
  %v26 = vld [vmem:[%s1 + $0x20] sm:$0xff]
  %v27 = vld [vmem:[%s1 + $0x28] sm:$0xff]
  %v28 = vld [vmem:[%s1 + $0x30] sm:$0xff]
  %v29 = vld [vmem:[%s1 + $0x38] sm:$0xff]
  %31 = vset.pattern.permute.xlu0 0
  %32 = vperm.xlu0 %31, %v22
  %v33 = vpop.permute.xlu0 %32
  %36 = vset.pattern.permute.xlu0 0
  %37 = vperm.xlu0 %36, %v23
  %v38 = vpop.permute.xlu0 %37
  %41 = vset.pattern.permute.xlu0 0
  %42 = vperm.xlu0 %41, %v24
  %v43 = vpop.permute.xlu0 %42
  %46 = vset.pattern.permute.xlu0 0
  %47 = vperm.xlu0 %46, %v25
  %v48 = vpop.permute.xlu0 %47
  %51 = vset.pattern.permute.xlu0 0
  %52 = vperm.xlu0 %51, %v26
  %v53 = vpop.permute.xlu0 %52
  %56 = vset.pattern.permute.xlu0 0
  %57 = vperm.xlu0 %56, %v27
  %v58 = vpop.permute.xlu0 %57
  %61 = vset.pattern.permute.xlu0 0
  %62 = vperm.xlu0 %61, %v28
  %v63 = vpop.permute.xlu0 %62
  %66 = vset.pattern.permute.xlu0 0
  %67 = vperm.xlu0 %66, %v29
  %v68 = vpop.permute.xlu0 %67
  %v70 = vmul.f32 %v14, %v33
  %v71 = vmul.f32 %v15, %v38
  %v72 = vmul.f32 %v16, %v43
  %v73 = vmul.f32 %v17, %v48
  %v74 = vmul.f32 %v18, %v53
  %v75 = vmul.f32 %v19, %v58
  %v76 = vmul.f32 %v20, %v63
  %v77 = vmul.f32 %v21, %v68
  %v78 = vld [vmem:[%s2] sm:$0xff]
  %v79 = vld [vmem:[%s2 + $0x8] sm:$0xff]
  %v80 = vld [vmem:[%s2 + $0x10] sm:$0xff]
  %v81 = vld [vmem:[%s2 + $0x18] sm:$0xff]
  %v82 = vld [vmem:[%s2 + $0x20] sm:$0xff]
  %v83 = vld [vmem:[%s2 + $0x28] sm:$0xff]
  %v84 = vld [vmem:[%s2 + $0x30] sm:$0xff]
  %v85 = vld [vmem:[%s2 + $0x38] sm:$0xff]
  %87 = vset.pattern.permute.xlu0 0
  %88 = vperm.xlu0 %87, %v78
  %v89 = vpop.permute.xlu0 %88
  %92 = vset.pattern.permute.xlu0 0
  %93 = vperm.xlu0 %92, %v79
  %v94 = vpop.permute.xlu0 %93
  %97 = vset.pattern.permute.xlu0 0
  %98 = vperm.xlu0 %97, %v80
  %v99 = vpop.permute.xlu0 %98
  %102 = vset.pattern.permute.xlu0 0
  %103 = vperm.xlu0 %102, %v81
  %v104 = vpop.permute.xlu0 %103
  %107 = vset.pattern.permute.xlu0 0
  %108 = vperm.xlu0 %107, %v82
  %v109 = vpop.permute.xlu0 %108
  %112 = vset.pattern.permute.xlu0 0
  %113 = vperm.xlu0 %112, %v83
  %v114 = vpop.permute.xlu0 %113
  %117 = vset.pattern.permute.xlu0 0
  %118 = vperm.xlu0 %117, %v84
  %v119 = vpop.permute.xlu0 %118
  %122 = vset.pattern.permute.xlu0 0
  %123 = vperm.xlu0 %122, %v85
  %v124 = vpop.permute.xlu0 %123
  %v126 = vadd.f32 %v70, %v89
  %v127 = vadd.f32 %v71, %v94
  %v128 = vadd.f32 %v72, %v99
  %v129 = vadd.f32 %v73, %v104
  %v130 = vadd.f32 %v74, %v109
  %v131 = vadd.f32 %v75, %v114
  %v132 = vadd.f32 %v76, %v119
  %v133 = vadd.f32 %v77, %v124
  %vm134 = vcmp.ge.f32.partialorder %v126, 0.0
  %vm135 = vcmp.ge.f32.partialorder %v127, 0.0
  %vm136 = vcmp.ge.f32.partialorder %v128, 0.0
  %vm137 = vcmp.ge.f32.partialorder %v129, 0.0
  %vm138 = vcmp.ge.f32.partialorder %v130, 0.0
  %vm139 = vcmp.ge.f32.partialorder %v131, 0.0
  %vm140 = vcmp.ge.f32.partialorder %v132, 0.0
  %vm141 = vcmp.ge.f32.partialorder %v133, 0.0
  %v142 = vmul.f32 %v126, 0.2
  %v143 = vmul.f32 %v127, 0.2
  %v144 = vmul.f32 %v128, 0.2
  %v145 = vmul.f32 %v129, 0.2
  %v146 = vmul.f32 %v130, 0.2
  %v147 = vmul.f32 %v131, 0.2
  %v148 = vmul.f32 %v132, 0.2
  %v149 = vmul.f32 %v133, 0.2
  %v150 = vsel %vm134, %v126, %v142
  %v151 = vsel %vm135, %v127, %v143
  %v152 = vsel %vm136, %v128, %v144
  %v153 = vsel %vm137, %v129, %v145
  %v154 = vsel %vm138, %v130, %v146
  %v155 = vsel %vm139, %v131, %v147
  %v156 = vsel %vm140, %v132, %v148
  %v157 = vsel %vm141, %v133, %v149
  %vm158 = vcmask 801792
  %159 = vst.msk [vmem:[%s3] sm:$0xff] %vm158, %v150
  %160 = vst.msk [vmem:[%s3 + $0x8] sm:$0xff] %vm158, %v151
  %161 = vst.msk [vmem:[%s3 + $0x10] sm:$0xff] %vm158, %v152
  %162 = vst.msk [vmem:[%s3 + $0x18] sm:$0xff] %vm158, %v153
  %163 = vst.msk [vmem:[%s3 + $0x20] sm:$0xff] %vm158, %v154
  %164 = vst.msk [vmem:[%s3 + $0x28] sm:$0xff] %vm158, %v155
  %165 = vst.msk [vmem:[%s3 + $0x30] sm:$0xff] %vm158, %v156
  %166 = vst.msk [vmem:[%s3 + $0x38] sm:$0xff] %vm158, %v157
  // Predicated region
  $region14: #{_lambda_.14} parent=0 // pred_check
    _
  $region15: #{_lambda_.14} parent=0 // pred_check_branch
    %168 = sbr.rel (0) target = $region17
  $region16: #{_lambda_.14} parent=0 // pred_region
    _
  $region17: #{_lambda_.14} parent=0 // pred_fallthru
    _
  // Predicated region
  $region18: #{_lambda_.14} parent=0 // pred_check
    _
  $region19: #{_lambda_.14} parent=0 // pred_check_branch
    %170 = sbr.rel (0) target = $region21
  $region20: #{_lambda_.14} parent=0 // pred_region
    _
  $region21: #{_lambda_.14} parent=0 // pred_fallthru
    _

// kernel: _lambda_.15
$region0: #{_lambda_.15}
  #allocation0 [shape = 'u32[]', space=smem, size = 0x4, offset = 0x4, fixed_abs, tag = 'smem constant byte address 0x4 - core index']
  #allocation1 [shape = 'u32[144,128]{1,0:T(1,128)}', space=vmem, size = 0x12000, scoped, tag = 'internal scratch']
  #allocation2 [shape = 'f32[1,1]{1,0:T(1,128)S(1)}', space=vmem, size = 0x200, scoped, tag = 'scoped memory for _lambda_.15']
  %s0 = inlined_call_operand.vmem [shape: bf16[1,1024], index: 0, kind: input, shape index: {}]
  %s1 = inlined_call_operand.vmem [shape: bf16[1024,72], index: 1, kind: input, shape index: {}]
  %s2 = inlined_call_operand.<no memory space> [shape: f32[1,1], index: 2, kind: input, shape index: {}]
  %s3 = inlined_call_operand.vmem [shape: f32[1,72], index: 3, kind: output, shape index: {}]
  %s4 = sld [smem:[#allocation0]]
  $region22: #{_lambda_.15} parent=0
    _
  %s6 = ssub.s32 1, %s4
  %s7 = scalar_select 0, %s6, %s4
  %v8 = vstv %s2
  %9 = vst [vmem:[#allocation2] sm:$0x1] %v8
  // Predicated region
  $region2: #{_lambda_.15} parent=0 // pred_check
    _
  $region3: #{_lambda_.15} parent=0 // pred_check_branch
    %11 = sbr.rel (0) target = $region5
  $region4: #{_lambda_.15} parent=0 // pred_region
    _
  $region5: #{_lambda_.15} parent=0 // pred_fallthru
    _
  // Predicated region
  $region6: #{_lambda_.15} parent=0 // pred_check
    _
  $region7: #{_lambda_.15} parent=0 // pred_check_branch
    %13 = sbr.rel (0) target = $region9
  $region8: #{_lambda_.15} parent=0 // pred_region
    _
  $region9: #{_lambda_.15} parent=0 // pred_fallthru
    _
  // Predicated region
  $region10: #{_lambda_.15} parent=0 // pred_check
    _
  $region11: #{_lambda_.15} parent=0 // pred_check_branch
    %15 = sbr.rel (0) target = $region13
  $region12: #{_lambda_.15} parent=0 // pred_region
    _
  $region13: #{_lambda_.15} parent=0 // pred_fallthru
    _
  %v17 = vld [vmem:[%s0] sm:$0xff]
  %v18 = vld [vmem:[%s1] sm:$0xf]
  %v19 = vld [vmem:[%s1 + $0x4] sm:$0xf]
  %v20 = vld [vmem:[%s1 + $0x8] sm:$0xf]
  %v21 = vld [vmem:[%s1 + $0xc] sm:$0xf]
  %v22 = vld [vmem:[%s1 + $0x10] sm:$0xf]
  %v23 = vld [vmem:[%s1 + $0x14] sm:$0xf]
  %v24 = vld [vmem:[%s1 + $0x18] sm:$0xf]
  %v25 = vld [vmem:[%s1 + $0x1c] sm:$0xf]
  %v26 = vld [vmem:[%s1 + $0x20] sm:$0xf]
  %v27 = vld [vmem:[%s1 + $0x24] sm:$0xf]
  %v28 = vld [vmem:[%s1 + $0x28] sm:$0xf]
  %v29 = vld [vmem:[%s1 + $0x2c] sm:$0xf]
  %v30 = vld [vmem:[%s1 + $0x30] sm:$0xf]
  %v31 = vld [vmem:[%s1 + $0x34] sm:$0xf]
  %v32 = vld [vmem:[%s1 + $0x38] sm:$0xf]
  %v33 = vld [vmem:[%s1 + $0x3c] sm:$0xf]
  %v34 = vld [vmem:[%s1 + $0x40] sm:$0xf]
  %v35 = vld [vmem:[%s1 + $0x44] sm:$0xf]
  %v36 = vld [vmem:[%s1 + $0x48] sm:$0xf]
  %v37 = vld [vmem:[%s1 + $0x4c] sm:$0xf]
  %v38 = vld [vmem:[%s1 + $0x50] sm:$0xf]
  %v39 = vld [vmem:[%s1 + $0x54] sm:$0xf]
  %v40 = vld [vmem:[%s1 + $0x58] sm:$0xf]
  %v41 = vld [vmem:[%s1 + $0x5c] sm:$0xf]
  %v42 = vld [vmem:[%s1 + $0x60] sm:$0xf]
  %v43 = vld [vmem:[%s1 + $0x64] sm:$0xf]
  %v44 = vld [vmem:[%s1 + $0x68] sm:$0xf]
  %v45 = vld [vmem:[%s1 + $0x6c] sm:$0xf]
  %v46 = vld [vmem:[%s1 + $0x70] sm:$0xf]
  %v47 = vld [vmem:[%s1 + $0x74] sm:$0xf]
  %v48 = vld [vmem:[%s1 + $0x78] sm:$0xf]
  %v49 = vld [vmem:[%s1 + $0x7c] sm:$0xf]
  %v50 = vld [vmem:[%s1 + $0x80] sm:$0xf]
  %v51 = vld [vmem:[%s1 + $0x84] sm:$0xf]
  %v52 = vld [vmem:[%s1 + $0x88] sm:$0xf]
  %v53 = vld [vmem:[%s1 + $0x8c] sm:$0xf]
  %v54 = vld [vmem:[%s1 + $0x90] sm:$0xf]
  %v55 = vld [vmem:[%s1 + $0x94] sm:$0xf]
  %v56 = vld [vmem:[%s1 + $0x98] sm:$0xf]
  %v57 = vld [vmem:[%s1 + $0x9c] sm:$0xf]
  %v58 = vld [vmem:[%s1 + $0xa0] sm:$0xf]
  %v59 = vld [vmem:[%s1 + $0xa4] sm:$0xf]
  %v60 = vld [vmem:[%s1 + $0xa8] sm:$0xf]
  %v61 = vld [vmem:[%s1 + $0xac] sm:$0xf]
  %v62 = vld [vmem:[%s1 + $0xb0] sm:$0xf]
  %v63 = vld [vmem:[%s1 + $0xb4] sm:$0xf]
  %v64 = vld [vmem:[%s1 + $0xb8] sm:$0xf]
  %v65 = vld [vmem:[%s1 + $0xbc] sm:$0xf]
  %v66 = vld [vmem:[%s1 + $0xc0] sm:$0xf]
  %v67 = vld [vmem:[%s1 + $0xc4] sm:$0xf]
  %v68 = vld [vmem:[%s1 + $0xc8] sm:$0xf]
  %v69 = vld [vmem:[%s1 + $0xcc] sm:$0xf]
  %v70 = vld [vmem:[%s1 + $0xd0] sm:$0xf]
  %v71 = vld [vmem:[%s1 + $0xd4] sm:$0xf]
  %v72 = vld [vmem:[%s1 + $0xd8] sm:$0xf]
  %v73 = vld [vmem:[%s1 + $0xdc] sm:$0xf]
  %v74 = vld [vmem:[%s1 + $0xe0] sm:$0xf]
  %v75 = vld [vmem:[%s1 + $0xe4] sm:$0xf]
  %v76 = vld [vmem:[%s1 + $0xe8] sm:$0xf]
  %v77 = vld [vmem:[%s1 + $0xec] sm:$0xf]
  %v78 = vld [vmem:[%s1 + $0xf0] sm:$0xf]
  %v79 = vld [vmem:[%s1 + $0xf4] sm:$0xf]
  %v80 = vld [vmem:[%s1 + $0xf8] sm:$0xf]
  %v81 = vld [vmem:[%s1 + $0xfc] sm:$0xf]
  %v82 = vld [vmem:[%s1 + $0x100] sm:$0xf]
  %v83 = vld [vmem:[%s1 + $0x104] sm:$0xf]
  %v84 = vld [vmem:[%s1 + $0x108] sm:$0xf]
  %v85 = vld [vmem:[%s1 + $0x10c] sm:$0xf]
  %v86 = vld [vmem:[%s1 + $0x110] sm:$0xf]
  %v87 = vld [vmem:[%s1 + $0x114] sm:$0xf]
  %v88 = vld [vmem:[%s1 + $0x118] sm:$0xf]
  %v89 = vld [vmem:[%s1 + $0x11c] sm:$0xf]
  %v90 = vld [vmem:[%s1 + $0x120] sm:$0xf]
  %v91 = vld [vmem:[%s1 + $0x124] sm:$0xf]
  %v92 = vld [vmem:[%s1 + $0x128] sm:$0xf]
  %v93 = vld [vmem:[%s1 + $0x12c] sm:$0xf]
  %v94 = vld [vmem:[%s1 + $0x130] sm:$0xf]
  %v95 = vld [vmem:[%s1 + $0x134] sm:$0xf]
  %v96 = vld [vmem:[%s1 + $0x138] sm:$0xf]
  %v97 = vld [vmem:[%s1 + $0x13c] sm:$0xf]
  %v98 = vld [vmem:[%s1 + $0x140] sm:$0xf]
  %v99 = vld [vmem:[%s1 + $0x144] sm:$0xf]
  %v100 = vld [vmem:[%s1 + $0x148] sm:$0xf]
  %v101 = vld [vmem:[%s1 + $0x14c] sm:$0xf]
  %v102 = vld [vmem:[%s1 + $0x150] sm:$0xf]
  %v103 = vld [vmem:[%s1 + $0x154] sm:$0xf]
  %v104 = vld [vmem:[%s1 + $0x158] sm:$0xf]
  %v105 = vld [vmem:[%s1 + $0x15c] sm:$0xf]
  %v106 = vld [vmem:[%s1 + $0x160] sm:$0xf]
  %v107 = vld [vmem:[%s1 + $0x164] sm:$0xf]
  %v108 = vld [vmem:[%s1 + $0x168] sm:$0xf]
  %v109 = vld [vmem:[%s1 + $0x16c] sm:$0xf]
  %v110 = vld [vmem:[%s1 + $0x170] sm:$0xf]
  %v111 = vld [vmem:[%s1 + $0x174] sm:$0xf]
  %v112 = vld [vmem:[%s1 + $0x178] sm:$0xf]
  %v113 = vld [vmem:[%s1 + $0x17c] sm:$0xf]
  %v114 = vld [vmem:[%s1 + $0x180] sm:$0xf]
  %v115 = vld [vmem:[%s1 + $0x184] sm:$0xf]
  %v116 = vld [vmem:[%s1 + $0x188] sm:$0xf]
  %v117 = vld [vmem:[%s1 + $0x18c] sm:$0xf]
  %v118 = vld [vmem:[%s1 + $0x190] sm:$0xf]
  %v119 = vld [vmem:[%s1 + $0x194] sm:$0xf]
  %v120 = vld [vmem:[%s1 + $0x198] sm:$0xf]
  %v121 = vld [vmem:[%s1 + $0x19c] sm:$0xf]
  %v122 = vld [vmem:[%s1 + $0x1a0] sm:$0xf]
  %v123 = vld [vmem:[%s1 + $0x1a4] sm:$0xf]
  %v124 = vld [vmem:[%s1 + $0x1a8] sm:$0xf]
  %v125 = vld [vmem:[%s1 + $0x1ac] sm:$0xf]
  %v126 = vld [vmem:[%s1 + $0x1b0] sm:$0xf]
  %v127 = vld [vmem:[%s1 + $0x1b4] sm:$0xf]
  %v128 = vld [vmem:[%s1 + $0x1b8] sm:$0xf]
  %v129 = vld [vmem:[%s1 + $0x1bc] sm:$0xf]
  %v130 = vld [vmem:[%s1 + $0x1c0] sm:$0xf]
  %v131 = vld [vmem:[%s1 + $0x1c4] sm:$0xf]
  %v132 = vld [vmem:[%s1 + $0x1c8] sm:$0xf]
  %v133 = vld [vmem:[%s1 + $0x1cc] sm:$0xf]
  %v134 = vld [vmem:[%s1 + $0x1d0] sm:$0xf]
  %v135 = vld [vmem:[%s1 + $0x1d4] sm:$0xf]
  %v136 = vld [vmem:[%s1 + $0x1d8] sm:$0xf]
  %v137 = vld [vmem:[%s1 + $0x1dc] sm:$0xf]
  %v138 = vld [vmem:[%s1 + $0x1e0] sm:$0xf]
  %v139 = vld [vmem:[%s1 + $0x1e4] sm:$0xf]
  %v140 = vld [vmem:[%s1 + $0x1e8] sm:$0xf]
  %v141 = vld [vmem:[%s1 + $0x1ec] sm:$0xf]
  %v142 = vld [vmem:[%s1 + $0x1f0] sm:$0xf]
  %v143 = vld [vmem:[%s1 + $0x1f4] sm:$0xf]
  %v144 = vld [vmem:[%s1 + $0x1f8] sm:$0xf]
  %v145 = vld [vmem:[%s1 + $0x1fc] sm:$0xf]
  %v146 = vld [vmem:[#allocation2] sm:$0x1]
  %148 = vset.pattern.permute.xlu0 0
  %149 = vperm.xlu0 %148, %v146
  %v150 = vpop.permute.xlu0 %149
  %v152 = vlaneseq
  %v153 = vshrl.u32 %v152, 7
  %v154 = vsub.s32 0, %v153
  %v155 = vrot.slane %v150, %v154
  %v157 = vcombine.high %v17, %v17
  %v159 = vunpack.c.l.s4 1966171168
  %v160 = vunpack.c.0.s8 %v159
  %v161 = vlaneseq
  %v162 = vshrl.u32 %v161, 7
  %v163 = vsub.s32 %v160, %v162
  %v164 = vrot.slane %v17, %v163
  %v166 = vunpack.c.l.s4 1966171168
  %v167 = vunpack.c.0.s8 %v166
  %v168 = vlaneseq
  %v169 = vshrl.u32 %v168, 7
  %v170 = vsub.s32 %v167, %v169
  %v171 = vrot.slane %v157, %v170
  %v172 = vcombine.high %v164, %v164
  %v173 = vcombine.high %v171, %v171
  %v175 = vunpack.c.l.s4 1966171168
  %v176 = vunpack.c.0.s8 %v175
  %v177 = vlaneseq
  %v178 = vshrl.u32 %v177, 7
  %v179 = vsub.s32 %v176, %v178
  %v180 = vrot.slane %v164, %v179
  %v182 = vunpack.c.l.s4 1966171168
  %v183 = vunpack.c.0.s8 %v182
  %v184 = vlaneseq
  %v185 = vshrl.u32 %v184, 7
  %v186 = vsub.s32 %v183, %v185
  %v187 = vrot.slane %v171, %v186
  %v189 = vunpack.c.l.s4 1966171168
  %v190 = vunpack.c.0.s8 %v189
  %v191 = vlaneseq
  %v192 = vshrl.u32 %v191, 7
  %v193 = vsub.s32 %v190, %v192
  %v194 = vrot.slane %v172, %v193
  %v196 = vunpack.c.l.s4 1966171168
  %v197 = vunpack.c.0.s8 %v196
  %v198 = vlaneseq
  %v199 = vshrl.u32 %v198, 7
  %v200 = vsub.s32 %v197, %v199
  %v201 = vrot.slane %v173, %v200
  %v202 = vcombine.high %v180, %v180
  %v203 = vcombine.high %v187, %v187
  %v204 = vcombine.high %v194, %v194
  %v205 = vcombine.high %v201, %v201
  %v342 = vunpack.c.l.b16 %v18
  %v343 = vunpack.c.l.b16 %v19
  %v344 = vunpack.c.l.b16 %v20
  %v345 = vunpack.c.l.b16 %v21
  %v346 = vunpack.c.l.b16 %v22
  %v347 = vunpack.c.l.b16 %v23
  %v348 = vunpack.c.l.b16 %v24
  %v349 = vunpack.c.l.b16 %v25
  %v350 = vunpack.c.l.b16 %v26
  %v351 = vunpack.c.l.b16 %v27
  %v352 = vunpack.c.l.b16 %v28
  %v353 = vunpack.c.l.b16 %v29
  %v354 = vunpack.c.l.b16 %v30
  %v355 = vunpack.c.l.b16 %v31
  %v356 = vunpack.c.l.b16 %v32
  %v357 = vunpack.c.l.b16 %v33
  %v358 = vunpack.c.l.b16 %v34
  %v359 = vunpack.c.l.b16 %v35
  %v360 = vunpack.c.l.b16 %v36
  %v361 = vunpack.c.l.b16 %v37
  %v362 = vunpack.c.l.b16 %v38
  %v363 = vunpack.c.l.b16 %v39
  %v364 = vunpack.c.l.b16 %v40
  %v365 = vunpack.c.l.b16 %v41
  %v366 = vunpack.c.l.b16 %v42
  %v367 = vunpack.c.l.b16 %v43
  %v368 = vunpack.c.l.b16 %v44
  %v369 = vunpack.c.l.b16 %v45
  %v370 = vunpack.c.l.b16 %v46
  %v371 = vunpack.c.l.b16 %v47
  %v372 = vunpack.c.l.b16 %v48
  %v373 = vunpack.c.l.b16 %v49
  %v374 = vunpack.c.l.b16 %v50
  %v375 = vunpack.c.l.b16 %v51
  %v376 = vunpack.c.l.b16 %v52
  %v377 = vunpack.c.l.b16 %v53
  %v378 = vunpack.c.l.b16 %v54
  %v379 = vunpack.c.l.b16 %v55
  %v380 = vunpack.c.l.b16 %v56
  %v381 = vunpack.c.l.b16 %v57
  %v382 = vunpack.c.l.b16 %v58
  %v383 = vunpack.c.l.b16 %v59
  %v384 = vunpack.c.l.b16 %v60
  %v385 = vunpack.c.l.b16 %v61
  %v386 = vunpack.c.l.b16 %v62
  %v387 = vunpack.c.l.b16 %v63
  %v388 = vunpack.c.l.b16 %v64
  %v389 = vunpack.c.l.b16 %v65
  %v390 = vunpack.c.l.b16 %v66
  %v391 = vunpack.c.l.b16 %v67
  %v392 = vunpack.c.l.b16 %v68
  %v393 = vunpack.c.l.b16 %v69
  %v394 = vunpack.c.l.b16 %v70
  %v395 = vunpack.c.l.b16 %v71
  %v396 = vunpack.c.l.b16 %v72
  %v397 = vunpack.c.l.b16 %v73
  %v398 = vunpack.c.l.b16 %v74
  %v399 = vunpack.c.l.b16 %v75
  %v400 = vunpack.c.l.b16 %v76
  %v401 = vunpack.c.l.b16 %v77
  %v402 = vunpack.c.l.b16 %v78
  %v403 = vunpack.c.l.b16 %v79
  %v404 = vunpack.c.l.b16 %v80
  %v405 = vunpack.c.l.b16 %v81
  %v406 = vunpack.c.l.b16 %v82
  %v407 = vunpack.c.l.b16 %v83
  %v408 = vunpack.c.l.b16 %v84
  %v409 = vunpack.c.l.b16 %v85
  %v410 = vunpack.c.l.b16 %v86
  %v411 = vunpack.c.l.b16 %v87
  %v412 = vunpack.c.l.b16 %v88
  %v413 = vunpack.c.l.b16 %v89
  %v414 = vunpack.c.l.b16 %v90
  %v415 = vunpack.c.l.b16 %v91
  %v416 = vunpack.c.l.b16 %v92
  %v417 = vunpack.c.l.b16 %v93
  %v418 = vunpack.c.l.b16 %v94
  %v419 = vunpack.c.l.b16 %v95
  %v420 = vunpack.c.l.b16 %v96
  %v421 = vunpack.c.l.b16 %v97
  %v422 = vunpack.c.l.b16 %v98
  %v423 = vunpack.c.l.b16 %v99
  %v424 = vunpack.c.l.b16 %v100
  %v425 = vunpack.c.l.b16 %v101
  %v426 = vunpack.c.l.b16 %v102
  %v427 = vunpack.c.l.b16 %v103
  %v428 = vunpack.c.l.b16 %v104
  %v429 = vunpack.c.l.b16 %v105
  %v430 = vunpack.c.l.b16 %v106
  %v431 = vunpack.c.l.b16 %v107
  %v432 = vunpack.c.l.b16 %v108
  %v433 = vunpack.c.l.b16 %v109
  %v434 = vunpack.c.l.b16 %v110
  %v435 = vunpack.c.l.b16 %v111
  %v436 = vunpack.c.l.b16 %v112
  %v437 = vunpack.c.l.b16 %v113
  %v438 = vunpack.c.l.b16 %v114
  %v439 = vunpack.c.l.b16 %v115
  %v440 = vunpack.c.l.b16 %v116
  %v441 = vunpack.c.l.b16 %v117
  %v442 = vunpack.c.l.b16 %v118
  %v443 = vunpack.c.l.b16 %v119
  %v444 = vunpack.c.l.b16 %v120
  %v445 = vunpack.c.l.b16 %v121
  %v446 = vunpack.c.l.b16 %v122
  %v447 = vunpack.c.l.b16 %v123
  %v448 = vunpack.c.l.b16 %v124
  %v449 = vunpack.c.l.b16 %v125
  %v450 = vunpack.c.l.b16 %v126
  %v451 = vunpack.c.l.b16 %v127
  %v452 = vunpack.c.l.b16 %v128
  %v453 = vunpack.c.l.b16 %v129
  %v454 = vunpack.c.l.b16 %v130
  %v455 = vunpack.c.l.b16 %v131
  %v456 = vunpack.c.l.b16 %v132
  %v457 = vunpack.c.l.b16 %v133
  %v458 = vunpack.c.l.b16 %v134
  %v459 = vunpack.c.l.b16 %v135
  %v460 = vunpack.c.l.b16 %v136
  %v461 = vunpack.c.l.b16 %v137
  %v462 = vunpack.c.l.b16 %v138
  %v463 = vunpack.c.l.b16 %v139
  %v464 = vunpack.c.l.b16 %v140
  %v465 = vunpack.c.l.b16 %v141
  %v466 = vunpack.c.l.b16 %v142
  %v467 = vunpack.c.l.b16 %v143
  %v468 = vunpack.c.l.b16 %v144
  %v469 = vunpack.c.l.b16 %v145
  %v470 = vpack.c.b16 %v343, %v342
  %v471 = vpack.c.b16 %v345, %v344
  %v472 = vpack.c.b16 %v347, %v346
  %v473 = vpack.c.b16 %v349, %v348
  %v474 = vpack.c.b16 %v351, %v350
  %v475 = vpack.c.b16 %v353, %v352
  %v476 = vpack.c.b16 %v355, %v354
  %v477 = vpack.c.b16 %v357, %v356
  %v478 = vpack.c.b16 %v359, %v358
  %v479 = vpack.c.b16 %v361, %v360
  %v480 = vpack.c.b16 %v363, %v362
  %v481 = vpack.c.b16 %v365, %v364
  %v482 = vpack.c.b16 %v367, %v366
  %v483 = vpack.c.b16 %v369, %v368
  %v484 = vpack.c.b16 %v371, %v370
  %v485 = vpack.c.b16 %v373, %v372
  %v486 = vpack.c.b16 %v375, %v374
  %v487 = vpack.c.b16 %v377, %v376
  %v488 = vpack.c.b16 %v379, %v378
  %v489 = vpack.c.b16 %v381, %v380
  %v490 = vpack.c.b16 %v383, %v382
  %v491 = vpack.c.b16 %v385, %v384
  %v492 = vpack.c.b16 %v387, %v386
  %v493 = vpack.c.b16 %v389, %v388
  %v494 = vpack.c.b16 %v391, %v390
  %v495 = vpack.c.b16 %v393, %v392
  %v496 = vpack.c.b16 %v395, %v394
  %v497 = vpack.c.b16 %v397, %v396
  %v498 = vpack.c.b16 %v399, %v398
  %v499 = vpack.c.b16 %v401, %v400
  %v500 = vpack.c.b16 %v403, %v402
  %v501 = vpack.c.b16 %v405, %v404
  %v502 = vpack.c.b16 %v407, %v406
  %v503 = vpack.c.b16 %v409, %v408
  %v504 = vpack.c.b16 %v411, %v410
  %v505 = vpack.c.b16 %v413, %v412
  %v506 = vpack.c.b16 %v415, %v414
  %v507 = vpack.c.b16 %v417, %v416
  %v508 = vpack.c.b16 %v419, %v418
  %v509 = vpack.c.b16 %v421, %v420
  %v510 = vpack.c.b16 %v423, %v422
  %v511 = vpack.c.b16 %v425, %v424
  %v512 = vpack.c.b16 %v427, %v426
  %v513 = vpack.c.b16 %v429, %v428
  %v514 = vpack.c.b16 %v431, %v430
  %v515 = vpack.c.b16 %v433, %v432
  %v516 = vpack.c.b16 %v435, %v434
  %v517 = vpack.c.b16 %v437, %v436
  %v518 = vpack.c.b16 %v439, %v438
  %v519 = vpack.c.b16 %v441, %v440
  %v520 = vpack.c.b16 %v443, %v442
  %v521 = vpack.c.b16 %v445, %v444
  %v522 = vpack.c.b16 %v447, %v446
  %v523 = vpack.c.b16 %v449, %v448
  %v524 = vpack.c.b16 %v451, %v450
  %v525 = vpack.c.b16 %v453, %v452
  %v526 = vpack.c.b16 %v455, %v454
  %v527 = vpack.c.b16 %v457, %v456
  %v528 = vpack.c.b16 %v459, %v458
  %v529 = vpack.c.b16 %v461, %v460
  %v530 = vpack.c.b16 %v463, %v462
  %v531 = vpack.c.b16 %v465, %v464
  %v532 = vpack.c.b16 %v467, %v466
  %v533 = vpack.c.b16 %v469, %v468
  %598 = vmatprep.subr.bf16.mxu0 0
  %599 = vmatpush1.bf16.msra.mxu0 %v470
  %600 = vmatprep.subr.bf16.mxu0 0
  %601 = vmatpush1.bf16.msra.mxu0 %v471
  %602 = vmatprep.subr.bf16.mxu0 0
  %603 = vmatpush1.bf16.msra.mxu0 %v472
  %604 = vmatprep.subr.bf16.mxu0 0
  %605 = vmatpush1.bf16.msra.mxu0 %v473
  %606 = vmatprep.subr.bf16.mxu0 0
  %607 = vmatpush1.bf16.msra.mxu0 %v474
  %608 = vmatprep.subr.bf16.mxu0 0
  %609 = vmatpush1.bf16.msra.mxu0 %v475
  %610 = vmatprep.subr.bf16.mxu0 0
  %611 = vmatpush1.bf16.msra.mxu0 %v476
  %612 = vmatprep.subr.bf16.mxu0 0
  %613 = vmatpush1.bf16.msra.mxu0 %v477
  %614 = vmatprep.subr.bf16.mxu0 0
  %615 = vmatpush1.bf16.msra.mxu0 %v478
  %616 = vmatprep.subr.bf16.mxu0 0
  %617 = vmatpush1.bf16.msra.mxu0 %v479
  %618 = vmatprep.subr.bf16.mxu0 0
  %619 = vmatpush1.bf16.msra.mxu0 %v480
  %620 = vmatprep.subr.bf16.mxu0 0
  %621 = vmatpush1.bf16.msra.mxu0 %v481
  %622 = vmatprep.subr.bf16.mxu0 0
  %623 = vmatpush1.bf16.msra.mxu0 %v482
  %624 = vmatprep.subr.bf16.mxu0 0
  %625 = vmatpush1.bf16.msra.mxu0 %v483
  %626 = vmatprep.subr.bf16.mxu0 0
  %627 = vmatpush1.bf16.msra.mxu0 %v484
  %628 = vmatprep.subr.bf16.mxu0 0
  %629 = vmatpush1.bf16.msra.mxu0 %v485
  %630 = vmatprep.mubr.bf16.mxu0 %v194
  %631 = vmatmul.mubr.bf16.gmra.mrb[0].mxu0 %v180
  %v632 = vpop.f32.mrb[0].mxu0
  %v633 = vadd.f32 %v155, %v632
  %v634 = vpop.f32.mrb[0].mxu0
  %v635 = vpop.f32.mrb[0].mxu0
  %v636 = vpop.f32.mrb[0].mxu0
  %637 = vdwg.mxu0
  %638 = vmatprep.subr.bf16.mxu0 0
  %639 = vmatpush1.bf16.msra.mxu0 %v486
  %640 = vmatprep.subr.bf16.mxu0 0
  %641 = vmatpush1.bf16.msra.mxu0 %v487
  %642 = vmatprep.subr.bf16.mxu0 0
  %643 = vmatpush1.bf16.msra.mxu0 %v488
  %644 = vmatprep.subr.bf16.mxu0 0
  %645 = vmatpush1.bf16.msra.mxu0 %v489
  %646 = vmatprep.subr.bf16.mxu0 0
  %647 = vmatpush1.bf16.msra.mxu0 %v490
  %648 = vmatprep.subr.bf16.mxu0 0
  %649 = vmatpush1.bf16.msra.mxu0 %v491
  %650 = vmatprep.subr.bf16.mxu0 0
  %651 = vmatpush1.bf16.msra.mxu0 %v492
  %652 = vmatprep.subr.bf16.mxu0 0
  %653 = vmatpush1.bf16.msra.mxu0 %v493
  %654 = vmatprep.subr.bf16.mxu0 0
  %655 = vmatpush1.bf16.msra.mxu0 %v494
  %656 = vmatprep.subr.bf16.mxu0 0
  %657 = vmatpush1.bf16.msra.mxu0 %v495
  %658 = vmatprep.subr.bf16.mxu0 0
  %659 = vmatpush1.bf16.msra.mxu0 %v496
  %660 = vmatprep.subr.bf16.mxu0 0
  %661 = vmatpush1.bf16.msra.mxu0 %v497
  %662 = vmatprep.subr.bf16.mxu0 0
  %663 = vmatpush1.bf16.msra.mxu0 %v498
  %664 = vmatprep.subr.bf16.mxu0 0
  %665 = vmatpush1.bf16.msra.mxu0 %v499
  %666 = vmatprep.subr.bf16.mxu0 0
  %667 = vmatpush1.bf16.msra.mxu0 %v500
  %668 = vmatprep.subr.bf16.mxu0 0
  %669 = vmatpush1.bf16.msra.mxu0 %v501
  %670 = vmatprep.mubr.bf16.mxu0 %v204
  %671 = vmatmul.mubr.bf16.gmra.mrb[0].mxu0 %v202
  %v672 = vpop.f32.mrb[0].mxu0
  %v673 = vadd.f32 %v633, %v672
  %v674 = vpop.f32.mrb[0].mxu0
  %v675 = vpop.f32.mrb[0].mxu0
  %v676 = vpop.f32.mrb[0].mxu0
  %677 = vdwg.mxu0
  %678 = vmatprep.subr.bf16.mxu0 0
  %679 = vmatpush1.bf16.msra.mxu0 %v502
  %680 = vmatprep.subr.bf16.mxu0 0
  %681 = vmatpush1.bf16.msra.mxu0 %v503
  %682 = vmatprep.subr.bf16.mxu0 0
  %683 = vmatpush1.bf16.msra.mxu0 %v504
  %684 = vmatprep.subr.bf16.mxu0 0
  %685 = vmatpush1.bf16.msra.mxu0 %v505
  %686 = vmatprep.subr.bf16.mxu0 0
  %687 = vmatpush1.bf16.msra.mxu0 %v506
  %688 = vmatprep.subr.bf16.mxu0 0
  %689 = vmatpush1.bf16.msra.mxu0 %v507
  %690 = vmatprep.subr.bf16.mxu0 0
  %691 = vmatpush1.bf16.msra.mxu0 %v508
  %692 = vmatprep.subr.bf16.mxu0 0
  %693 = vmatpush1.bf16.msra.mxu0 %v509
  %694 = vmatprep.subr.bf16.mxu0 0
  %695 = vmatpush1.bf16.msra.mxu0 %v510
  %696 = vmatprep.subr.bf16.mxu0 0
  %697 = vmatpush1.bf16.msra.mxu0 %v511
  %698 = vmatprep.subr.bf16.mxu0 0
  %699 = vmatpush1.bf16.msra.mxu0 %v512
  %700 = vmatprep.subr.bf16.mxu0 0
  %701 = vmatpush1.bf16.msra.mxu0 %v513
  %702 = vmatprep.subr.bf16.mxu0 0
  %703 = vmatpush1.bf16.msra.mxu0 %v514
  %704 = vmatprep.subr.bf16.mxu0 0
  %705 = vmatpush1.bf16.msra.mxu0 %v515
  %706 = vmatprep.subr.bf16.mxu0 0
  %707 = vmatpush1.bf16.msra.mxu0 %v516
  %708 = vmatprep.subr.bf16.mxu0 0
  %709 = vmatpush1.bf16.msra.mxu0 %v517
  %710 = vmatprep.mubr.bf16.mxu0 %v201
  %711 = vmatmul.mubr.bf16.gmra.mrb[0].mxu0 %v187
  %v712 = vpop.f32.mrb[0].mxu0
  %v713 = vadd.f32 %v673, %v712
  %v714 = vpop.f32.mrb[0].mxu0
  %v715 = vpop.f32.mrb[0].mxu0
  %v716 = vpop.f32.mrb[0].mxu0
  %717 = vdwg.mxu0
  %718 = vmatprep.subr.bf16.mxu0 0
  %719 = vmatpush1.bf16.msra.mxu0 %v518
  %720 = vmatprep.subr.bf16.mxu0 0
  %721 = vmatpush1.bf16.msra.mxu0 %v519
  %722 = vmatprep.subr.bf16.mxu0 0
  %723 = vmatpush1.bf16.msra.mxu0 %v520
  %724 = vmatprep.subr.bf16.mxu0 0
  %725 = vmatpush1.bf16.msra.mxu0 %v521
  %726 = vmatprep.subr.bf16.mxu0 0
  %727 = vmatpush1.bf16.msra.mxu0 %v522
  %728 = vmatprep.subr.bf16.mxu0 0
  %729 = vmatpush1.bf16.msra.mxu0 %v523
  %730 = vmatprep.subr.bf16.mxu0 0
  %731 = vmatpush1.bf16.msra.mxu0 %v524
  %732 = vmatprep.subr.bf16.mxu0 0
  %733 = vmatpush1.bf16.msra.mxu0 %v525
  %734 = vmatprep.subr.bf16.mxu0 0
  %735 = vmatpush1.bf16.msra.mxu0 %v526
  %736 = vmatprep.subr.bf16.mxu0 0
  %737 = vmatpush1.bf16.msra.mxu0 %v527
  %738 = vmatprep.subr.bf16.mxu0 0
  %739 = vmatpush1.bf16.msra.mxu0 %v528
  %740 = vmatprep.subr.bf16.mxu0 0
  %741 = vmatpush1.bf16.msra.mxu0 %v529
  %742 = vmatprep.subr.bf16.mxu0 0
  %743 = vmatpush1.bf16.msra.mxu0 %v530
  %744 = vmatprep.subr.bf16.mxu0 0
  %745 = vmatpush1.bf16.msra.mxu0 %v531
  %746 = vmatprep.subr.bf16.mxu0 0
  %747 = vmatpush1.bf16.msra.mxu0 %v532
  %748 = vmatprep.subr.bf16.mxu0 0
  %749 = vmatpush1.bf16.msra.mxu0 %v533
  %750 = vmatprep.mubr.bf16.mxu0 %v205
  %751 = vmatmul.mubr.bf16.gmra.mrb[0].mxu0 %v203
  %v752 = vpop.f32.mrb[0].mxu0
  %v753 = vadd.f32 %v713, %v752
  %v754 = vpop.f32.mrb[0].mxu0
  %v755 = vpop.f32.mrb[0].mxu0
  %v756 = vpop.f32.mrb[0].mxu0
  %757 = vdwg.mxu0
  %vm758 = vcmask 581632
  %759 = vst.msk [vmem:[%s3] sm:$0x1] %vm758, %v753
  // Predicated region
  $region14: #{_lambda_.15} parent=0 // pred_check
    _
  $region15: #{_lambda_.15} parent=0 // pred_check_branch
    %761 = sbr.rel (0) target = $region17
  $region16: #{_lambda_.15} parent=0 // pred_region
    _
  $region17: #{_lambda_.15} parent=0 // pred_fallthru
    _
  // Predicated region
  $region18: #{_lambda_.15} parent=0 // pred_check
    _
  $region19: #{_lambda_.15} parent=0 // pred_check_branch
    %763 = sbr.rel (0) target = $region21
  $region20: #{_lambda_.15} parent=0 // pred_region
    _
  $region21: #{_lambda_.15} parent=0 // pred_fallthru
    _

</llo_original>
